<compile_context>
chip_gen: v5e
topology: v5e:2x2
jax: 0.10.0
libtpu: 0.0.40
codegen_flags: <defaults>
</compile_context>

<pallas_src>
import functools

import jax
import jax.numpy as jnp
from jax.experimental import pallas as pl
from jax.experimental.pallas import tpu as pltpu


# Tap offsets in (dy, dx) order; matches the (ky, kx) order of the packed weights.
_OFFS = tuple((dy, dx) for dy in (-1, 0, 1) for dx in (-1, 0, 1))


# ----------------------------------------------------------------------------
# Fused ResidualGroup kernel (one grid step == one batch element).
# ----------------------------------------------------------------------------
def _residual_group_kernel(x_ref, wc_ref, bc_ref, w1_ref, b1_ref, w2_ref,
                           b2_ref, mask_ref, o_ref, pad_scr,
                           *, C, W, HW, PAD, n_blocks, res_scale):
    # Zero only the left/right lane borders of the tap scratch (they provide
    # the vertical zero padding); the interior is rewritten before every conv.
    pad_scr[:, :PAD] = jnp.zeros((C, PAD), jnp.bfloat16)
    pad_scr[:, PAD + HW:] = jnp.zeros((C, PAD), jnp.bfloat16)

    def conv3x3(h, conv_idx):
        # h: (C, HW) f32 -> (C, HW) f32.  One lane-aligned bf16 store, then the
        # 9 shifted tap loads feed the MXU directly (no im2col patch buffer).
        pad_scr[:, PAD:PAD + HW] = h.astype(jnp.bfloat16)
        acc = jnp.zeros((C, HW), jnp.float32)
        for t, (dy, dx) in enumerate(_OFFS):
            s = dy * W + dx                                    # static offset
            tap = pad_scr[:, PAD + s:PAD + s + HW]             # (C, HW) bf16
            if dx != 0:
                # Zero the lanes whose horizontal neighbour wrapped onto the
                # previous/next image row (flat-index "SAME" padding fix-up).
                tap = tap * mask_ref[0 if dx < 0 else 1]       # (1, HW) bf16
            acc = acc + jnp.dot(wc_ref[conv_idx * 9 + t], tap,
                                preferred_element_type=jnp.float32)
        return acc + bc_ref[conv_idx]                          # (C, 1) bias

    def rcab(b, res):
        # RCAB: conv -> relu -> conv -> channel attention -> scaled residual.
        h = jnp.maximum(conv3x3(res, 2 * b), 0.0)
        h = conv3x3(h, 2 * b + 1)
        pooled = jnp.mean(h, axis=1, keepdims=True)            # (C, 1)
        z = jnp.dot(w1_ref[b], pooled, preferred_element_type=jnp.float32)
        z = jnp.maximum(z + b1_ref[b], 0.0)                    # (Cr, 1)
        y = jnp.dot(w2_ref[b], z, preferred_element_type=jnp.float32)
        y = jax.nn.sigmoid(y + b2_ref[b])                      # (C, 1)
        return h * y * res_scale + res

    x0 = x_ref[0].astype(jnp.float32)                          # (C, HW)
    res = jax.lax.fori_loop(0, n_blocks, rcab, x0)
    # Tail conv + fused group residual add (re-read x to keep it out of the
    # loop's live range).
    out = conv3x3(res, 2 * n_blocks) + x_ref[0].astype(jnp.float32)
    o_ref[0] = out.astype(o_ref.dtype)                         # lane-dense store


# ----------------------------------------------------------------------------
# Parameter packing: per-tap (C, C) conv matrices stacked for dynamic indexing.
# ----------------------------------------------------------------------------
def _pack_params(params):
    blocks = params["blocks"]
    C = params["w_tail"].shape[0]
    ws, bs = [], []
    for blk in blocks:
        for wn, bn in (("w_a", "b_a"), ("w_b", "b_b")):
            # OIHW -> (ky, kx, Co, Ci) -> (9, C, C), tap-major.
            ws.append(jnp.transpose(blk[wn], (2, 3, 0, 1)).reshape(9, C, C))
            bs.append(blk[bn].reshape(C, 1))
    ws.append(jnp.transpose(params["w_tail"], (2, 3, 0, 1)).reshape(9, C, C))
    bs.append(params["b_tail"].reshape(C, 1))
    wc = jnp.concatenate(ws, axis=0).astype(jnp.bfloat16)      # (9*n_convs, C, C)
    bc = jnp.stack(bs)                                         # (n_convs, C, 1)
    w1 = jnp.stack([b["ca_w1"] for b in blocks])               # (nb, Cr, C)
    b1 = jnp.stack([b["ca_b1"].reshape(-1, 1) for b in blocks])
    w2 = jnp.stack([b["ca_w2"] for b in blocks])               # (nb, C, Cr)
    b2 = jnp.stack([b["ca_b2"].reshape(-1, 1) for b in blocks])
    return wc, bc, w1, b1, w2, b2


def residual_group_forward(x, params, *, res_scale):
    """x: (N, C, H, W) float32 (PyTorch NCHW)."""
    N, C, H, W = x.shape
    HW = H * W
    n_blocks = len(params["blocks"])
    n_convs = 2 * n_blocks + 1
    Cr = params["blocks"][0]["ca_w1"].shape[0]
    PAD = ((W + 1 + 127) // 128) * 128          # >= W+1 zero lanes, 128-aligned

    wc, bc, w1, b1, w2, b2 = _pack_params(params)

    # Horizontal boundary masks for the flat-index taps (dx = -1 / +1).
    col = jnp.arange(HW, dtype=jnp.int32) % W
    masks = jnp.stack([col != 0, col != W - 1]).astype(jnp.bfloat16)
    masks = masks.reshape(2, 1, HW)

    kernel = functools.partial(_residual_group_kernel, C=C, W=W, HW=HW,
                               PAD=PAD, n_blocks=n_blocks, res_scale=res_scale)
    out = pl.pallas_call(
        kernel,
        out_shape=jax.ShapeDtypeStruct((N, C, HW), x.dtype),
        grid=(N,),
        in_specs=[
            pl.BlockSpec((1, C, HW), lambda n: (n, 0, 0)),            # x (lane-dense)
            pl.BlockSpec((9 * n_convs, C, C), lambda n: (0, 0, 0)),   # conv taps
            pl.BlockSpec((n_convs, C, 1), lambda n: (0, 0, 0)),       # conv bias
            pl.BlockSpec((n_blocks, Cr, C), lambda n: (0, 0, 0)),     # CA W1
            pl.BlockSpec((n_blocks, Cr, 1), lambda n: (0, 0, 0)),     # CA b1
            pl.BlockSpec((n_blocks, C, Cr), lambda n: (0, 0, 0)),     # CA W2
            pl.BlockSpec((n_blocks, C, 1), lambda n: (0, 0, 0)),      # CA b2
            pl.BlockSpec((2, 1, HW), lambda n: (0, 0, 0)),            # x-edge masks
        ],
        out_specs=pl.BlockSpec((1, C, HW), lambda n: (n, 0, 0)),
        scratch_shapes=[pltpu.VMEM((C, HW + 2 * PAD), jnp.bfloat16)],  # tap scratch
        compiler_params=pltpu.CompilerParams(
            dimension_semantics=("parallel",)),
    )(x.reshape(N, C, HW), wc, bc, w1, b1, w2, b2, masks)
    return out.reshape(N, C, H, W)


# ----------------------------------------------------------------------------
# Deterministic parameter construction (synthetic, PyTorch-shaped weights).
# ----------------------------------------------------------------------------
def make_params(key, n_feat, reduction, n_resblocks):
    c_red = max(n_feat // reduction, 1)
    scale3 = (2.0 / (9.0 * n_feat)) ** 0.5
    blocks = []
    for i in range(n_resblocks):
        ks = jax.random.split(jax.random.fold_in(key, i), 8)
        blocks.append(dict(
            w_a=jax.random.normal(ks[0], (n_feat, n_feat, 3, 3), jnp.float32) * scale3,
            b_a=jax.random.normal(ks[1], (n_feat,), jnp.float32) * 0.01,
            w_b=jax.random.normal(ks[2], (n_feat, n_feat, 3, 3), jnp.float32) * scale3,
            b_b=jax.random.normal(ks[3], (n_feat,), jnp.float32) * 0.01,
            ca_w1=jax.random.normal(ks[4], (c_red, n_feat), jnp.float32) * (2.0 / n_feat) ** 0.5,
            ca_b1=jax.random.normal(ks[5], (c_red,), jnp.float32) * 0.01,
            ca_w2=jax.random.normal(ks[6], (n_feat, c_red), jnp.float32) * (2.0 / c_red) ** 0.5,
            ca_b2=jax.random.normal(ks[7], (n_feat,), jnp.float32) * 0.01,
        ))
    kt1, kt2 = jax.random.split(jax.random.fold_in(key, 10 ** 6))
    return dict(
        blocks=blocks,
        w_tail=jax.random.normal(kt1, (n_feat, n_feat, 3, 3), jnp.float32) * scale3,
        b_tail=jax.random.normal(kt2, (n_feat,), jnp.float32) * 0.01,
    )


# ----------------------------------------------------------------------------
# Pure-JAX f32 NCHW reference (correctness check for the Pallas kernel).
# ----------------------------------------------------------------------------
def _conv_ref(x, w, b):
    out = jax.lax.conv_general_dilated(
        x, w, window_strides=(1, 1), padding="SAME",
        dimension_numbers=("NCHW", "OIHW", "NCHW"))
    return out + b.reshape(1, -1, 1, 1)


def residual_group_ref(x, params, *, res_scale):
    res = x
    for blk in params["blocks"]:
        h = jax.nn.relu(_conv_ref(res, blk["w_a"], blk["b_a"]))
        h = _conv_ref(h, blk["w_b"], blk["b_b"])
        pooled = jnp.mean(h, axis=(2, 3))                             # (N, C)
        z = jax.nn.relu(pooled @ blk["ca_w1"].T + blk["ca_b1"])       # (N, Cr)
        y = jax.nn.sigmoid(z @ blk["ca_w2"].T + blk["ca_b2"])         # (N, C)
        res = h * y[:, :, None, None] * res_scale + res
    res = _conv_ref(res, params["w_tail"], params["b_tail"])
    return res + x


if __name__ == "__main__":
    # Small, module-consistent shapes: NCHW x = (2, 32, 16, 16),
    # reduction=16 (-> 2 reduced channels), n_resblocks=2, res_scale=1.0.
    N, H, W = 2, 16, 16
    n_feat, reduction, n_resblocks = 32, 16, 2
    res_scale = 1.0

    key = jax.random.PRNGKey(0)
    kx, kp = jax.random.split(key)
    x = jax.random.normal(kx, (N, n_feat, H, W), jnp.float32)
    params = make_params(kp, n_feat, reduction, n_resblocks)

    out = jax.block_until_ready(
        residual_group_forward(x, params, res_scale=res_scale))
    ref = jax.block_until_ready(
        residual_group_ref(x, params, res_scale=res_scale))

    assert out.shape == ref.shape == (N, n_feat, H, W)
    # bf16 MXU conv operands (f32 accumulation) vs an all-f32 reference ->
    # relaxed tolerance relative to the output magnitude.
    max_err = float(jnp.max(jnp.abs(out - ref)))
    ref_scale = float(jnp.max(jnp.abs(ref))) + 1e-6
    assert max_err < 3e-2 * ref_scale + 1e-3, (
        f"Pallas output mismatch vs reference: {max_err} (scale {ref_scale})")

    print("KERNEL_OK")
</pallas_src>

<mosaic_0001>
module attributes {stable_mosaic.version = 11 : i64} {
  func.func @_residual_group_kernel(%arg0: i32, %arg1: memref<1x32x256xf32, #tpu.memory_space<vmem>>, %arg2: memref<45x32x32xbf16, #tpu.memory_space<vmem>>, %arg3: memref<5x32x1xf32, #tpu.memory_space<vmem>>, %arg4: memref<2x2x32xf32, #tpu.memory_space<vmem>>, %arg5: memref<2x2x1xf32, #tpu.memory_space<vmem>>, %arg6: memref<2x32x2xf32, #tpu.memory_space<vmem>>, %arg7: memref<2x32x1xf32, #tpu.memory_space<vmem>>, %arg8: memref<2x1x256xbf16, #tpu.memory_space<vmem>>, %arg9: memref<1x32x256xf32, #tpu.memory_space<vmem>>, %arg10: memref<32x512xbf16, #tpu.memory_space<vmem>>) attributes {dimension_semantics = [#tpu.dimension_semantics<parallel>], iteration_bounds = array<i64: 2>, scalar_prefetch = 0 : i64, scratch_operands = 1 : i64, tpu.core_type = #tpu.core_type<tc>, window_params = [{transform_indices = @transform_0, window_bounds = array<i64: 1, 32, 256>}, {pipeline_mode = #tpu.pipeline_mode<synchronous>, transform_indices = @transform_1, window_bounds = array<i64: 45, 32, 32>}, {pipeline_mode = #tpu.pipeline_mode<synchronous>, transform_indices = @transform_2, window_bounds = array<i64: 5, 32, 1>}, {pipeline_mode = #tpu.pipeline_mode<synchronous>, transform_indices = @transform_3, window_bounds = array<i64: 2, 2, 32>}, {pipeline_mode = #tpu.pipeline_mode<synchronous>, transform_indices = @transform_4, window_bounds = array<i64: 2, 2, 1>}, {pipeline_mode = #tpu.pipeline_mode<synchronous>, transform_indices = @transform_5, window_bounds = array<i64: 2, 32, 2>}, {pipeline_mode = #tpu.pipeline_mode<synchronous>, transform_indices = @transform_6, window_bounds = array<i64: 2, 32, 1>}, {pipeline_mode = #tpu.pipeline_mode<synchronous>, transform_indices = @transform_7, window_bounds = array<i64: 2, 1, 256>}, {transform_indices = @transform_8, window_bounds = array<i64: 1, 32, 256>}]} {
    %cst = arith.constant 0.000000e+00 : bf16
    %0 = vector.broadcast %cst : bf16 to vector<32x128xbf16>
    %c0 = arith.constant 0 : index
    %c0_0 = arith.constant 0 : index
    %1 = vector.load %arg10[%c0, %c0_0] : memref<32x512xbf16, #tpu.memory_space<vmem>>, vector<32x128xbf16>
    tpu.vector_store %arg10[%c0, %c0_0], %0 {strides = array<i32>} : memref<32x512xbf16, #tpu.memory_space<vmem>>, vector<32x128xbf16>,
    %cst_1 = arith.constant 0.000000e+00 : bf16
    %2 = vector.broadcast %cst_1 : bf16 to vector<32x128xbf16>
    %c0_2 = arith.constant 0 : index
    %c384 = arith.constant 384 : index
    %3 = vector.load %arg10[%c0_2, %c384] : memref<32x512xbf16, #tpu.memory_space<vmem>>, vector<32x128xbf16>
    tpu.vector_store %arg10[%c0_2, %c384], %2 {strides = array<i32>} : memref<32x512xbf16, #tpu.memory_space<vmem>>, vector<32x128xbf16>,
    %c0_3 = arith.constant 0 : index
    %c0_4 = arith.constant 0 : index
    %c0_5 = arith.constant 0 : index
    %4 = vector.load %arg1[%c0_3, %c0_4, %c0_5] : memref<1x32x256xf32, #tpu.memory_space<vmem>>, vector<1x32x256xf32>
    %5 = vector.shape_cast %4 : vector<1x32x256xf32> to vector<32x256xf32>
    %c0_i32 = arith.constant 0 : i32
    %c2_i32 = arith.constant 2 : i32
    %6 = arith.addi %c0_i32, %c2_i32 : i32
    %c1_i32 = arith.constant 1 : i32
    %7 = scf.for %arg11 = %c0_i32 to %6 step %c1_i32 iter_args(%arg12 = %5) -> (vector<32x256xf32>)  : i32 {
      %c2_i32_71 = arith.constant 2 : i32
      %90 = arith.muli %c2_i32_71, %arg11 : i32
      %91 = arith.truncf %arg12 : vector<32x256xf32> to vector<32x256xbf16>
      %c0_72 = arith.constant 0 : index
      %c128_73 = arith.constant 128 : index
      %92 = vector.load %arg10[%c0_72, %c128_73] : memref<32x512xbf16, #tpu.memory_space<vmem>>, vector<32x256xbf16>
      tpu.vector_store %arg10[%c0_72, %c128_73], %91 {strides = array<i32>} : memref<32x512xbf16, #tpu.memory_space<vmem>>, vector<32x256xbf16>,
      %cst_74 = arith.constant 0.000000e+00 : f32
      %93 = vector.broadcast %cst_74 : f32 to vector<32x256xf32>
      %c0_75 = arith.constant 0 : index
      %c111_76 = arith.constant 111 : index
      %94 = vector.load %arg10[%c0_75, %c111_76] : memref<32x512xbf16, #tpu.memory_space<vmem>>, vector<32x256xbf16>
      %c0_77 = arith.constant 0 : index
      %c0_78 = arith.constant 0 : index
      %c0_79 = arith.constant 0 : index
      %95 = vector.load %arg8[%c0_77, %c0_78, %c0_79] : memref<2x1x256xbf16, #tpu.memory_space<vmem>>, vector<1x1x256xbf16>
      %96 = vector.shape_cast %95 : vector<1x1x256xbf16> to vector<1x256xbf16>
      %97 = vector.broadcast %96 : vector<1x256xbf16> to vector<32x256xbf16>
      %98 = arith.mulf %94, %97 : vector<32x256xbf16>
      %c9_i32 = arith.constant 9 : i32
      %99 = arith.muli %90, %c9_i32 : i32
      %c0_i32_80 = arith.constant 0 : i32
      %100 = arith.addi %99, %c0_i32_80 : i32
      %101 = arith.index_cast %100 : i32 to index
      %c0_81 = arith.constant 0 : index
      %c0_82 = arith.constant 0 : index
      %102 = vector.load %arg2[%101, %c0_81, %c0_82] : memref<45x32x32xbf16, #tpu.memory_space<vmem>>, vector<1x32x32xbf16>
      %103 = vector.shape_cast %102 : vector<1x32x32xbf16> to vector<32x32xbf16>
      %cst_83 = arith.constant dense<0.000000e+00> : vector<32x256xf32>
      %104 = tpu.matmul %103, %98, %cst_83 {dimension_numbers = #tpu.dot_dimension_numbers<[1], [0], [0], [1], [0, 0, 1, 1], [], []>} : vector<32x32xbf16>, vector<32x256xbf16>, vector<32x256xf32> -> vector<32x256xf32>
      %105 = arith.addf %93, %104 : vector<32x256xf32>
      %c0_84 = arith.constant 0 : index
      %c112_85 = arith.constant 112 : index
      %106 = vector.load %arg10[%c0_84, %c112_85] : memref<32x512xbf16, #tpu.memory_space<vmem>>, vector<32x256xbf16>
      %c9_i32_86 = arith.constant 9 : i32
      %107 = arith.muli %90, %c9_i32_86 : i32
      %c1_i32_87 = arith.constant 1 : i32
      %108 = arith.addi %107, %c1_i32_87 : i32
      %109 = arith.index_cast %108 : i32 to index
      %c0_88 = arith.constant 0 : index
      %c0_89 = arith.constant 0 : index
      %110 = vector.load %arg2[%109, %c0_88, %c0_89] : memref<45x32x32xbf16, #tpu.memory_space<vmem>>, vector<1x32x32xbf16>
      %111 = vector.shape_cast %110 : vector<1x32x32xbf16> to vector<32x32xbf16>
      %cst_90 = arith.constant dense<0.000000e+00> : vector<32x256xf32>
      %112 = tpu.matmul %111, %106, %cst_90 {dimension_numbers = #tpu.dot_dimension_numbers<[1], [0], [0], [1], [0, 0, 1, 1], [], []>} : vector<32x32xbf16>, vector<32x256xbf16>, vector<32x256xf32> -> vector<32x256xf32>
      %113 = arith.addf %105, %112 : vector<32x256xf32>
      %c0_91 = arith.constant 0 : index
      %c113_92 = arith.constant 113 : index
      %114 = vector.load %arg10[%c0_91, %c113_92] : memref<32x512xbf16, #tpu.memory_space<vmem>>, vector<32x256xbf16>
      %c1_93 = arith.constant 1 : index
      %c0_94 = arith.constant 0 : index
      %c0_95 = arith.constant 0 : index
      %115 = vector.load %arg8[%c1_93, %c0_94, %c0_95] : memref<2x1x256xbf16, #tpu.memory_space<vmem>>, vector<1x1x256xbf16>
      %116 = vector.shape_cast %115 : vector<1x1x256xbf16> to vector<1x256xbf16>
      %117 = vector.broadcast %116 : vector<1x256xbf16> to vector<32x256xbf16>
      %118 = arith.mulf %114, %117 : vector<32x256xbf16>
      %c9_i32_96 = arith.constant 9 : i32
      %119 = arith.muli %90, %c9_i32_96 : i32
      %c2_i32_97 = arith.constant 2 : i32
      %120 = arith.addi %119, %c2_i32_97 : i32
      %121 = arith.index_cast %120 : i32 to index
      %c0_98 = arith.constant 0 : index
      %c0_99 = arith.constant 0 : index
      %122 = vector.load %arg2[%121, %c0_98, %c0_99] : memref<45x32x32xbf16, #tpu.memory_space<vmem>>, vector<1x32x32xbf16>
      %123 = vector.shape_cast %122 : vector<1x32x32xbf16> to vector<32x32xbf16>
      %cst_100 = arith.constant dense<0.000000e+00> : vector<32x256xf32>
      %124 = tpu.matmul %123, %118, %cst_100 {dimension_numbers = #tpu.dot_dimension_numbers<[1], [0], [0], [1], [0, 0, 1, 1], [], []>} : vector<32x32xbf16>, vector<32x256xbf16>, vector<32x256xf32> -> vector<32x256xf32>
      %125 = arith.addf %113, %124 : vector<32x256xf32>
      %c0_101 = arith.constant 0 : index
      %c127_102 = arith.constant 127 : index
      %126 = vector.load %arg10[%c0_101, %c127_102] : memref<32x512xbf16, #tpu.memory_space<vmem>>, vector<32x256xbf16>
      %c0_103 = arith.constant 0 : index
      %c0_104 = arith.constant 0 : index
      %c0_105 = arith.constant 0 : index
      %127 = vector.load %arg8[%c0_103, %c0_104, %c0_105] : memref<2x1x256xbf16, #tpu.memory_space<vmem>>, vector<1x1x256xbf16>
      %128 = vector.shape_cast %127 : vector<1x1x256xbf16> to vector<1x256xbf16>
      %129 = vector.broadcast %128 : vector<1x256xbf16> to vector<32x256xbf16>
      %130 = arith.mulf %126, %129 : vector<32x256xbf16>
      %c9_i32_106 = arith.constant 9 : i32
      %131 = arith.muli %90, %c9_i32_106 : i32
      %c3_i32 = arith.constant 3 : i32
      %132 = arith.addi %131, %c3_i32 : i32
      %133 = arith.index_cast %132 : i32 to index
      %c0_107 = arith.constant 0 : index
      %c0_108 = arith.constant 0 : index
      %134 = vector.load %arg2[%133, %c0_107, %c0_108] : memref<45x32x32xbf16, #tpu.memory_space<vmem>>, vector<1x32x32xbf16>
      %135 = vector.shape_cast %134 : vector<1x32x32xbf16> to vector<32x32xbf16>
      %cst_109 = arith.constant dense<0.000000e+00> : vector<32x256xf32>
      %136 = tpu.matmul %135, %130, %cst_109 {dimension_numbers = #tpu.dot_dimension_numbers<[1], [0], [0], [1], [0, 0, 1, 1], [], []>} : vector<32x32xbf16>, vector<32x256xbf16>, vector<32x256xf32> -> vector<32x256xf32>
      %137 = arith.addf %125, %136 : vector<32x256xf32>
      %c0_110 = arith.constant 0 : index
      %c128_111 = arith.constant 128 : index
      %138 = vector.load %arg10[%c0_110, %c128_111] : memref<32x512xbf16, #tpu.memory_space<vmem>>, vector<32x256xbf16>
      %c9_i32_112 = arith.constant 9 : i32
      %139 = arith.muli %90, %c9_i32_112 : i32
      %c4_i32 = arith.constant 4 : i32
      %140 = arith.addi %139, %c4_i32 : i32
      %141 = arith.index_cast %140 : i32 to index
      %c0_113 = arith.constant 0 : index
      %c0_114 = arith.constant 0 : index
      %142 = vector.load %arg2[%141, %c0_113, %c0_114] : memref<45x32x32xbf16, #tpu.memory_space<vmem>>, vector<1x32x32xbf16>
      %143 = vector.shape_cast %142 : vector<1x32x32xbf16> to vector<32x32xbf16>
      %cst_115 = arith.constant dense<0.000000e+00> : vector<32x256xf32>
      %144 = tpu.matmul %143, %138, %cst_115 {dimension_numbers = #tpu.dot_dimension_numbers<[1], [0], [0], [1], [0, 0, 1, 1], [], []>} : vector<32x32xbf16>, vector<32x256xbf16>, vector<32x256xf32> -> vector<32x256xf32>
      %145 = arith.addf %137, %144 : vector<32x256xf32>
      %c0_116 = arith.constant 0 : index
      %c129_117 = arith.constant 129 : index
      %146 = vector.load %arg10[%c0_116, %c129_117] : memref<32x512xbf16, #tpu.memory_space<vmem>>, vector<32x256xbf16>
      %c1_118 = arith.constant 1 : index
      %c0_119 = arith.constant 0 : index
      %c0_120 = arith.constant 0 : index
      %147 = vector.load %arg8[%c1_118, %c0_119, %c0_120] : memref<2x1x256xbf16, #tpu.memory_space<vmem>>, vector<1x1x256xbf16>
      %148 = vector.shape_cast %147 : vector<1x1x256xbf16> to vector<1x256xbf16>
      %149 = vector.broadcast %148 : vector<1x256xbf16> to vector<32x256xbf16>
      %150 = arith.mulf %146, %149 : vector<32x256xbf16>
      %c9_i32_121 = arith.constant 9 : i32
      %151 = arith.muli %90, %c9_i32_121 : i32
      %c5_i32 = arith.constant 5 : i32
      %152 = arith.addi %151, %c5_i32 : i32
      %153 = arith.index_cast %152 : i32 to index
      %c0_122 = arith.constant 0 : index
      %c0_123 = arith.constant 0 : index
      %154 = vector.load %arg2[%153, %c0_122, %c0_123] : memref<45x32x32xbf16, #tpu.memory_space<vmem>>, vector<1x32x32xbf16>
      %155 = vector.shape_cast %154 : vector<1x32x32xbf16> to vector<32x32xbf16>
      %cst_124 = arith.constant dense<0.000000e+00> : vector<32x256xf32>
      %156 = tpu.matmul %155, %150, %cst_124 {dimension_numbers = #tpu.dot_dimension_numbers<[1], [0], [0], [1], [0, 0, 1, 1], [], []>} : vector<32x32xbf16>, vector<32x256xbf16>, vector<32x256xf32> -> vector<32x256xf32>
      %157 = arith.addf %145, %156 : vector<32x256xf32>
      %c0_125 = arith.constant 0 : index
      %c143_126 = arith.constant 143 : index
      %158 = vector.load %arg10[%c0_125, %c143_126] : memref<32x512xbf16, #tpu.memory_space<vmem>>, vector<32x256xbf16>
      %c0_127 = arith.constant 0 : index
      %c0_128 = arith.constant 0 : index
      %c0_129 = arith.constant 0 : index
      %159 = vector.load %arg8[%c0_127, %c0_128, %c0_129] : memref<2x1x256xbf16, #tpu.memory_space<vmem>>, vector<1x1x256xbf16>
      %160 = vector.shape_cast %159 : vector<1x1x256xbf16> to vector<1x256xbf16>
      %161 = vector.broadcast %160 : vector<1x256xbf16> to vector<32x256xbf16>
      %162 = arith.mulf %158, %161 : vector<32x256xbf16>
      %c9_i32_130 = arith.constant 9 : i32
      %163 = arith.muli %90, %c9_i32_130 : i32
      %c6_i32 = arith.constant 6 : i32
      %164 = arith.addi %163, %c6_i32 : i32
      %165 = arith.index_cast %164 : i32 to index
      %c0_131 = arith.constant 0 : index
      %c0_132 = arith.constant 0 : index
      %166 = vector.load %arg2[%165, %c0_131, %c0_132] : memref<45x32x32xbf16, #tpu.memory_space<vmem>>, vector<1x32x32xbf16>
      %167 = vector.shape_cast %166 : vector<1x32x32xbf16> to vector<32x32xbf16>
      %cst_133 = arith.constant dense<0.000000e+00> : vector<32x256xf32>
      %168 = tpu.matmul %167, %162, %cst_133 {dimension_numbers = #tpu.dot_dimension_numbers<[1], [0], [0], [1], [0, 0, 1, 1], [], []>} : vector<32x32xbf16>, vector<32x256xbf16>, vector<32x256xf32> -> vector<32x256xf32>
      %169 = arith.addf %157, %168 : vector<32x256xf32>
      %c0_134 = arith.constant 0 : index
      %c144_135 = arith.constant 144 : index
      %170 = vector.load %arg10[%c0_134, %c144_135] : memref<32x512xbf16, #tpu.memory_space<vmem>>, vector<32x256xbf16>
      %c9_i32_136 = arith.constant 9 : i32
      %171 = arith.muli %90, %c9_i32_136 : i32
      %c7_i32 = arith.constant 7 : i32
      %172 = arith.addi %171, %c7_i32 : i32
      %173 = arith.index_cast %172 : i32 to index
      %c0_137 = arith.constant 0 : index
      %c0_138 = arith.constant 0 : index
      %174 = vector.load %arg2[%173, %c0_137, %c0_138] : memref<45x32x32xbf16, #tpu.memory_space<vmem>>, vector<1x32x32xbf16>
      %175 = vector.shape_cast %174 : vector<1x32x32xbf16> to vector<32x32xbf16>
      %cst_139 = arith.constant dense<0.000000e+00> : vector<32x256xf32>
      %176 = tpu.matmul %175, %170, %cst_139 {dimension_numbers = #tpu.dot_dimension_numbers<[1], [0], [0], [1], [0, 0, 1, 1], [], []>} : vector<32x32xbf16>, vector<32x256xbf16>, vector<32x256xf32> -> vector<32x256xf32>
      %177 = arith.addf %169, %176 : vector<32x256xf32>
      %c0_140 = arith.constant 0 : index
      %c145_141 = arith.constant 145 : index
      %178 = vector.load %arg10[%c0_140, %c145_141] : memref<32x512xbf16, #tpu.memory_space<vmem>>, vector<32x256xbf16>
      %c1_142 = arith.constant 1 : index
      %c0_143 = arith.constant 0 : index
      %c0_144 = arith.constant 0 : index
      %179 = vector.load %arg8[%c1_142, %c0_143, %c0_144] : memref<2x1x256xbf16, #tpu.memory_space<vmem>>, vector<1x1x256xbf16>
      %180 = vector.shape_cast %179 : vector<1x1x256xbf16> to vector<1x256xbf16>
      %181 = vector.broadcast %180 : vector<1x256xbf16> to vector<32x256xbf16>
      %182 = arith.mulf %178, %181 : vector<32x256xbf16>
      %c9_i32_145 = arith.constant 9 : i32
      %183 = arith.muli %90, %c9_i32_145 : i32
      %c8_i32 = arith.constant 8 : i32
      %184 = arith.addi %183, %c8_i32 : i32
      %185 = arith.index_cast %184 : i32 to index
      %c0_146 = arith.constant 0 : index
      %c0_147 = arith.constant 0 : index
      %186 = vector.load %arg2[%185, %c0_146, %c0_147] : memref<45x32x32xbf16, #tpu.memory_space<vmem>>, vector<1x32x32xbf16>
      %187 = vector.shape_cast %186 : vector<1x32x32xbf16> to vector<32x32xbf16>
      %cst_148 = arith.constant dense<0.000000e+00> : vector<32x256xf32>
      %188 = tpu.matmul %187, %182, %cst_148 {dimension_numbers = #tpu.dot_dimension_numbers<[1], [0], [0], [1], [0, 0, 1, 1], [], []>} : vector<32x32xbf16>, vector<32x256xbf16>, vector<32x256xf32> -> vector<32x256xf32>
      %189 = arith.addf %177, %188 : vector<32x256xf32>
      %190 = arith.index_cast %90 : i32 to index
      %c0_149 = arith.constant 0 : index
      %c0_150 = arith.constant 0 : index
      %191 = vector.load %arg3[%190, %c0_149, %c0_150] : memref<5x32x1xf32, #tpu.memory_space<vmem>>, vector<1x32x1xf32>
      %192 = vector.shape_cast %191 : vector<1x32x1xf32> to vector<32x1xf32>
      %193 = vector.broadcast %192 : vector<32x1xf32> to vector<32x256xf32>
      %194 = arith.addf %189, %193 : vector<32x256xf32>
      %cst_151 = arith.constant 0.000000e+00 : f32
      %195 = vector.broadcast %cst_151 : f32 to vector<32x256xf32>
      %196 = arith.maximumf %194, %195 : vector<32x256xf32>
      %c2_i32_152 = arith.constant 2 : i32
      %197 = arith.muli %c2_i32_152, %arg11 : i32
      %c1_i32_153 = arith.constant 1 : i32
      %198 = arith.addi %197, %c1_i32_153 : i32
      %199 = arith.truncf %196 : vector<32x256xf32> to vector<32x256xbf16>
      %c0_154 = arith.constant 0 : index
      %c128_155 = arith.constant 128 : index
      %200 = vector.load %arg10[%c0_154, %c128_155] : memref<32x512xbf16, #tpu.memory_space<vmem>>, vector<32x256xbf16>
      tpu.vector_store %arg10[%c0_154, %c128_155], %199 {strides = array<i32>} : memref<32x512xbf16, #tpu.memory_space<vmem>>, vector<32x256xbf16>,
      %cst_156 = arith.constant 0.000000e+00 : f32
      %201 = vector.broadcast %cst_156 : f32 to vector<32x256xf32>
      %c0_157 = arith.constant 0 : index
      %c111_158 = arith.constant 111 : index
      %202 = vector.load %arg10[%c0_157, %c111_158] : memref<32x512xbf16, #tpu.memory_space<vmem>>, vector<32x256xbf16>
      %c0_159 = arith.constant 0 : index
      %c0_160 = arith.constant 0 : index
      %c0_161 = arith.constant 0 : index
      %203 = vector.load %arg8[%c0_159, %c0_160, %c0_161] : memref<2x1x256xbf16, #tpu.memory_space<vmem>>, vector<1x1x256xbf16>
      %204 = vector.shape_cast %203 : vector<1x1x256xbf16> to vector<1x256xbf16>
      %205 = vector.broadcast %204 : vector<1x256xbf16> to vector<32x256xbf16>
      %206 = arith.mulf %202, %205 : vector<32x256xbf16>
      %c9_i32_162 = arith.constant 9 : i32
      %207 = arith.muli %198, %c9_i32_162 : i32
      %c0_i32_163 = arith.constant 0 : i32
      %208 = arith.addi %207, %c0_i32_163 : i32
      %209 = arith.index_cast %208 : i32 to index
      %c0_164 = arith.constant 0 : index
      %c0_165 = arith.constant 0 : index
      %210 = vector.load %arg2[%209, %c0_164, %c0_165] : memref<45x32x32xbf16, #tpu.memory_space<vmem>>, vector<1x32x32xbf16>
      %211 = vector.shape_cast %210 : vector<1x32x32xbf16> to vector<32x32xbf16>
      %cst_166 = arith.constant dense<0.000000e+00> : vector<32x256xf32>
      %212 = tpu.matmul %211, %206, %cst_166 {dimension_numbers = #tpu.dot_dimension_numbers<[1], [0], [0], [1], [0, 0, 1, 1], [], []>} : vector<32x32xbf16>, vector<32x256xbf16>, vector<32x256xf32> -> vector<32x256xf32>
      %213 = arith.addf %201, %212 : vector<32x256xf32>
      %c0_167 = arith.constant 0 : index
      %c112_168 = arith.constant 112 : index
      %214 = vector.load %arg10[%c0_167, %c112_168] : memref<32x512xbf16, #tpu.memory_space<vmem>>, vector<32x256xbf16>
      %c9_i32_169 = arith.constant 9 : i32
      %215 = arith.muli %198, %c9_i32_169 : i32
      %c1_i32_170 = arith.constant 1 : i32
      %216 = arith.addi %215, %c1_i32_170 : i32
      %217 = arith.index_cast %216 : i32 to index
      %c0_171 = arith.constant 0 : index
      %c0_172 = arith.constant 0 : index
      %218 = vector.load %arg2[%217, %c0_171, %c0_172] : memref<45x32x32xbf16, #tpu.memory_space<vmem>>, vector<1x32x32xbf16>
      %219 = vector.shape_cast %218 : vector<1x32x32xbf16> to vector<32x32xbf16>
      %cst_173 = arith.constant dense<0.000000e+00> : vector<32x256xf32>
      %220 = tpu.matmul %219, %214, %cst_173 {dimension_numbers = #tpu.dot_dimension_numbers<[1], [0], [0], [1], [0, 0, 1, 1], [], []>} : vector<32x32xbf16>, vector<32x256xbf16>, vector<32x256xf32> -> vector<32x256xf32>
      %221 = arith.addf %213, %220 : vector<32x256xf32>
      %c0_174 = arith.constant 0 : index
      %c113_175 = arith.constant 113 : index
      %222 = vector.load %arg10[%c0_174, %c113_175] : memref<32x512xbf16, #tpu.memory_space<vmem>>, vector<32x256xbf16>
      %c1_176 = arith.constant 1 : index
      %c0_177 = arith.constant 0 : index
      %c0_178 = arith.constant 0 : index
      %223 = vector.load %arg8[%c1_176, %c0_177, %c0_178] : memref<2x1x256xbf16, #tpu.memory_space<vmem>>, vector<1x1x256xbf16>
      %224 = vector.shape_cast %223 : vector<1x1x256xbf16> to vector<1x256xbf16>
      %225 = vector.broadcast %224 : vector<1x256xbf16> to vector<32x256xbf16>
      %226 = arith.mulf %222, %225 : vector<32x256xbf16>
      %c9_i32_179 = arith.constant 9 : i32
      %227 = arith.muli %198, %c9_i32_179 : i32
      %c2_i32_180 = arith.constant 2 : i32
      %228 = arith.addi %227, %c2_i32_180 : i32
      %229 = arith.index_cast %228 : i32 to index
      %c0_181 = arith.constant 0 : index
      %c0_182 = arith.constant 0 : index
      %230 = vector.load %arg2[%229, %c0_181, %c0_182] : memref<45x32x32xbf16, #tpu.memory_space<vmem>>, vector<1x32x32xbf16>
      %231 = vector.shape_cast %230 : vector<1x32x32xbf16> to vector<32x32xbf16>
      %cst_183 = arith.constant dense<0.000000e+00> : vector<32x256xf32>
      %232 = tpu.matmul %231, %226, %cst_183 {dimension_numbers = #tpu.dot_dimension_numbers<[1], [0], [0], [1], [0, 0, 1, 1], [], []>} : vector<32x32xbf16>, vector<32x256xbf16>, vector<32x256xf32> -> vector<32x256xf32>
      %233 = arith.addf %221, %232 : vector<32x256xf32>
      %c0_184 = arith.constant 0 : index
      %c127_185 = arith.constant 127 : index
      %234 = vector.load %arg10[%c0_184, %c127_185] : memref<32x512xbf16, #tpu.memory_space<vmem>>, vector<32x256xbf16>
      %c0_186 = arith.constant 0 : index
      %c0_187 = arith.constant 0 : index
      %c0_188 = arith.constant 0 : index
      %235 = vector.load %arg8[%c0_186, %c0_187, %c0_188] : memref<2x1x256xbf16, #tpu.memory_space<vmem>>, vector<1x1x256xbf16>
      %236 = vector.shape_cast %235 : vector<1x1x256xbf16> to vector<1x256xbf16>
      %237 = vector.broadcast %236 : vector<1x256xbf16> to vector<32x256xbf16>
      %238 = arith.mulf %234, %237 : vector<32x256xbf16>
      %c9_i32_189 = arith.constant 9 : i32
      %239 = arith.muli %198, %c9_i32_189 : i32
      %c3_i32_190 = arith.constant 3 : i32
      %240 = arith.addi %239, %c3_i32_190 : i32
      %241 = arith.index_cast %240 : i32 to index
      %c0_191 = arith.constant 0 : index
      %c0_192 = arith.constant 0 : index
      %242 = vector.load %arg2[%241, %c0_191, %c0_192] : memref<45x32x32xbf16, #tpu.memory_space<vmem>>, vector<1x32x32xbf16>
      %243 = vector.shape_cast %242 : vector<1x32x32xbf16> to vector<32x32xbf16>
      %cst_193 = arith.constant dense<0.000000e+00> : vector<32x256xf32>
      %244 = tpu.matmul %243, %238, %cst_193 {dimension_numbers = #tpu.dot_dimension_numbers<[1], [0], [0], [1], [0, 0, 1, 1], [], []>} : vector<32x32xbf16>, vector<32x256xbf16>, vector<32x256xf32> -> vector<32x256xf32>
      %245 = arith.addf %233, %244 : vector<32x256xf32>
      %c0_194 = arith.constant 0 : index
      %c128_195 = arith.constant 128 : index
      %246 = vector.load %arg10[%c0_194, %c128_195] : memref<32x512xbf16, #tpu.memory_space<vmem>>, vector<32x256xbf16>
      %c9_i32_196 = arith.constant 9 : i32
      %247 = arith.muli %198, %c9_i32_196 : i32
      %c4_i32_197 = arith.constant 4 : i32
      %248 = arith.addi %247, %c4_i32_197 : i32
      %249 = arith.index_cast %248 : i32 to index
      %c0_198 = arith.constant 0 : index
      %c0_199 = arith.constant 0 : index
      %250 = vector.load %arg2[%249, %c0_198, %c0_199] : memref<45x32x32xbf16, #tpu.memory_space<vmem>>, vector<1x32x32xbf16>
      %251 = vector.shape_cast %250 : vector<1x32x32xbf16> to vector<32x32xbf16>
      %cst_200 = arith.constant dense<0.000000e+00> : vector<32x256xf32>
      %252 = tpu.matmul %251, %246, %cst_200 {dimension_numbers = #tpu.dot_dimension_numbers<[1], [0], [0], [1], [0, 0, 1, 1], [], []>} : vector<32x32xbf16>, vector<32x256xbf16>, vector<32x256xf32> -> vector<32x256xf32>
      %253 = arith.addf %245, %252 : vector<32x256xf32>
      %c0_201 = arith.constant 0 : index
      %c129_202 = arith.constant 129 : index
      %254 = vector.load %arg10[%c0_201, %c129_202] : memref<32x512xbf16, #tpu.memory_space<vmem>>, vector<32x256xbf16>
      %c1_203 = arith.constant 1 : index
      %c0_204 = arith.constant 0 : index
      %c0_205 = arith.constant 0 : index
      %255 = vector.load %arg8[%c1_203, %c0_204, %c0_205] : memref<2x1x256xbf16, #tpu.memory_space<vmem>>, vector<1x1x256xbf16>
      %256 = vector.shape_cast %255 : vector<1x1x256xbf16> to vector<1x256xbf16>
      %257 = vector.broadcast %256 : vector<1x256xbf16> to vector<32x256xbf16>
      %258 = arith.mulf %254, %257 : vector<32x256xbf16>
      %c9_i32_206 = arith.constant 9 : i32
      %259 = arith.muli %198, %c9_i32_206 : i32
      %c5_i32_207 = arith.constant 5 : i32
      %260 = arith.addi %259, %c5_i32_207 : i32
      %261 = arith.index_cast %260 : i32 to index
      %c0_208 = arith.constant 0 : index
      %c0_209 = arith.constant 0 : index
      %262 = vector.load %arg2[%261, %c0_208, %c0_209] : memref<45x32x32xbf16, #tpu.memory_space<vmem>>, vector<1x32x32xbf16>
      %263 = vector.shape_cast %262 : vector<1x32x32xbf16> to vector<32x32xbf16>
      %cst_210 = arith.constant dense<0.000000e+00> : vector<32x256xf32>
      %264 = tpu.matmul %263, %258, %cst_210 {dimension_numbers = #tpu.dot_dimension_numbers<[1], [0], [0], [1], [0, 0, 1, 1], [], []>} : vector<32x32xbf16>, vector<32x256xbf16>, vector<32x256xf32> -> vector<32x256xf32>
      %265 = arith.addf %253, %264 : vector<32x256xf32>
      %c0_211 = arith.constant 0 : index
      %c143_212 = arith.constant 143 : index
      %266 = vector.load %arg10[%c0_211, %c143_212] : memref<32x512xbf16, #tpu.memory_space<vmem>>, vector<32x256xbf16>
      %c0_213 = arith.constant 0 : index
      %c0_214 = arith.constant 0 : index
      %c0_215 = arith.constant 0 : index
      %267 = vector.load %arg8[%c0_213, %c0_214, %c0_215] : memref<2x1x256xbf16, #tpu.memory_space<vmem>>, vector<1x1x256xbf16>
      %268 = vector.shape_cast %267 : vector<1x1x256xbf16> to vector<1x256xbf16>
      %269 = vector.broadcast %268 : vector<1x256xbf16> to vector<32x256xbf16>
      %270 = arith.mulf %266, %269 : vector<32x256xbf16>
      %c9_i32_216 = arith.constant 9 : i32
      %271 = arith.muli %198, %c9_i32_216 : i32
      %c6_i32_217 = arith.constant 6 : i32
      %272 = arith.addi %271, %c6_i32_217 : i32
      %273 = arith.index_cast %272 : i32 to index
      %c0_218 = arith.constant 0 : index
      %c0_219 = arith.constant 0 : index
      %274 = vector.load %arg2[%273, %c0_218, %c0_219] : memref<45x32x32xbf16, #tpu.memory_space<vmem>>, vector<1x32x32xbf16>
      %275 = vector.shape_cast %274 : vector<1x32x32xbf16> to vector<32x32xbf16>
      %cst_220 = arith.constant dense<0.000000e+00> : vector<32x256xf32>
      %276 = tpu.matmul %275, %270, %cst_220 {dimension_numbers = #tpu.dot_dimension_numbers<[1], [0], [0], [1], [0, 0, 1, 1], [], []>} : vector<32x32xbf16>, vector<32x256xbf16>, vector<32x256xf32> -> vector<32x256xf32>
      %277 = arith.addf %265, %276 : vector<32x256xf32>
      %c0_221 = arith.constant 0 : index
      %c144_222 = arith.constant 144 : index
      %278 = vector.load %arg10[%c0_221, %c144_222] : memref<32x512xbf16, #tpu.memory_space<vmem>>, vector<32x256xbf16>
      %c9_i32_223 = arith.constant 9 : i32
      %279 = arith.muli %198, %c9_i32_223 : i32
      %c7_i32_224 = arith.constant 7 : i32
      %280 = arith.addi %279, %c7_i32_224 : i32
      %281 = arith.index_cast %280 : i32 to index
      %c0_225 = arith.constant 0 : index
      %c0_226 = arith.constant 0 : index
      %282 = vector.load %arg2[%281, %c0_225, %c0_226] : memref<45x32x32xbf16, #tpu.memory_space<vmem>>, vector<1x32x32xbf16>
      %283 = vector.shape_cast %282 : vector<1x32x32xbf16> to vector<32x32xbf16>
      %cst_227 = arith.constant dense<0.000000e+00> : vector<32x256xf32>
      %284 = tpu.matmul %283, %278, %cst_227 {dimension_numbers = #tpu.dot_dimension_numbers<[1], [0], [0], [1], [0, 0, 1, 1], [], []>} : vector<32x32xbf16>, vector<32x256xbf16>, vector<32x256xf32> -> vector<32x256xf32>
      %285 = arith.addf %277, %284 : vector<32x256xf32>
      %c0_228 = arith.constant 0 : index
      %c145_229 = arith.constant 145 : index
      %286 = vector.load %arg10[%c0_228, %c145_229] : memref<32x512xbf16, #tpu.memory_space<vmem>>, vector<32x256xbf16>
      %c1_230 = arith.constant 1 : index
      %c0_231 = arith.constant 0 : index
      %c0_232 = arith.constant 0 : index
      %287 = vector.load %arg8[%c1_230, %c0_231, %c0_232] : memref<2x1x256xbf16, #tpu.memory_space<vmem>>, vector<1x1x256xbf16>
      %288 = vector.shape_cast %287 : vector<1x1x256xbf16> to vector<1x256xbf16>
      %289 = vector.broadcast %288 : vector<1x256xbf16> to vector<32x256xbf16>
      %290 = arith.mulf %286, %289 : vector<32x256xbf16>
      %c9_i32_233 = arith.constant 9 : i32
      %291 = arith.muli %198, %c9_i32_233 : i32
      %c8_i32_234 = arith.constant 8 : i32
      %292 = arith.addi %291, %c8_i32_234 : i32
      %293 = arith.index_cast %292 : i32 to index
      %c0_235 = arith.constant 0 : index
      %c0_236 = arith.constant 0 : index
      %294 = vector.load %arg2[%293, %c0_235, %c0_236] : memref<45x32x32xbf16, #tpu.memory_space<vmem>>, vector<1x32x32xbf16>
      %295 = vector.shape_cast %294 : vector<1x32x32xbf16> to vector<32x32xbf16>
      %cst_237 = arith.constant dense<0.000000e+00> : vector<32x256xf32>
      %296 = tpu.matmul %295, %290, %cst_237 {dimension_numbers = #tpu.dot_dimension_numbers<[1], [0], [0], [1], [0, 0, 1, 1], [], []>} : vector<32x32xbf16>, vector<32x256xbf16>, vector<32x256xf32> -> vector<32x256xf32>
      %297 = arith.addf %285, %296 : vector<32x256xf32>
      %298 = arith.index_cast %198 : i32 to index
      %c0_238 = arith.constant 0 : index
      %c0_239 = arith.constant 0 : index
      %299 = vector.load %arg3[%298, %c0_238, %c0_239] : memref<5x32x1xf32, #tpu.memory_space<vmem>>, vector<1x32x1xf32>
      %300 = vector.shape_cast %299 : vector<1x32x1xf32> to vector<32x1xf32>
      %301 = vector.broadcast %300 : vector<32x1xf32> to vector<32x256xf32>
      %302 = arith.addf %297, %301 : vector<32x256xf32>
      %cst_240 = arith.constant dense<0.000000e+00> : vector<32xf32>
      %303 = vector.multi_reduction <add>, %302, %cst_240 [1] : vector<32x256xf32> to vector<32xf32>
      %304 = vector.shape_cast %303 : vector<32xf32> to vector<32x1xf32>
      %cst_241 = arith.constant 2.560000e+02 : f32
      %305 = vector.broadcast %cst_241 : f32 to vector<32x1xf32>
      %306 = arith.divf %304, %305 : vector<32x1xf32>
      %307 = arith.index_cast %arg11 : i32 to index
      %c0_242 = arith.constant 0 : index
      %c0_243 = arith.constant 0 : index
      %308 = vector.load %arg4[%307, %c0_242, %c0_243] : memref<2x2x32xf32, #tpu.memory_space<vmem>>, vector<1x2x32xf32>
      %309 = vector.shape_cast %308 : vector<1x2x32xf32> to vector<2x32xf32>
      %cst_244 = arith.constant dense<0.000000e+00> : vector<2x1xf32>
      %310 = tpu.matmul %309, %306, %cst_244 {dimension_numbers = #tpu.dot_dimension_numbers<[1], [0], [0], [1], [0, 0, 1, 1], [], []>} : vector<2x32xf32>, vector<32x1xf32>, vector<2x1xf32> -> vector<2x1xf32>
      %311 = arith.index_cast %arg11 : i32 to index
      %c0_245 = arith.constant 0 : index
      %c0_246 = arith.constant 0 : index
      %312 = vector.load %arg5[%311, %c0_245, %c0_246] : memref<2x2x1xf32, #tpu.memory_space<vmem>>, vector<1x2x1xf32>
      %313 = vector.shape_cast %312 : vector<1x2x1xf32> to vector<2x1xf32>
      %314 = arith.addf %310, %313 : vector<2x1xf32>
      %cst_247 = arith.constant 0.000000e+00 : f32
      %315 = vector.broadcast %cst_247 : f32 to vector<2x1xf32>
      %316 = arith.maximumf %314, %315 : vector<2x1xf32>
      %317 = arith.index_cast %arg11 : i32 to index
      %c0_248 = arith.constant 0 : index
      %c0_249 = arith.constant 0 : index
      %318 = vector.load %arg6[%317, %c0_248, %c0_249] : memref<2x32x2xf32, #tpu.memory_space<vmem>>, vector<1x32x2xf32>
      %319 = vector.shape_cast %318 : vector<1x32x2xf32> to vector<32x2xf32>
      %cst_250 = arith.constant dense<0.000000e+00> : vector<32x1xf32>
      %320 = tpu.matmul %319, %316, %cst_250 {dimension_numbers = #tpu.dot_dimension_numbers<[1], [0], [0], [1], [0, 0, 1, 1], [], []>} : vector<32x2xf32>, vector<2x1xf32>, vector<32x1xf32> -> vector<32x1xf32>
      %321 = arith.index_cast %arg11 : i32 to index
      %c0_251 = arith.constant 0 : index
      %c0_252 = arith.constant 0 : index
      %322 = vector.load %arg7[%321, %c0_251, %c0_252] : memref<2x32x1xf32, #tpu.memory_space<vmem>>, vector<1x32x1xf32>
      %323 = vector.shape_cast %322 : vector<1x32x1xf32> to vector<32x1xf32>
      %324 = arith.addf %320, %323 : vector<32x1xf32>
      %325 = arith.negf %324 : vector<32x1xf32>
      %326 = math.exp %325 : vector<32x1xf32>
      %cst_253 = arith.constant 1.000000e+00 : f32
      %327 = vector.broadcast %cst_253 : f32 to vector<32x1xf32>
      %328 = arith.addf %327, %326 : vector<32x1xf32>
      %329 = arith.divf %327, %328 : vector<32x1xf32>
      %330 = vector.broadcast %329 : vector<32x1xf32> to vector<32x256xf32>
      %331 = arith.mulf %302, %330 : vector<32x256xf32>
      %cst_254 = arith.constant 1.000000e+00 : f32
      %332 = vector.broadcast %cst_254 : f32 to vector<32x256xf32>
      %333 = arith.mulf %331, %332 : vector<32x256xf32>
      %334 = arith.addf %333, %arg12 : vector<32x256xf32>
      scf.yield %334 : vector<32x256xf32>
    }
    %c2_i32_6 = arith.constant 2 : i32
    %8 = arith.truncf %7 : vector<32x256xf32> to vector<32x256xbf16>
    %c0_7 = arith.constant 0 : index
    %c128 = arith.constant 128 : index
    %9 = vector.load %arg10[%c0_7, %c128] : memref<32x512xbf16, #tpu.memory_space<vmem>>, vector<32x256xbf16>
    tpu.vector_store %arg10[%c0_7, %c128], %8 {strides = array<i32>} : memref<32x512xbf16, #tpu.memory_space<vmem>>, vector<32x256xbf16>,
    %cst_8 = arith.constant 0.000000e+00 : f32
    %10 = vector.broadcast %cst_8 : f32 to vector<32x256xf32>
    %c0_9 = arith.constant 0 : index
    %c111 = arith.constant 111 : index
    %11 = vector.load %arg10[%c0_9, %c111] : memref<32x512xbf16, #tpu.memory_space<vmem>>, vector<32x256xbf16>
    %c0_10 = arith.constant 0 : index
    %c0_11 = arith.constant 0 : index
    %c0_12 = arith.constant 0 : index
    %12 = vector.load %arg8[%c0_10, %c0_11, %c0_12] : memref<2x1x256xbf16, #tpu.memory_space<vmem>>, vector<1x1x256xbf16>
    %13 = vector.shape_cast %12 : vector<1x1x256xbf16> to vector<1x256xbf16>
    %14 = vector.broadcast %13 : vector<1x256xbf16> to vector<32x256xbf16>
    %15 = arith.mulf %11, %14 : vector<32x256xbf16>
    %c36 = arith.constant 36 : index
    %c0_13 = arith.constant 0 : index
    %c0_14 = arith.constant 0 : index
    %16 = vector.load %arg2[%c36, %c0_13, %c0_14] : memref<45x32x32xbf16, #tpu.memory_space<vmem>>, vector<1x32x32xbf16>
    %17 = vector.shape_cast %16 : vector<1x32x32xbf16> to vector<32x32xbf16>
    %cst_15 = arith.constant dense<0.000000e+00> : vector<32x256xf32>
    %18 = tpu.matmul %17, %15, %cst_15 {dimension_numbers = #tpu.dot_dimension_numbers<[1], [0], [0], [1], [0, 0, 1, 1], [], []>} : vector<32x32xbf16>, vector<32x256xbf16>, vector<32x256xf32> -> vector<32x256xf32>
    %19 = arith.addf %10, %18 : vector<32x256xf32>
    %c0_16 = arith.constant 0 : index
    %c112 = arith.constant 112 : index
    %20 = vector.load %arg10[%c0_16, %c112] : memref<32x512xbf16, #tpu.memory_space<vmem>>, vector<32x256xbf16>
    %c37 = arith.constant 37 : index
    %c0_17 = arith.constant 0 : index
    %c0_18 = arith.constant 0 : index
    %21 = vector.load %arg2[%c37, %c0_17, %c0_18] : memref<45x32x32xbf16, #tpu.memory_space<vmem>>, vector<1x32x32xbf16>
    %22 = vector.shape_cast %21 : vector<1x32x32xbf16> to vector<32x32xbf16>
    %cst_19 = arith.constant dense<0.000000e+00> : vector<32x256xf32>
    %23 = tpu.matmul %22, %20, %cst_19 {dimension_numbers = #tpu.dot_dimension_numbers<[1], [0], [0], [1], [0, 0, 1, 1], [], []>} : vector<32x32xbf16>, vector<32x256xbf16>, vector<32x256xf32> -> vector<32x256xf32>
    %24 = arith.addf %19, %23 : vector<32x256xf32>
    %c0_20 = arith.constant 0 : index
    %c113 = arith.constant 113 : index
    %25 = vector.load %arg10[%c0_20, %c113] : memref<32x512xbf16, #tpu.memory_space<vmem>>, vector<32x256xbf16>
    %c1 = arith.constant 1 : index
    %c0_21 = arith.constant 0 : index
    %c0_22 = arith.constant 0 : index
    %26 = vector.load %arg8[%c1, %c0_21, %c0_22] : memref<2x1x256xbf16, #tpu.memory_space<vmem>>, vector<1x1x256xbf16>
    %27 = vector.shape_cast %26 : vector<1x1x256xbf16> to vector<1x256xbf16>
    %28 = vector.broadcast %27 : vector<1x256xbf16> to vector<32x256xbf16>
    %29 = arith.mulf %25, %28 : vector<32x256xbf16>
    %c38 = arith.constant 38 : index
    %c0_23 = arith.constant 0 : index
    %c0_24 = arith.constant 0 : index
    %30 = vector.load %arg2[%c38, %c0_23, %c0_24] : memref<45x32x32xbf16, #tpu.memory_space<vmem>>, vector<1x32x32xbf16>
    %31 = vector.shape_cast %30 : vector<1x32x32xbf16> to vector<32x32xbf16>
    %cst_25 = arith.constant dense<0.000000e+00> : vector<32x256xf32>
    %32 = tpu.matmul %31, %29, %cst_25 {dimension_numbers = #tpu.dot_dimension_numbers<[1], [0], [0], [1], [0, 0, 1, 1], [], []>} : vector<32x32xbf16>, vector<32x256xbf16>, vector<32x256xf32> -> vector<32x256xf32>
    %33 = arith.addf %24, %32 : vector<32x256xf32>
    %c0_26 = arith.constant 0 : index
    %c127 = arith.constant 127 : index
    %34 = vector.load %arg10[%c0_26, %c127] : memref<32x512xbf16, #tpu.memory_space<vmem>>, vector<32x256xbf16>
    %c0_27 = arith.constant 0 : index
    %c0_28 = arith.constant 0 : index
    %c0_29 = arith.constant 0 : index
    %35 = vector.load %arg8[%c0_27, %c0_28, %c0_29] : memref<2x1x256xbf16, #tpu.memory_space<vmem>>, vector<1x1x256xbf16>
    %36 = vector.shape_cast %35 : vector<1x1x256xbf16> to vector<1x256xbf16>
    %37 = vector.broadcast %36 : vector<1x256xbf16> to vector<32x256xbf16>
    %38 = arith.mulf %34, %37 : vector<32x256xbf16>
    %c39 = arith.constant 39 : index
    %c0_30 = arith.constant 0 : index
    %c0_31 = arith.constant 0 : index
    %39 = vector.load %arg2[%c39, %c0_30, %c0_31] : memref<45x32x32xbf16, #tpu.memory_space<vmem>>, vector<1x32x32xbf16>
    %40 = vector.shape_cast %39 : vector<1x32x32xbf16> to vector<32x32xbf16>
    %cst_32 = arith.constant dense<0.000000e+00> : vector<32x256xf32>
    %41 = tpu.matmul %40, %38, %cst_32 {dimension_numbers = #tpu.dot_dimension_numbers<[1], [0], [0], [1], [0, 0, 1, 1], [], []>} : vector<32x32xbf16>, vector<32x256xbf16>, vector<32x256xf32> -> vector<32x256xf32>
    %42 = arith.addf %33, %41 : vector<32x256xf32>
    %c0_33 = arith.constant 0 : index
    %c128_34 = arith.constant 128 : index
    %43 = vector.load %arg10[%c0_33, %c128_34] : memref<32x512xbf16, #tpu.memory_space<vmem>>, vector<32x256xbf16>
    %c40 = arith.constant 40 : index
    %c0_35 = arith.constant 0 : index
    %c0_36 = arith.constant 0 : index
    %44 = vector.load %arg2[%c40, %c0_35, %c0_36] : memref<45x32x32xbf16, #tpu.memory_space<vmem>>, vector<1x32x32xbf16>
    %45 = vector.shape_cast %44 : vector<1x32x32xbf16> to vector<32x32xbf16>
    %cst_37 = arith.constant dense<0.000000e+00> : vector<32x256xf32>
    %46 = tpu.matmul %45, %43, %cst_37 {dimension_numbers = #tpu.dot_dimension_numbers<[1], [0], [0], [1], [0, 0, 1, 1], [], []>} : vector<32x32xbf16>, vector<32x256xbf16>, vector<32x256xf32> -> vector<32x256xf32>
    %47 = arith.addf %42, %46 : vector<32x256xf32>
    %c0_38 = arith.constant 0 : index
    %c129 = arith.constant 129 : index
    %48 = vector.load %arg10[%c0_38, %c129] : memref<32x512xbf16, #tpu.memory_space<vmem>>, vector<32x256xbf16>
    %c1_39 = arith.constant 1 : index
    %c0_40 = arith.constant 0 : index
    %c0_41 = arith.constant 0 : index
    %49 = vector.load %arg8[%c1_39, %c0_40, %c0_41] : memref<2x1x256xbf16, #tpu.memory_space<vmem>>, vector<1x1x256xbf16>
    %50 = vector.shape_cast %49 : vector<1x1x256xbf16> to vector<1x256xbf16>
    %51 = vector.broadcast %50 : vector<1x256xbf16> to vector<32x256xbf16>
    %52 = arith.mulf %48, %51 : vector<32x256xbf16>
    %c41 = arith.constant 41 : index
    %c0_42 = arith.constant 0 : index
    %c0_43 = arith.constant 0 : index
    %53 = vector.load %arg2[%c41, %c0_42, %c0_43] : memref<45x32x32xbf16, #tpu.memory_space<vmem>>, vector<1x32x32xbf16>
    %54 = vector.shape_cast %53 : vector<1x32x32xbf16> to vector<32x32xbf16>
    %cst_44 = arith.constant dense<0.000000e+00> : vector<32x256xf32>
    %55 = tpu.matmul %54, %52, %cst_44 {dimension_numbers = #tpu.dot_dimension_numbers<[1], [0], [0], [1], [0, 0, 1, 1], [], []>} : vector<32x32xbf16>, vector<32x256xbf16>, vector<32x256xf32> -> vector<32x256xf32>
    %56 = arith.addf %47, %55 : vector<32x256xf32>
    %c0_45 = arith.constant 0 : index
    %c143 = arith.constant 143 : index
    %57 = vector.load %arg10[%c0_45, %c143] : memref<32x512xbf16, #tpu.memory_space<vmem>>, vector<32x256xbf16>
    %c0_46 = arith.constant 0 : index
    %c0_47 = arith.constant 0 : index
    %c0_48 = arith.constant 0 : index
    %58 = vector.load %arg8[%c0_46, %c0_47, %c0_48] : memref<2x1x256xbf16, #tpu.memory_space<vmem>>, vector<1x1x256xbf16>
    %59 = vector.shape_cast %58 : vector<1x1x256xbf16> to vector<1x256xbf16>
    %60 = vector.broadcast %59 : vector<1x256xbf16> to vector<32x256xbf16>
    %61 = arith.mulf %57, %60 : vector<32x256xbf16>
    %c42 = arith.constant 42 : index
    %c0_49 = arith.constant 0 : index
    %c0_50 = arith.constant 0 : index
    %62 = vector.load %arg2[%c42, %c0_49, %c0_50] : memref<45x32x32xbf16, #tpu.memory_space<vmem>>, vector<1x32x32xbf16>
    %63 = vector.shape_cast %62 : vector<1x32x32xbf16> to vector<32x32xbf16>
    %cst_51 = arith.constant dense<0.000000e+00> : vector<32x256xf32>
    %64 = tpu.matmul %63, %61, %cst_51 {dimension_numbers = #tpu.dot_dimension_numbers<[1], [0], [0], [1], [0, 0, 1, 1], [], []>} : vector<32x32xbf16>, vector<32x256xbf16>, vector<32x256xf32> -> vector<32x256xf32>
    %65 = arith.addf %56, %64 : vector<32x256xf32>
    %c0_52 = arith.constant 0 : index
    %c144 = arith.constant 144 : index
    %66 = vector.load %arg10[%c0_52, %c144] : memref<32x512xbf16, #tpu.memory_space<vmem>>, vector<32x256xbf16>
    %c43 = arith.constant 43 : index
    %c0_53 = arith.constant 0 : index
    %c0_54 = arith.constant 0 : index
    %67 = vector.load %arg2[%c43, %c0_53, %c0_54] : memref<45x32x32xbf16, #tpu.memory_space<vmem>>, vector<1x32x32xbf16>
    %68 = vector.shape_cast %67 : vector<1x32x32xbf16> to vector<32x32xbf16>
    %cst_55 = arith.constant dense<0.000000e+00> : vector<32x256xf32>
    %69 = tpu.matmul %68, %66, %cst_55 {dimension_numbers = #tpu.dot_dimension_numbers<[1], [0], [0], [1], [0, 0, 1, 1], [], []>} : vector<32x32xbf16>, vector<32x256xbf16>, vector<32x256xf32> -> vector<32x256xf32>
    %70 = arith.addf %65, %69 : vector<32x256xf32>
    %c0_56 = arith.constant 0 : index
    %c145 = arith.constant 145 : index
    %71 = vector.load %arg10[%c0_56, %c145] : memref<32x512xbf16, #tpu.memory_space<vmem>>, vector<32x256xbf16>
    %c1_57 = arith.constant 1 : index
    %c0_58 = arith.constant 0 : index
    %c0_59 = arith.constant 0 : index
    %72 = vector.load %arg8[%c1_57, %c0_58, %c0_59] : memref<2x1x256xbf16, #tpu.memory_space<vmem>>, vector<1x1x256xbf16>
    %73 = vector.shape_cast %72 : vector<1x1x256xbf16> to vector<1x256xbf16>
    %74 = vector.broadcast %73 : vector<1x256xbf16> to vector<32x256xbf16>
    %75 = arith.mulf %71, %74 : vector<32x256xbf16>
    %c44 = arith.constant 44 : index
    %c0_60 = arith.constant 0 : index
    %c0_61 = arith.constant 0 : index
    %76 = vector.load %arg2[%c44, %c0_60, %c0_61] : memref<45x32x32xbf16, #tpu.memory_space<vmem>>, vector<1x32x32xbf16>
    %77 = vector.shape_cast %76 : vector<1x32x32xbf16> to vector<32x32xbf16>
    %cst_62 = arith.constant dense<0.000000e+00> : vector<32x256xf32>
    %78 = tpu.matmul %77, %75, %cst_62 {dimension_numbers = #tpu.dot_dimension_numbers<[1], [0], [0], [1], [0, 0, 1, 1], [], []>} : vector<32x32xbf16>, vector<32x256xbf16>, vector<32x256xf32> -> vector<32x256xf32>
    %79 = arith.addf %70, %78 : vector<32x256xf32>
    %c4 = arith.constant 4 : index
    %c0_63 = arith.constant 0 : index
    %c0_64 = arith.constant 0 : index
    %80 = vector.load %arg3[%c4, %c0_63, %c0_64] : memref<5x32x1xf32, #tpu.memory_space<vmem>>, vector<1x32x1xf32>
    %81 = vector.shape_cast %80 : vector<1x32x1xf32> to vector<32x1xf32>
    %82 = vector.broadcast %81 : vector<32x1xf32> to vector<32x256xf32>
    %83 = arith.addf %79, %82 : vector<32x256xf32>
    %c0_65 = arith.constant 0 : index
    %c0_66 = arith.constant 0 : index
    %c0_67 = arith.constant 0 : index
    %84 = vector.load %arg1[%c0_65, %c0_66, %c0_67] : memref<1x32x256xf32, #tpu.memory_space<vmem>>, vector<1x32x256xf32>
    %85 = vector.shape_cast %84 : vector<1x32x256xf32> to vector<32x256xf32>
    %86 = arith.addf %83, %85 : vector<32x256xf32>
    %c0_68 = arith.constant 0 : index
    %c0_69 = arith.constant 0 : index
    %c0_70 = arith.constant 0 : index
    %87 = vector.load %arg9[%c0_68, %c0_69, %c0_70] : memref<1x32x256xf32, #tpu.memory_space<vmem>>, vector<1x32x256xf32>
    %88 = vector.shape_cast %87 : vector<1x32x256xf32> to vector<32x256xf32>
    %89 = vector.shape_cast %86 : vector<32x256xf32> to vector<1x32x256xf32>
    tpu.vector_store %arg9[%c0_68, %c0_69, %c0_70], %89 {strides = array<i32>} : memref<1x32x256xf32, #tpu.memory_space<vmem>>, vector<1x32x256xf32>,
    return
  }
  func.func @transform_0(%arg0: i32) -> (i32, i32, i32) {
    %c0_i32 = arith.constant 0 : i32
    %c0_i32_0 = arith.constant 0 : i32
    %c0_i32_1 = arith.constant 0 : i32
    return %arg0, %c0_i32, %c0_i32_0 : i32, i32, i32
  }
  func.func @transform_1(%arg0: i32) -> (i32, i32, i32) {
    %c0_i32 = arith.constant 0 : i32
    %c0_i32_0 = arith.constant 0 : i32
    %c0_i32_1 = arith.constant 0 : i32
    %c0_i32_2 = arith.constant 0 : i32
    return %c0_i32, %c0_i32_0, %c0_i32_1 : i32, i32, i32
  }
  func.func @transform_2(%arg0: i32) -> (i32, i32, i32) {
    %c0_i32 = arith.constant 0 : i32
    %c0_i32_0 = arith.constant 0 : i32
    %c0_i32_1 = arith.constant 0 : i32
    %c0_i32_2 = arith.constant 0 : i32
    return %c0_i32, %c0_i32_0, %c0_i32_1 : i32, i32, i32
  }
  func.func @transform_3(%arg0: i32) -> (i32, i32, i32) {
    %c0_i32 = arith.constant 0 : i32
    %c0_i32_0 = arith.constant 0 : i32
    %c0_i32_1 = arith.constant 0 : i32
    %c0_i32_2 = arith.constant 0 : i32
    return %c0_i32, %c0_i32_0, %c0_i32_1 : i32, i32, i32
  }
  func.func @transform_4(%arg0: i32) -> (i32, i32, i32) {
    %c0_i32 = arith.constant 0 : i32
    %c0_i32_0 = arith.constant 0 : i32
    %c0_i32_1 = arith.constant 0 : i32
    %c0_i32_2 = arith.constant 0 : i32
    return %c0_i32, %c0_i32_0, %c0_i32_1 : i32, i32, i32
  }
  func.func @transform_5(%arg0: i32) -> (i32, i32, i32) {
    %c0_i32 = arith.constant 0 : i32
    %c0_i32_0 = arith.constant 0 : i32
    %c0_i32_1 = arith.constant 0 : i32
    %c0_i32_2 = arith.constant 0 : i32
    return %c0_i32, %c0_i32_0, %c0_i32_1 : i32, i32, i32
  }
  func.func @transform_6(%arg0: i32) -> (i32, i32, i32) {
    %c0_i32 = arith.constant 0 : i32
    %c0_i32_0 = arith.constant 0 : i32
    %c0_i32_1 = arith.constant 0 : i32
    %c0_i32_2 = arith.constant 0 : i32
    return %c0_i32, %c0_i32_0, %c0_i32_1 : i32, i32, i32
  }
  func.func @transform_7(%arg0: i32) -> (i32, i32, i32) {
    %c0_i32 = arith.constant 0 : i32
    %c0_i32_0 = arith.constant 0 : i32
    %c0_i32_1 = arith.constant 0 : i32
    %c0_i32_2 = arith.constant 0 : i32
    return %c0_i32, %c0_i32_0, %c0_i32_1 : i32, i32, i32
  }
  func.func @transform_8(%arg0: i32) -> (i32, i32, i32) {
    %c0_i32 = arith.constant 0 : i32
    %c0_i32_0 = arith.constant 0 : i32
    %c0_i32_1 = arith.constant 0 : i32
    return %arg0, %c0_i32, %c0_i32_0 : i32, i32, i32
  }
}

</mosaic_0001>

<llo_original>
// kernel: tpu_custom_call.1
$region0: #{tpu_custom_call.1}
  #allocation0 [shape = 'u32[]', space=smem, size = 0x4, offset = 0x4, fixed_abs, tag = 'smem constant byte address 0x4 - core index']
  #allocation1 [shape = 'u32[72,128]{1,0:T(1,128)}', space=vmem, size = 0x9000, scoped, tag = 'internal scratch']
  #allocation2 [shape = 'bf16[32,512]{1,0:T(8,128)(2,1)}', space=vmem, size = 0x8000, scoped, tag = 'scratch operand']
  %s0 = inlined_call_operand.vmem [shape: f32[2,32,256], index: 0, kind: input, shape index: {}]
  %s1 = inlined_call_operand.vmem [shape: bf16[45,32,32], index: 1, kind: input, shape index: {}]
  %s2 = inlined_call_operand.vmem [shape: f32[5,32,1], index: 2, kind: input, shape index: {}]
  %s3 = inlined_call_operand.vmem [shape: f32[2,2,32], index: 3, kind: input, shape index: {}]
  %s4 = inlined_call_operand.vmem [shape: f32[2,2,1], index: 4, kind: input, shape index: {}]
  %s5 = inlined_call_operand.vmem [shape: f32[2,32,2], index: 5, kind: input, shape index: {}]
  %s6 = inlined_call_operand.vmem [shape: f32[2,32,1], index: 6, kind: input, shape index: {}]
  %s7 = inlined_call_operand.vmem [shape: bf16[2,1,256], index: 7, kind: input, shape index: {}]
  %s8 = inlined_call_operand.hbm [shape: f32[2,32,256], index: 8, kind: output, shape index: {}]
  %s9 = sld [smem:[#allocation0]]
  $region72: #{tpu_custom_call.1} parent=0
    _
  %s11 = ssub.s32 1, %s9
  %s12 = scalar_select 0, %s11, %s9
  $region1: #{tpu_custom_call.1} parent=0
    #allocation3 [shape = 'u8[65536]{0}', space=vmem, size = 0x10000, scoped, tag = 'output window, operand 0']
    #allocation4 [shape = 's32[2]{0}', space=sflag, size = 0x8, scoped, tag = 'scoped memory for tpu_custom_call.1']
    %13 = vsyncpa [#allocation4], 0
    %s14 = scalar_lea.sflag [#allocation4], 1
    %15 = vsyncpa %s14, 0
    loop: start=0, step=1, limit=4
    $region2: #{tpu_custom_call.1} parent=1 // loop_pre_header
      _
    $region3: #{tpu_custom_call.1} parent=1 // loop_header
      %s17 = sphi 0, %s21
      %p18 = scmp.ge.s32.totalorder %s17, 4
      %s27 = sphi 0, %s29
      %s30 = sphi 0, %s27
      %s31 = sphi 0, %s30
      %s47 = sphi 0, %s31
      %s51 = sphi 0, %s51
      %s53 = sphi 0, %s51
      %s54 = sphi 0, %s53
      %s68 = sphi 0, %s54
      %s72 = sphi 0, %s72
      %s74 = sphi 0, %s72
      %s75 = sphi 0, %s74
      %s89 = sphi 0, %s75
      %s93 = sphi 0, %s93
      %s95 = sphi 0, %s93
      %s96 = sphi 0, %s95
      %s110 = sphi 0, %s96
      %s114 = sphi 0, %s114
      %s116 = sphi 0, %s114
      %s117 = sphi 0, %s116
      %s131 = sphi 0, %s117
      %s135 = sphi 0, %s135
      %s137 = sphi 0, %s135
      %s138 = sphi 0, %s137
      %s152 = sphi 0, %s138
      %s156 = sphi 0, %s156
      %s158 = sphi 0, %s156
      %s159 = sphi 0, %s158
      %s173 = sphi 0, %s159
      %s177 = sphi 0, %s177
      %s179 = sphi 0, %s177
      %s180 = sphi 0, %s179
      %s194 = sphi 0, %s180
      %s200 = sphi 0, %s202
      %s203 = sphi 0, %s200
      %s204 = sphi 0, %s203
      %s220 = sphi 0, %s204
    $region4: #{tpu_custom_call.1} parent=1 // loop_header_branch
      %20 = sbr.rel (%p18) target = $region8
    $region5: #{tpu_custom_call.1} parent=1 // loop_body
      %s22 = ssub.s32 %s17, 1
      %s23 = ssub.s32 %s17, 2
      %s24 = sadd.s32 %s17, 1
      %s25 = ssub.s32 %s17, %s24
      %p26 = scmp.eq.s32.totalorder %s25, 0
      %s28 = sadd.s32 %s27, 1
      %s29 = scalar_select %p26, %s27, %s28
      %p32 = pneg %p26
      %p33 = scmp.eq.s32.totalorder %s17, 1
      %p34 = por %p32, %p33
      %p35 = scmp.ne.s32.totalorder %s27, %s30
      %p36 = scmp.eq.s32.totalorder %s17, 0
      %p37 = por %p35, %p36
      %p38 = scmp.ne.s32.totalorder %s27, %s30
      %p39 = scmp.eq.s32.totalorder %s22, 1
      %p40 = por %p38, %p39
      %p41 = scmp.ne.s32.totalorder %s30, %s31
      %p42 = scmp.eq.s32.totalorder %s22, 0
      %p43 = por %p41, %p42
      %p44 = scmp.ne.s32.totalorder %s30, %s31
      %p45 = scmp.eq.s32.totalorder %s23, 1
      %p46 = por %p44, %p45
      %p48 = scmp.ne.s32.totalorder %s31, %s47
      %p49 = scmp.eq.s32.totalorder %s23, 0
      %p50 = por %p48, %p49
      %s52 = sadd.s32 %s51, 1
      %p55 = scmp.eq.s32.totalorder %s17, 1
      %p56 = scmp.ne.s32.totalorder %s51, %s53
      %p57 = scmp.eq.s32.totalorder %s17, 0
      %p58 = por %p56, %p57
      %p59 = scmp.ne.s32.totalorder %s51, %s53
      %p60 = scmp.eq.s32.totalorder %s22, 1
      %p61 = por %p59, %p60
      %p62 = scmp.ne.s32.totalorder %s53, %s54
      %p63 = scmp.eq.s32.totalorder %s22, 0
      %p64 = por %p62, %p63
      %p65 = scmp.ne.s32.totalorder %s53, %s54
      %p66 = scmp.eq.s32.totalorder %s23, 1
      %p67 = por %p65, %p66
      %p69 = scmp.ne.s32.totalorder %s54, %s68
      %p70 = scmp.eq.s32.totalorder %s23, 0
      %p71 = por %p69, %p70
      %s73 = sadd.s32 %s72, 1
      %p76 = scmp.eq.s32.totalorder %s17, 1
      %p77 = scmp.ne.s32.totalorder %s72, %s74
      %p78 = scmp.eq.s32.totalorder %s17, 0
      %p79 = por %p77, %p78
      %p80 = scmp.ne.s32.totalorder %s72, %s74
      %p81 = scmp.eq.s32.totalorder %s22, 1
      %p82 = por %p80, %p81
      %p83 = scmp.ne.s32.totalorder %s74, %s75
      %p84 = scmp.eq.s32.totalorder %s22, 0
      %p85 = por %p83, %p84
      %p86 = scmp.ne.s32.totalorder %s74, %s75
      %p87 = scmp.eq.s32.totalorder %s23, 1
      %p88 = por %p86, %p87
      %p90 = scmp.ne.s32.totalorder %s75, %s89
      %p91 = scmp.eq.s32.totalorder %s23, 0
      %p92 = por %p90, %p91
      %s94 = sadd.s32 %s93, 1
      %p97 = scmp.eq.s32.totalorder %s17, 1
      %p98 = scmp.ne.s32.totalorder %s93, %s95
      %p99 = scmp.eq.s32.totalorder %s17, 0
      %p100 = por %p98, %p99
      %p101 = scmp.ne.s32.totalorder %s93, %s95
      %p102 = scmp.eq.s32.totalorder %s22, 1
      %p103 = por %p101, %p102
      %p104 = scmp.ne.s32.totalorder %s95, %s96
      %p105 = scmp.eq.s32.totalorder %s22, 0
      %p106 = por %p104, %p105
      %p107 = scmp.ne.s32.totalorder %s95, %s96
      %p108 = scmp.eq.s32.totalorder %s23, 1
      %p109 = por %p107, %p108
      %p111 = scmp.ne.s32.totalorder %s96, %s110
      %p112 = scmp.eq.s32.totalorder %s23, 0
      %p113 = por %p111, %p112
      %s115 = sadd.s32 %s114, 1
      %p118 = scmp.eq.s32.totalorder %s17, 1
      %p119 = scmp.ne.s32.totalorder %s114, %s116
      %p120 = scmp.eq.s32.totalorder %s17, 0
      %p121 = por %p119, %p120
      %p122 = scmp.ne.s32.totalorder %s114, %s116
      %p123 = scmp.eq.s32.totalorder %s22, 1
      %p124 = por %p122, %p123
      %p125 = scmp.ne.s32.totalorder %s116, %s117
      %p126 = scmp.eq.s32.totalorder %s22, 0
      %p127 = por %p125, %p126
      %p128 = scmp.ne.s32.totalorder %s116, %s117
      %p129 = scmp.eq.s32.totalorder %s23, 1
      %p130 = por %p128, %p129
      %p132 = scmp.ne.s32.totalorder %s117, %s131
      %p133 = scmp.eq.s32.totalorder %s23, 0
      %p134 = por %p132, %p133
      %s136 = sadd.s32 %s135, 1
      %p139 = scmp.eq.s32.totalorder %s17, 1
      %p140 = scmp.ne.s32.totalorder %s135, %s137
      %p141 = scmp.eq.s32.totalorder %s17, 0
      %p142 = por %p140, %p141
      %p143 = scmp.ne.s32.totalorder %s135, %s137
      %p144 = scmp.eq.s32.totalorder %s22, 1
      %p145 = por %p143, %p144
      %p146 = scmp.ne.s32.totalorder %s137, %s138
      %p147 = scmp.eq.s32.totalorder %s22, 0
      %p148 = por %p146, %p147
      %p149 = scmp.ne.s32.totalorder %s137, %s138
      %p150 = scmp.eq.s32.totalorder %s23, 1
      %p151 = por %p149, %p150
      %p153 = scmp.ne.s32.totalorder %s138, %s152
      %p154 = scmp.eq.s32.totalorder %s23, 0
      %p155 = por %p153, %p154
      %s157 = sadd.s32 %s156, 1
      %p160 = scmp.eq.s32.totalorder %s17, 1
      %p161 = scmp.ne.s32.totalorder %s156, %s158
      %p162 = scmp.eq.s32.totalorder %s17, 0
      %p163 = por %p161, %p162
      %p164 = scmp.ne.s32.totalorder %s156, %s158
      %p165 = scmp.eq.s32.totalorder %s22, 1
      %p166 = por %p164, %p165
      %p167 = scmp.ne.s32.totalorder %s158, %s159
      %p168 = scmp.eq.s32.totalorder %s22, 0
      %p169 = por %p167, %p168
      %p170 = scmp.ne.s32.totalorder %s158, %s159
      %p171 = scmp.eq.s32.totalorder %s23, 1
      %p172 = por %p170, %p171
      %p174 = scmp.ne.s32.totalorder %s159, %s173
      %p175 = scmp.eq.s32.totalorder %s23, 0
      %p176 = por %p174, %p175
      %s178 = sadd.s32 %s177, 1
      %p181 = scmp.eq.s32.totalorder %s17, 1
      %p182 = scmp.ne.s32.totalorder %s177, %s179
      %p183 = scmp.eq.s32.totalorder %s17, 0
      %p184 = por %p182, %p183
      %p185 = scmp.ne.s32.totalorder %s177, %s179
      %p186 = scmp.eq.s32.totalorder %s22, 1
      %p187 = por %p185, %p186
      %p188 = scmp.ne.s32.totalorder %s179, %s180
      %p189 = scmp.eq.s32.totalorder %s22, 0
      %p190 = por %p188, %p189
      %p191 = scmp.ne.s32.totalorder %s179, %s180
      %p192 = scmp.eq.s32.totalorder %s23, 1
      %p193 = por %p191, %p192
      %p195 = scmp.ne.s32.totalorder %s180, %s194
      %p196 = scmp.eq.s32.totalorder %s23, 0
      %p197 = por %p195, %p196
      %s198 = ssub.s32 %s17, %s24
      %p199 = scmp.eq.s32.totalorder %s198, 0
      %s201 = sadd.s32 %s200, 1
      %s202 = scalar_select %p199, %s200, %s201
      %p205 = pneg %p199
      %p206 = scmp.eq.s32.totalorder %s17, 1
      %p207 = por %p205, %p206
      %p208 = scmp.ne.s32.totalorder %s200, %s203
      %p209 = scmp.eq.s32.totalorder %s17, 0
      %p210 = por %p208, %p209
      %p211 = scmp.ne.s32.totalorder %s200, %s203
      %p212 = scmp.eq.s32.totalorder %s22, 1
      %p213 = por %p211, %p212
      %p214 = scmp.ne.s32.totalorder %s203, %s204
      %p215 = scmp.eq.s32.totalorder %s22, 0
      %p216 = por %p214, %p215
      %p217 = scmp.ne.s32.totalorder %s203, %s204
      %p218 = scmp.eq.s32.totalorder %s23, 1
      %p219 = por %p217, %p218
      %p221 = scmp.ne.s32.totalorder %s204, %s220
      %p222 = scmp.eq.s32.totalorder %s23, 0
      %p223 = por %p221, %p222
      %p224 = scmp.le.s32.totalorder 1, %s17
      %p225 = scmp.lt.s32.totalorder %s17, 3
      %p226 = pnand %p224, %p225
      %p227 = pneg %p226
      // Predicated region
      $region9: #{tpu_custom_call.1} parent=5 // pred_check
        _
      $region10: #{tpu_custom_call.1} parent=5 // pred_check_branch
        %229 = sbr.rel (%p226) target = $region12
      $region11: #{tpu_custom_call.1} parent=5 // pred_region
        %s230 = ssub.s32 %s17, 1
        // Predicated region
        $region13: #{tpu_custom_call.1} parent=11 // pred_check
          %p231 = pneg %p64
        $region14: #{tpu_custom_call.1} parent=11 // pred_check_branch
          %233 = sbr.rel (%p231) target = $region16
        $region15: #{tpu_custom_call.1} parent=11 // pred_region
          _
        $region16: #{tpu_custom_call.1} parent=11 // pred_fallthru
          _
        // Predicated region
        $region17: #{tpu_custom_call.1} parent=11 // pred_check
          %p234 = pneg %p85
        $region18: #{tpu_custom_call.1} parent=11 // pred_check_branch
          %236 = sbr.rel (%p234) target = $region20
        $region19: #{tpu_custom_call.1} parent=11 // pred_region
          _
        $region20: #{tpu_custom_call.1} parent=11 // pred_fallthru
          _
        // Predicated region
        $region21: #{tpu_custom_call.1} parent=11 // pred_check
          %p237 = pneg %p106
        $region22: #{tpu_custom_call.1} parent=11 // pred_check_branch
          %239 = sbr.rel (%p237) target = $region24
        $region23: #{tpu_custom_call.1} parent=11 // pred_region
          _
        $region24: #{tpu_custom_call.1} parent=11 // pred_fallthru
          _
        // Predicated region
        $region25: #{tpu_custom_call.1} parent=11 // pred_check
          %p240 = pneg %p127
        $region26: #{tpu_custom_call.1} parent=11 // pred_check_branch
          %242 = sbr.rel (%p240) target = $region28
        $region27: #{tpu_custom_call.1} parent=11 // pred_region
          _
        $region28: #{tpu_custom_call.1} parent=11 // pred_fallthru
          _
        // Predicated region
        $region29: #{tpu_custom_call.1} parent=11 // pred_check
          %p243 = pneg %p148
        $region30: #{tpu_custom_call.1} parent=11 // pred_check_branch
          %245 = sbr.rel (%p243) target = $region32
        $region31: #{tpu_custom_call.1} parent=11 // pred_region
          _
        $region32: #{tpu_custom_call.1} parent=11 // pred_fallthru
          _
        // Predicated region
        $region33: #{tpu_custom_call.1} parent=11 // pred_check
          %p246 = pneg %p169
        $region34: #{tpu_custom_call.1} parent=11 // pred_check_branch
          %248 = sbr.rel (%p246) target = $region36
        $region35: #{tpu_custom_call.1} parent=11 // pred_region
          _
        $region36: #{tpu_custom_call.1} parent=11 // pred_fallthru
          _
        // Predicated region
        $region37: #{tpu_custom_call.1} parent=11 // pred_check
          %p249 = pneg %p190
        $region38: #{tpu_custom_call.1} parent=11 // pred_check_branch
          %251 = sbr.rel (%p249) target = $region40
        $region39: #{tpu_custom_call.1} parent=11 // pred_region
          _
        $region40: #{tpu_custom_call.1} parent=11 // pred_fallthru
          _
      $region12: #{tpu_custom_call.1} parent=5 // pred_fallthru
        _
      %p252 = scmp.lt.s32.totalorder %s17, 2
      // Predicated region
      $region41: #{tpu_custom_call.1} parent=5 // pred_check
        %p253 = pneg %p252
      $region42: #{tpu_custom_call.1} parent=5 // pred_check_branch
        %255 = sbr.rel (%p253) target = $region44
      $region43: #{tpu_custom_call.1} parent=5 // pred_region
        // Predicated region
        $region45: #{tpu_custom_call.1} parent=43 // pred_check
          %p256 = pneg %p37
        $region46: #{tpu_custom_call.1} parent=43 // pred_check_branch
          %258 = sbr.rel (%p256) target = $region48
        $region47: #{tpu_custom_call.1} parent=43 // pred_region
          %p259 = scmp.lt.s32.totalorder %s17, 1
          %s260 = scalar_select %p259, %s17, 1
          %s261 = smul.addr %s260, 8
          %s262 = smul.addr %s261, 8
          %s263 = scalar_lea.vmem %s0, %s262
        $region48: #{tpu_custom_call.1} parent=43 // pred_fallthru
          _
      $region44: #{tpu_custom_call.1} parent=5 // pred_fallthru
        _
      %p264 = scmp.le.s32.totalorder 1, %s17
      %p265 = scmp.lt.s32.totalorder %s17, 3
      %p266 = pnand %p264, %p265
      %p267 = pneg %p266
      // Predicated region
      $region49: #{tpu_custom_call.1} parent=5 // pred_check
        _
      $region50: #{tpu_custom_call.1} parent=5 // pred_check_branch
        %269 = sbr.rel (%p266) target = $region52
      $region51: #{tpu_custom_call.1} parent=5 // pred_region
        %s270 = ssub.s32 %s17, 1
        %p271 = scmp.lt.s32.totalorder %s22, 1
        %s272 = scalar_select %p271, %s22, 1
        %s273 = smul.addr %s272, 8
        %s274 = smul.addr %s273, 8
        %s275 = scalar_lea.vmem %s0, %s274
        %p276 = pneg %p43
        %p277 = pneg %p40
        %p278 = pneg %p64
        %p279 = pneg %p61
        %p280 = pneg %p85
        %p281 = pneg %p82
        %p282 = pneg %p106
        %p283 = pneg %p103
        %p284 = pneg %p127
        %p285 = pneg %p124
        %p286 = pneg %p148
        %p287 = pneg %p145
        %p288 = pneg %p169
        %p289 = pneg %p166
        %p290 = pneg %p190
        %p291 = pneg %p187
        %p292 = pneg %p216
        %p293 = pneg %p213
        %s294 = sand.u32 %s203, 1
        %s295 = scalar_lea.sflag [#allocation4], %s294
        %s296 = sand.u32 %s203, 1
        %s297 = smul.addr %s296, 64
        %s298 = scalar_lea.vmem [#allocation3], %s297
        %p299 = scmp.lt.s32.totalorder %s22, 1
        %s300 = scalar_select %p299, %s22, 1
        %s301 = smul.addr %s300, 8
        %s302 = smul.addr %s301, 8
        %s303 = scalar_lea.vmem %s0, %s302
        %305 = vst [vmem:[#allocation2] sm:$0xf] 0
        %306 = vst [vmem:[#allocation2 + $0x10] sm:$0xf] 0
        %307 = vst [vmem:[#allocation2 + $0x20] sm:$0xf] 0
        %308 = vst [vmem:[#allocation2 + $0x30] sm:$0xf] 0
        %309 = vst [vmem:[#allocation2 + $0xc] sm:$0xf] 0
        %310 = vst [vmem:[#allocation2 + $0x1c] sm:$0xf] 0
        %311 = vst [vmem:[#allocation2 + $0x2c] sm:$0xf] 0
        %312 = vst [vmem:[#allocation2 + $0x3c] sm:$0xf] 0
        %v313 = vld [vmem:[%s303] sm:$0xff]
        %v314 = vld [vmem:[%s303 + $0x8] sm:$0xff]
        %v315 = vld [vmem:[%s303 + $0x10] sm:$0xff]
        %v316 = vld [vmem:[%s303 + $0x18] sm:$0xff]
        %v317 = vld [vmem:[%s303 + $0x20] sm:$0xff]
        %v318 = vld [vmem:[%s303 + $0x28] sm:$0xff]
        %v319 = vld [vmem:[%s303 + $0x30] sm:$0xff]
        %v320 = vld [vmem:[%s303 + $0x38] sm:$0xff]
        loop: start=0, step=1, limit=2
        $region53: #{tpu_custom_call.1} parent=51 // loop_pre_header
          _
        $region54: #{tpu_custom_call.1} parent=51 // loop_header
          %s322 = sphi 0, %s326
          %p323 = scmp.ge.s32.totalorder %s322, 2
          %v327 = vphi %v313, %v2961
          %v328 = vphi %v314, %v2962
          %v329 = vphi %v315, %v2963
          %v330 = vphi %v316, %v2964
          %v331 = vphi %v317, %v2965
          %v332 = vphi %v318, %v2966
          %v333 = vphi %v319, %v2967
          %v334 = vphi %v320, %v2968
        $region55: #{tpu_custom_call.1} parent=51 // loop_header_branch
          %325 = sbr.rel (%p323) target = $region59
        $region56: #{tpu_custom_call.1} parent=51 // loop_body
          %s335 = smul.u32 %s322, 2
          %v336 = vpack.c.bf16 %v328, %v327
          %v337 = vpack.c.bf16 %v330, %v329
          %v338 = vpack.c.bf16 %v332, %v331
          %v339 = vpack.c.bf16 %v334, %v333
          %340 = vst [vmem:[#allocation2 + $0x4] sm:$0xff] %v336
          %341 = vst [vmem:[#allocation2 + $0x14] sm:$0xff] %v337
          %342 = vst [vmem:[#allocation2 + $0x24] sm:$0xff] %v338
          %343 = vst [vmem:[#allocation2 + $0x34] sm:$0xff] %v339
          %v344 = vld [vmem:[#allocation2] sm:$0xff]
          %v345 = vld [vmem:[#allocation2 + $0x8] sm:$0xf]
          %v346 = vld [vmem:[#allocation2 + $0x10] sm:$0xff]
          %v347 = vld [vmem:[#allocation2 + $0x18] sm:$0xf]
          %v348 = vld [vmem:[#allocation2 + $0x20] sm:$0xff]
          %v349 = vld [vmem:[#allocation2 + $0x28] sm:$0xf]
          %v350 = vld [vmem:[#allocation2 + $0x30] sm:$0xff]
          %v351 = vld [vmem:[#allocation2 + $0x38] sm:$0xf]
          %v352 = vld [vmem:[%s7] sm:$0x3]
          %354 = vst [vmem:[#allocation1] ss:$9 sm:$0xff] %v352
          %v355 = vld [vmem:[#allocation1] sm:$0xff]
          %v356 = vld [vmem:[#allocation1 + $0x9] sm:$0xff]
          %v357 = vpack.i.b16 %v355, %v355
          %v359 = vperm.slane %v357, 0
          %v360 = vpack.i.b16 %v356, %v356
          %v362 = vperm.slane %v360, 0
          %v363 = vunpack.c.l.bf16 %v344
          %v364 = vunpack.c.h.bf16 %v344
          %v365 = vunpack.c.l.bf16 %v345
          %v366 = vunpack.c.l.bf16 %v346
          %v367 = vunpack.c.h.bf16 %v346
          %v368 = vunpack.c.l.bf16 %v347
          %v369 = vunpack.c.l.bf16 %v348
          %v370 = vunpack.c.h.bf16 %v348
          %v371 = vunpack.c.l.bf16 %v349
          %v372 = vunpack.c.l.bf16 %v350
          %v373 = vunpack.c.h.bf16 %v350
          %v374 = vunpack.c.l.bf16 %v351
          %v375 = vunpack.c.l.bf16 %v359
          %v376 = vunpack.c.l.bf16 %v362
          %379 = vrot.lane.b32.xlu0 %v375, 111
          %v380 = vpop.permute.xlu0 %379
          %381 = vrot.lane.b32.xlu0 %v376, 111
          %v382 = vpop.permute.xlu0 %381
          %vm383 = vcmask 908288
          %v384 = vsel %vm383, %v380, %v382
          %v388 = vmul.f32 %v363, %v380
          %v389 = vmul.f32 %v364, %v384
          %v390 = vmul.f32 %v365, %v382
          %v391 = vmul.f32 %v366, %v380
          %v392 = vmul.f32 %v367, %v384
          %v393 = vmul.f32 %v368, %v382
          %v394 = vmul.f32 %v369, %v380
          %v395 = vmul.f32 %v370, %v384
          %v396 = vmul.f32 %v371, %v382
          %v397 = vmul.f32 %v372, %v380
          %v398 = vmul.f32 %v373, %v384
          %v399 = vmul.f32 %v374, %v382
          %v400 = vpack.c.bf16 %v391, %v388
          %v401 = vpack.c.bf16 %v392, %v389
          %v402 = vpack.c.bf16 %v393, %v390
          %v403 = vpack.c.bf16 %v397, %v394
          %v404 = vpack.c.bf16 %v398, %v395
          %v405 = vpack.c.bf16 %v399, %v396
          %s406 = smul.u32 %s322, 18
          %s407 = smul.u32 %s406, 4
          %s408 = smul.addr %s407, 4
          %s409 = scalar_lea.vmem %s1, %s408
          %v410 = vld [vmem:[%s409] sm:$0xf]
          %v411 = vld [vmem:[%s409 + $0x4] sm:$0xf]
          %v412 = vld [vmem:[%s409 + $0x8] sm:$0xf]
          %v413 = vld [vmem:[%s409 + $0xc] sm:$0xf]
          %v414 = vld [vmem:[#allocation2] sm:$0xff]
          %v415 = vld [vmem:[#allocation2 + $0x8] sm:$0xf]
          %v416 = vld [vmem:[#allocation2 + $0x10] sm:$0xff]
          %v417 = vld [vmem:[#allocation2 + $0x18] sm:$0xf]
          %v418 = vld [vmem:[#allocation2 + $0x20] sm:$0xff]
          %v419 = vld [vmem:[#allocation2 + $0x28] sm:$0xf]
          %v420 = vld [vmem:[#allocation2 + $0x30] sm:$0xff]
          %v421 = vld [vmem:[#allocation2 + $0x38] sm:$0xf]
          %s422 = sadd.s32 %s406, 1
          %s423 = smul.u32 %s422, 4
          %s424 = smul.addr %s423, 4
          %s425 = scalar_lea.vmem %s1, %s424
          %v426 = vld [vmem:[%s425] sm:$0xf]
          %v427 = vld [vmem:[%s425 + $0x4] sm:$0xf]
          %v428 = vld [vmem:[%s425 + $0x8] sm:$0xf]
          %v429 = vld [vmem:[%s425 + $0xc] sm:$0xf]
          %v434 = vunpack.c.l.b16 %v426
          %v435 = vunpack.c.l.b16 %v427
          %v436 = vunpack.c.l.b16 %v428
          %v437 = vunpack.c.l.b16 %v429
          %v438 = vpack.c.b16 %v435, %v434
          %v439 = vpack.c.b16 %v437, %v436
          %v448 = vunpack.c.l.b16 %v414
          %v449 = vunpack.c.h.b16 %v414
          %v450 = vunpack.c.l.b16 %v415
          %v451 = vunpack.c.l.b16 %v416
          %v452 = vunpack.c.h.b16 %v416
          %v453 = vunpack.c.l.b16 %v417
          %v454 = vunpack.c.l.b16 %v418
          %v455 = vunpack.c.h.b16 %v418
          %v456 = vunpack.c.l.b16 %v419
          %v457 = vunpack.c.l.b16 %v420
          %v458 = vunpack.c.h.b16 %v420
          %v459 = vunpack.c.l.b16 %v421
          %v460 = vpack.c.b16 %v451, %v448
          %v461 = vpack.c.b16 %v452, %v449
          %v462 = vpack.c.b16 %v453, %v450
          %v463 = vpack.c.b16 %v457, %v454
          %v464 = vpack.c.b16 %v458, %v455
          %v465 = vpack.c.b16 %v459, %v456
          %466 = vrot.lane.b32.xlu0 %v460, 16
          %v467 = vpop.permute.xlu0 %466
          %468 = vrot.lane.b32.xlu0 %v461, 16
          %v469 = vpop.permute.xlu0 %468
          %470 = vrot.lane.b32.xlu0 %v462, 16
          %v471 = vpop.permute.xlu0 %470
          %472 = vrot.lane.b32.xlu0 %v463, 16
          %v473 = vpop.permute.xlu0 %472
          %474 = vrot.lane.b32.xlu0 %v464, 16
          %v475 = vpop.permute.xlu0 %474
          %476 = vrot.lane.b32.xlu0 %v465, 16
          %v477 = vpop.permute.xlu0 %476
          %vm478 = vcmask 130048
          %v479 = vsel %vm478, %v467, %v469
          %v480 = vsel %vm478, %v469, %v471
          %v481 = vsel %vm478, %v473, %v475
          %v482 = vsel %vm478, %v475, %v477
          %vm487 = vcmask 261120
          %v489 = vsel %vm487, %v438, 0
          %v492 = vsel %vm487, %v439, 0
          %494 = vmatpush.bf16.msra.mxu0 0
          %495 = vmatpush.bf16.msra.mxu0 0
          %496 = vmatpush.bf16.msra.mxu0 0
          %497 = vmatpush.bf16.msra.mxu0 0
          %498 = vmatpush.bf16.msra.mxu0 0
          %499 = vmatpush.bf16.msra.mxu0 0
          %500 = vmatpush.bf16.msra.mxu0 %v481
          %501 = vmatpush.bf16.msra.mxu0 %v479
          %502 = vmatmul.bf16.gmra.mxu0 %v489
          %v503 = vpop.f32.mrf.mxu0
          %v504 = vadd.f32 0.0, %v503
          %v505 = vpop.f32.mrf.mxu0
          %v506 = vadd.f32 0.0, %v505
          %507 = vmatmul.bf16.gmra.mxu0 %v492
          %v508 = vpop.f32.mrf.mxu0
          %v509 = vadd.f32 0.0, %v508
          %v510 = vpop.f32.mrf.mxu0
          %v511 = vadd.f32 0.0, %v510
          %512 = vdwg.mxu0
          %513 = vmatpush.bf16.msra.mxu0 0
          %514 = vmatpush.bf16.msra.mxu0 0
          %515 = vmatpush.bf16.msra.mxu0 0
          %516 = vmatpush.bf16.msra.mxu0 0
          %517 = vmatpush.bf16.msra.mxu0 0
          %518 = vmatpush.bf16.msra.mxu0 0
          %519 = vmatpush.bf16.msra.mxu0 %v482
          %520 = vmatpush.bf16.msra.mxu0 %v480
          %521 = vmatmul.bf16.gmra.mxu0 %v489
          %v522 = vpop.f32.mrf.mxu0
          %v523 = vadd.f32 0.0, %v522
          %v524 = vpop.f32.mrf.mxu0
          %v525 = vadd.f32 0.0, %v524
          %526 = vmatmul.bf16.gmra.mxu0 %v492
          %v527 = vpop.f32.mrf.mxu0
          %v528 = vadd.f32 0.0, %v527
          %v529 = vpop.f32.mrf.mxu0
          %v530 = vadd.f32 0.0, %v529
          %531 = vdwg.mxu0
          %v536 = vunpack.c.l.b16 %v410
          %v537 = vunpack.c.l.b16 %v411
          %v538 = vunpack.c.l.b16 %v412
          %v539 = vunpack.c.l.b16 %v413
          %v540 = vpack.c.b16 %v537, %v536
          %v541 = vpack.c.b16 %v539, %v538
          %548 = vrot.lane.b32.xlu0 %v400, 17
          %v549 = vpop.permute.xlu0 %548
          %550 = vrot.lane.b32.xlu0 %v401, 17
          %v551 = vpop.permute.xlu0 %550
          %552 = vrot.lane.b32.xlu0 %v402, 17
          %v553 = vpop.permute.xlu0 %552
          %554 = vrot.lane.b32.xlu0 %v403, 17
          %v555 = vpop.permute.xlu0 %554
          %556 = vrot.lane.b32.xlu0 %v404, 17
          %v557 = vpop.permute.xlu0 %556
          %558 = vrot.lane.b32.xlu0 %v405, 17
          %v559 = vpop.permute.xlu0 %558
          %vm560 = vcmask 138240
          %v561 = vsel %vm560, %v549, %v551
          %v562 = vsel %vm560, %v551, %v553
          %v563 = vsel %vm560, %v555, %v557
          %v564 = vsel %vm560, %v557, %v559
          %v570 = vsel %vm487, %v540, 0
          %v573 = vsel %vm487, %v541, 0
          %575 = vmatpush.bf16.msra.mxu0 0
          %576 = vmatpush.bf16.msra.mxu0 0
          %577 = vmatpush.bf16.msra.mxu0 0
          %578 = vmatpush.bf16.msra.mxu0 0
          %579 = vmatpush.bf16.msra.mxu0 0
          %580 = vmatpush.bf16.msra.mxu0 0
          %581 = vmatpush.bf16.msra.mxu0 %v563
          %582 = vmatpush.bf16.msra.mxu0 %v561
          %583 = vmatmul.bf16.gmra.mxu0 %v570
          %v584 = vpop.f32.mrf.mxu0
          %v585 = vadd.f32 %v504, %v584
          %v586 = vpop.f32.mrf.mxu0
          %v587 = vadd.f32 %v506, %v586
          %588 = vmatmul.bf16.gmra.mxu0 %v573
          %v589 = vpop.f32.mrf.mxu0
          %v590 = vadd.f32 %v509, %v589
          %v591 = vpop.f32.mrf.mxu0
          %v592 = vadd.f32 %v511, %v591
          %593 = vdwg.mxu0
          %594 = vmatpush.bf16.msra.mxu0 0
          %595 = vmatpush.bf16.msra.mxu0 0
          %596 = vmatpush.bf16.msra.mxu0 0
          %597 = vmatpush.bf16.msra.mxu0 0
          %598 = vmatpush.bf16.msra.mxu0 0
          %599 = vmatpush.bf16.msra.mxu0 0
          %600 = vmatpush.bf16.msra.mxu0 %v564
          %601 = vmatpush.bf16.msra.mxu0 %v562
          %602 = vmatmul.bf16.gmra.mxu0 %v570
          %v603 = vpop.f32.mrf.mxu0
          %v604 = vadd.f32 %v523, %v603
          %v605 = vpop.f32.mrf.mxu0
          %v606 = vadd.f32 %v525, %v605
          %607 = vmatmul.bf16.gmra.mxu0 %v573
          %v608 = vpop.f32.mrf.mxu0
          %v609 = vadd.f32 %v528, %v608
          %v610 = vpop.f32.mrf.mxu0
          %v611 = vadd.f32 %v530, %v610
          %612 = vdwg.mxu0
          %s613 = scalar_lea.vmem %s7, 2
          %v614 = vld [vmem:[%s613] sm:$0x3]
          %616 = vst [vmem:[#allocation1] ss:$9 sm:$0xff] %v614
          %v617 = vld [vmem:[#allocation1] sm:$0xff]
          %v618 = vld [vmem:[#allocation1 + $0x9] sm:$0xff]
          %v619 = vpack.i.b16 %v617, %v617
          %v621 = vperm.slane %v619, 0
          %v622 = vpack.i.b16 %v618, %v618
          %v624 = vperm.slane %v622, 0
          %v625 = vunpack.c.l.bf16 %v414
          %v626 = vunpack.c.h.bf16 %v414
          %v627 = vunpack.c.l.bf16 %v415
          %v628 = vunpack.c.l.bf16 %v416
          %v629 = vunpack.c.h.bf16 %v416
          %v630 = vunpack.c.l.bf16 %v417
          %v631 = vunpack.c.l.bf16 %v418
          %v632 = vunpack.c.h.bf16 %v418
          %v633 = vunpack.c.l.bf16 %v419
          %v634 = vunpack.c.l.bf16 %v420
          %v635 = vunpack.c.h.bf16 %v420
          %v636 = vunpack.c.l.bf16 %v421
          %v637 = vunpack.c.l.bf16 %v621
          %v638 = vunpack.c.l.bf16 %v624
          %641 = vrot.lane.b32.xlu0 %v637, 113
          %v642 = vpop.permute.xlu0 %641
          %643 = vrot.lane.b32.xlu0 %v638, 113
          %v644 = vpop.permute.xlu0 %643
          %vm645 = vcmask 924672
          %v646 = vsel %vm645, %v642, %v644
          %v650 = vmul.f32 %v625, %v642
          %v651 = vmul.f32 %v626, %v646
          %v652 = vmul.f32 %v627, %v644
          %v653 = vmul.f32 %v628, %v642
          %v654 = vmul.f32 %v629, %v646
          %v655 = vmul.f32 %v630, %v644
          %v656 = vmul.f32 %v631, %v642
          %v657 = vmul.f32 %v632, %v646
          %v658 = vmul.f32 %v633, %v644
          %v659 = vmul.f32 %v634, %v642
          %v660 = vmul.f32 %v635, %v646
          %v661 = vmul.f32 %v636, %v644
          %v662 = vpack.c.bf16 %v653, %v650
          %v663 = vpack.c.bf16 %v654, %v651
          %v664 = vpack.c.bf16 %v655, %v652
          %v665 = vpack.c.bf16 %v659, %v656
          %v666 = vpack.c.bf16 %v660, %v657
          %v667 = vpack.c.bf16 %v661, %v658
          %s668 = sadd.s32 %s406, 2
          %s669 = smul.u32 %s668, 4
          %s670 = smul.addr %s669, 4
          %s671 = scalar_lea.vmem %s1, %s670
          %v672 = vld [vmem:[%s671] sm:$0xf]
          %v673 = vld [vmem:[%s671 + $0x4] sm:$0xf]
          %v674 = vld [vmem:[%s671 + $0x8] sm:$0xf]
          %v675 = vld [vmem:[%s671 + $0xc] sm:$0xf]
          %v680 = vunpack.c.l.b16 %v672
          %v681 = vunpack.c.l.b16 %v673
          %v682 = vunpack.c.l.b16 %v674
          %v683 = vunpack.c.l.b16 %v675
          %v684 = vpack.c.b16 %v681, %v680
          %v685 = vpack.c.b16 %v683, %v682
          %692 = vrot.lane.b32.xlu0 %v662, 15
          %v693 = vpop.permute.xlu0 %692
          %694 = vrot.lane.b32.xlu0 %v663, 15
          %v695 = vpop.permute.xlu0 %694
          %696 = vrot.lane.b32.xlu0 %v664, 15
          %v697 = vpop.permute.xlu0 %696
          %698 = vrot.lane.b32.xlu0 %v665, 15
          %v699 = vpop.permute.xlu0 %698
          %700 = vrot.lane.b32.xlu0 %v666, 15
          %v701 = vpop.permute.xlu0 %700
          %702 = vrot.lane.b32.xlu0 %v667, 15
          %v703 = vpop.permute.xlu0 %702
          %vm704 = vcmask 121856
          %v705 = vsel %vm704, %v693, %v695
          %v706 = vsel %vm704, %v695, %v697
          %v707 = vsel %vm704, %v699, %v701
          %v708 = vsel %vm704, %v701, %v703
          %v714 = vsel %vm487, %v684, 0
          %v717 = vsel %vm487, %v685, 0
          %719 = vmatpush.bf16.msra.mxu0 0
          %720 = vmatpush.bf16.msra.mxu0 0
          %721 = vmatpush.bf16.msra.mxu0 0
          %722 = vmatpush.bf16.msra.mxu0 0
          %723 = vmatpush.bf16.msra.mxu0 0
          %724 = vmatpush.bf16.msra.mxu0 0
          %725 = vmatpush.bf16.msra.mxu0 %v707
          %726 = vmatpush.bf16.msra.mxu0 %v705
          %727 = vmatmul.bf16.gmra.mxu0 %v714
          %v728 = vpop.f32.mrf.mxu0
          %v729 = vadd.f32 0.0, %v728
          %v730 = vpop.f32.mrf.mxu0
          %v731 = vadd.f32 0.0, %v730
          %732 = vmatmul.bf16.gmra.mxu0 %v717
          %v733 = vpop.f32.mrf.mxu0
          %v734 = vadd.f32 0.0, %v733
          %v735 = vpop.f32.mrf.mxu0
          %v736 = vadd.f32 0.0, %v735
          %737 = vdwg.mxu0
          %738 = vmatpush.bf16.msra.mxu0 0
          %739 = vmatpush.bf16.msra.mxu0 0
          %740 = vmatpush.bf16.msra.mxu0 0
          %741 = vmatpush.bf16.msra.mxu0 0
          %742 = vmatpush.bf16.msra.mxu0 0
          %743 = vmatpush.bf16.msra.mxu0 0
          %744 = vmatpush.bf16.msra.mxu0 %v708
          %745 = vmatpush.bf16.msra.mxu0 %v706
          %746 = vmatmul.bf16.gmra.mxu0 %v714
          %v747 = vpop.f32.mrf.mxu0
          %v748 = vadd.f32 0.0, %v747
          %v749 = vpop.f32.mrf.mxu0
          %v750 = vadd.f32 0.0, %v749
          %751 = vmatmul.bf16.gmra.mxu0 %v717
          %v752 = vpop.f32.mrf.mxu0
          %v753 = vadd.f32 0.0, %v752
          %v754 = vpop.f32.mrf.mxu0
          %v755 = vadd.f32 0.0, %v754
          %756 = vdwg.mxu0
          %v757 = vadd.f32 %v585, %v729
          %v758 = vadd.f32 %v604, %v748
          %v759 = vadd.f32 %v587, %v731
          %v760 = vadd.f32 %v606, %v750
          %v761 = vadd.f32 %v590, %v734
          %v762 = vadd.f32 %v609, %v753
          %v763 = vadd.f32 %v592, %v736
          %v764 = vadd.f32 %v611, %v755
          %v765 = vld [vmem:[#allocation2] sm:$0xff]
          %v766 = vld [vmem:[#allocation2 + $0x8] sm:$0xf]
          %v767 = vld [vmem:[#allocation2 + $0x10] sm:$0xff]
          %v768 = vld [vmem:[#allocation2 + $0x18] sm:$0xf]
          %v769 = vld [vmem:[#allocation2 + $0x20] sm:$0xff]
          %v770 = vld [vmem:[#allocation2 + $0x28] sm:$0xf]
          %v771 = vld [vmem:[#allocation2 + $0x30] sm:$0xff]
          %v772 = vld [vmem:[#allocation2 + $0x38] sm:$0xf]
          %v773 = vunpack.c.l.bf16 %v765
          %v774 = vunpack.c.h.bf16 %v765
          %v775 = vunpack.c.l.bf16 %v766
          %v776 = vunpack.c.l.bf16 %v767
          %v777 = vunpack.c.h.bf16 %v767
          %v778 = vunpack.c.l.bf16 %v768
          %v779 = vunpack.c.l.bf16 %v769
          %v780 = vunpack.c.h.bf16 %v769
          %v781 = vunpack.c.l.bf16 %v770
          %v782 = vunpack.c.l.bf16 %v771
          %v783 = vunpack.c.h.bf16 %v771
          %v784 = vunpack.c.l.bf16 %v772
          %785 = vrot.lane.b32.xlu0 %v375, 127
          %v786 = vpop.permute.xlu0 %785
          %787 = vrot.lane.b32.xlu0 %v376, 127
          %v788 = vpop.permute.xlu0 %787
          %vm789 = vcmask 1039360
          %v790 = vsel %vm789, %v786, %v788
          %v794 = vmul.f32 %v773, %v786
          %v795 = vmul.f32 %v774, %v790
          %v796 = vmul.f32 %v775, %v788
          %v797 = vmul.f32 %v776, %v786
          %v798 = vmul.f32 %v777, %v790
          %v799 = vmul.f32 %v778, %v788
          %v800 = vmul.f32 %v779, %v786
          %v801 = vmul.f32 %v780, %v790
          %v802 = vmul.f32 %v781, %v788
          %v803 = vmul.f32 %v782, %v786
          %v804 = vmul.f32 %v783, %v790
          %v805 = vmul.f32 %v784, %v788
          %v806 = vpack.c.bf16 %v797, %v794
          %v807 = vpack.c.bf16 %v798, %v795
          %v808 = vpack.c.bf16 %v799, %v796
          %v809 = vpack.c.bf16 %v803, %v800
          %v810 = vpack.c.bf16 %v804, %v801
          %v811 = vpack.c.bf16 %v805, %v802
          %s812 = sadd.s32 %s406, 3
          %s813 = smul.u32 %s812, 4
          %s814 = smul.addr %s813, 4
          %s815 = scalar_lea.vmem %s1, %s814
          %v816 = vld [vmem:[%s815] sm:$0xf]
          %v817 = vld [vmem:[%s815 + $0x4] sm:$0xf]
          %v818 = vld [vmem:[%s815 + $0x8] sm:$0xf]
          %v819 = vld [vmem:[%s815 + $0xc] sm:$0xf]
          %v824 = vunpack.c.l.b16 %v816
          %v825 = vunpack.c.l.b16 %v817
          %v826 = vunpack.c.l.b16 %v818
          %v827 = vunpack.c.l.b16 %v819
          %v828 = vpack.c.b16 %v825, %v824
          %v829 = vpack.c.b16 %v827, %v826
          %836 = vrot.lane.b32.xlu0 %v806, 1
          %v837 = vpop.permute.xlu0 %836
          %838 = vrot.lane.b32.xlu0 %v807, 1
          %v839 = vpop.permute.xlu0 %838
          %840 = vrot.lane.b32.xlu0 %v808, 1
          %v841 = vpop.permute.xlu0 %840
          %842 = vrot.lane.b32.xlu0 %v809, 1
          %v843 = vpop.permute.xlu0 %842
          %844 = vrot.lane.b32.xlu0 %v810, 1
          %v845 = vpop.permute.xlu0 %844
          %846 = vrot.lane.b32.xlu0 %v811, 1
          %v847 = vpop.permute.xlu0 %846
          %vm848 = vcmask 7168
          %v849 = vsel %vm848, %v837, %v839
          %v850 = vsel %vm848, %v839, %v841
          %v851 = vsel %vm848, %v843, %v845
          %v852 = vsel %vm848, %v845, %v847
          %v858 = vsel %vm487, %v828, 0
          %v861 = vsel %vm487, %v829, 0
          %863 = vmatpush.bf16.msra.mxu0 0
          %864 = vmatpush.bf16.msra.mxu0 0
          %865 = vmatpush.bf16.msra.mxu0 0
          %866 = vmatpush.bf16.msra.mxu0 0
          %867 = vmatpush.bf16.msra.mxu0 0
          %868 = vmatpush.bf16.msra.mxu0 0
          %869 = vmatpush.bf16.msra.mxu0 %v851
          %870 = vmatpush.bf16.msra.mxu0 %v849
          %871 = vmatmul.bf16.gmra.mxu0 %v858
          %v872 = vpop.f32.mrf.mxu0
          %v873 = vadd.f32 0.0, %v872
          %v874 = vpop.f32.mrf.mxu0
          %v875 = vadd.f32 0.0, %v874
          %876 = vmatmul.bf16.gmra.mxu0 %v861
          %v877 = vpop.f32.mrf.mxu0
          %v878 = vadd.f32 0.0, %v877
          %v879 = vpop.f32.mrf.mxu0
          %v880 = vadd.f32 0.0, %v879
          %881 = vdwg.mxu0
          %882 = vmatpush.bf16.msra.mxu0 0
          %883 = vmatpush.bf16.msra.mxu0 0
          %884 = vmatpush.bf16.msra.mxu0 0
          %885 = vmatpush.bf16.msra.mxu0 0
          %886 = vmatpush.bf16.msra.mxu0 0
          %887 = vmatpush.bf16.msra.mxu0 0
          %888 = vmatpush.bf16.msra.mxu0 %v852
          %889 = vmatpush.bf16.msra.mxu0 %v850
          %890 = vmatmul.bf16.gmra.mxu0 %v858
          %v891 = vpop.f32.mrf.mxu0
          %v892 = vadd.f32 0.0, %v891
          %v893 = vpop.f32.mrf.mxu0
          %v894 = vadd.f32 0.0, %v893
          %895 = vmatmul.bf16.gmra.mxu0 %v861
          %v896 = vpop.f32.mrf.mxu0
          %v897 = vadd.f32 0.0, %v896
          %v898 = vpop.f32.mrf.mxu0
          %v899 = vadd.f32 0.0, %v898
          %900 = vdwg.mxu0
          %v901 = vadd.f32 %v757, %v873
          %v902 = vadd.f32 %v758, %v892
          %v903 = vadd.f32 %v759, %v875
          %v904 = vadd.f32 %v760, %v894
          %v905 = vadd.f32 %v761, %v878
          %v906 = vadd.f32 %v762, %v897
          %v907 = vadd.f32 %v763, %v880
          %v908 = vadd.f32 %v764, %v899
          %v909 = vld [vmem:[#allocation2 + $0x4] sm:$0xff]
          %v910 = vld [vmem:[#allocation2 + $0x14] sm:$0xff]
          %v911 = vld [vmem:[#allocation2 + $0x24] sm:$0xff]
          %v912 = vld [vmem:[#allocation2 + $0x34] sm:$0xff]
          %s913 = sadd.s32 %s406, 4
          %s914 = smul.u32 %s913, 4
          %s915 = smul.addr %s914, 4
          %s916 = scalar_lea.vmem %s1, %s915
          %v917 = vld [vmem:[%s916] sm:$0xf]
          %v918 = vld [vmem:[%s916 + $0x4] sm:$0xf]
          %v919 = vld [vmem:[%s916 + $0x8] sm:$0xf]
          %v920 = vld [vmem:[%s916 + $0xc] sm:$0xf]
          %v925 = vunpack.c.l.b16 %v917
          %v926 = vunpack.c.l.b16 %v918
          %v927 = vunpack.c.l.b16 %v919
          %v928 = vunpack.c.l.b16 %v920
          %v929 = vpack.c.b16 %v926, %v925
          %v930 = vpack.c.b16 %v928, %v927
          %v935 = vunpack.c.l.b16 %v909
          %v936 = vunpack.c.h.b16 %v909
          %v937 = vunpack.c.l.b16 %v910
          %v938 = vunpack.c.h.b16 %v910
          %v939 = vunpack.c.l.b16 %v911
          %v940 = vunpack.c.h.b16 %v911
          %v941 = vunpack.c.l.b16 %v912
          %v942 = vunpack.c.h.b16 %v912
          %v943 = vpack.c.b16 %v937, %v935
          %v944 = vpack.c.b16 %v938, %v936
          %v945 = vpack.c.b16 %v941, %v939
          %v946 = vpack.c.b16 %v942, %v940
          %v952 = vsel %vm487, %v929, 0
          %v955 = vsel %vm487, %v930, 0
          %957 = vmatpush.bf16.msra.mxu0 0
          %958 = vmatpush.bf16.msra.mxu0 0
          %959 = vmatpush.bf16.msra.mxu0 0
          %960 = vmatpush.bf16.msra.mxu0 0
          %961 = vmatpush.bf16.msra.mxu0 0
          %962 = vmatpush.bf16.msra.mxu0 0
          %963 = vmatpush.bf16.msra.mxu0 %v945
          %964 = vmatpush.bf16.msra.mxu0 %v943
          %965 = vmatmul.bf16.gmra.mxu0 %v952
          %v966 = vpop.f32.mrf.mxu0
          %v967 = vadd.f32 0.0, %v966
          %v968 = vpop.f32.mrf.mxu0
          %v969 = vadd.f32 0.0, %v968
          %970 = vmatmul.bf16.gmra.mxu0 %v955
          %v971 = vpop.f32.mrf.mxu0
          %v972 = vadd.f32 0.0, %v971
          %v973 = vpop.f32.mrf.mxu0
          %v974 = vadd.f32 0.0, %v973
          %975 = vdwg.mxu0
          %976 = vmatpush.bf16.msra.mxu0 0
          %977 = vmatpush.bf16.msra.mxu0 0
          %978 = vmatpush.bf16.msra.mxu0 0
          %979 = vmatpush.bf16.msra.mxu0 0
          %980 = vmatpush.bf16.msra.mxu0 0
          %981 = vmatpush.bf16.msra.mxu0 0
          %982 = vmatpush.bf16.msra.mxu0 %v946
          %983 = vmatpush.bf16.msra.mxu0 %v944
          %984 = vmatmul.bf16.gmra.mxu0 %v952
          %v985 = vpop.f32.mrf.mxu0
          %v986 = vadd.f32 0.0, %v985
          %v987 = vpop.f32.mrf.mxu0
          %v988 = vadd.f32 0.0, %v987
          %989 = vmatmul.bf16.gmra.mxu0 %v955
          %v990 = vpop.f32.mrf.mxu0
          %v991 = vadd.f32 0.0, %v990
          %v992 = vpop.f32.mrf.mxu0
          %v993 = vadd.f32 0.0, %v992
          %994 = vdwg.mxu0
          %v995 = vadd.f32 %v901, %v967
          %v996 = vadd.f32 %v902, %v986
          %v997 = vadd.f32 %v903, %v969
          %v998 = vadd.f32 %v904, %v988
          %v999 = vadd.f32 %v905, %v972
          %v1000 = vadd.f32 %v906, %v991
          %v1001 = vadd.f32 %v907, %v974
          %v1002 = vadd.f32 %v908, %v993
          %v1003 = vld [vmem:[#allocation2 + $0x4] sm:$0xff]
          %v1004 = vld [vmem:[#allocation2 + $0xc] sm:$0xf]
          %v1005 = vld [vmem:[#allocation2 + $0x14] sm:$0xff]
          %v1006 = vld [vmem:[#allocation2 + $0x1c] sm:$0xf]
          %v1007 = vld [vmem:[#allocation2 + $0x24] sm:$0xff]
          %v1008 = vld [vmem:[#allocation2 + $0x2c] sm:$0xf]
          %v1009 = vld [vmem:[#allocation2 + $0x34] sm:$0xff]
          %v1010 = vld [vmem:[#allocation2 + $0x3c] sm:$0xf]
          %v1011 = vunpack.c.l.bf16 %v1003
          %v1012 = vunpack.c.h.bf16 %v1003
          %v1013 = vunpack.c.l.bf16 %v1004
          %v1014 = vunpack.c.l.bf16 %v1005
          %v1015 = vunpack.c.h.bf16 %v1005
          %v1016 = vunpack.c.l.bf16 %v1006
          %v1017 = vunpack.c.l.bf16 %v1007
          %v1018 = vunpack.c.h.bf16 %v1007
          %v1019 = vunpack.c.l.bf16 %v1008
          %v1020 = vunpack.c.l.bf16 %v1009
          %v1021 = vunpack.c.h.bf16 %v1009
          %v1022 = vunpack.c.l.bf16 %v1010
          %1023 = vrot.lane.b32.xlu0 %v637, 1
          %v1024 = vpop.permute.xlu0 %1023
          %1025 = vrot.lane.b32.xlu0 %v638, 1
          %v1026 = vpop.permute.xlu0 %1025
          %vm1027 = vcmask 7168
          %v1028 = vsel %vm1027, %v1024, %v1026
          %v1032 = vmul.f32 %v1011, %v1024
          %v1033 = vmul.f32 %v1012, %v1028
          %v1034 = vmul.f32 %v1013, %v1026
          %v1035 = vmul.f32 %v1014, %v1024
          %v1036 = vmul.f32 %v1015, %v1028
          %v1037 = vmul.f32 %v1016, %v1026
          %v1038 = vmul.f32 %v1017, %v1024
          %v1039 = vmul.f32 %v1018, %v1028
          %v1040 = vmul.f32 %v1019, %v1026
          %v1041 = vmul.f32 %v1020, %v1024
          %v1042 = vmul.f32 %v1021, %v1028
          %v1043 = vmul.f32 %v1022, %v1026
          %v1044 = vpack.c.bf16 %v1035, %v1032
          %v1045 = vpack.c.bf16 %v1036, %v1033
          %v1046 = vpack.c.bf16 %v1037, %v1034
          %v1047 = vpack.c.bf16 %v1041, %v1038
          %v1048 = vpack.c.bf16 %v1042, %v1039
          %v1049 = vpack.c.bf16 %v1043, %v1040
          %s1050 = sadd.s32 %s406, 5
          %s1051 = smul.u32 %s1050, 4
          %s1052 = smul.addr %s1051, 4
          %s1053 = scalar_lea.vmem %s1, %s1052
          %v1054 = vld [vmem:[%s1053] sm:$0xf]
          %v1055 = vld [vmem:[%s1053 + $0x4] sm:$0xf]
          %v1056 = vld [vmem:[%s1053 + $0x8] sm:$0xf]
          %v1057 = vld [vmem:[%s1053 + $0xc] sm:$0xf]
          %v1062 = vunpack.c.l.b16 %v1054
          %v1063 = vunpack.c.l.b16 %v1055
          %v1064 = vunpack.c.l.b16 %v1056
          %v1065 = vunpack.c.l.b16 %v1057
          %v1066 = vpack.c.b16 %v1063, %v1062
          %v1067 = vpack.c.b16 %v1065, %v1064
          %1074 = vrot.lane.b32.xlu0 %v1044, 127
          %v1075 = vpop.permute.xlu0 %1074
          %1076 = vrot.lane.b32.xlu0 %v1045, 127
          %v1077 = vpop.permute.xlu0 %1076
          %1078 = vrot.lane.b32.xlu0 %v1046, 127
          %v1079 = vpop.permute.xlu0 %1078
          %1080 = vrot.lane.b32.xlu0 %v1047, 127
          %v1081 = vpop.permute.xlu0 %1080
          %1082 = vrot.lane.b32.xlu0 %v1048, 127
          %v1083 = vpop.permute.xlu0 %1082
          %1084 = vrot.lane.b32.xlu0 %v1049, 127
          %v1085 = vpop.permute.xlu0 %1084
          %vm1086 = vcmask 1039360
          %v1087 = vsel %vm1086, %v1075, %v1077
          %v1088 = vsel %vm1086, %v1077, %v1079
          %v1089 = vsel %vm1086, %v1081, %v1083
          %v1090 = vsel %vm1086, %v1083, %v1085
          %v1096 = vsel %vm487, %v1066, 0
          %v1099 = vsel %vm487, %v1067, 0
          %1101 = vmatpush.bf16.msra.mxu0 0
          %1102 = vmatpush.bf16.msra.mxu0 0
          %1103 = vmatpush.bf16.msra.mxu0 0
          %1104 = vmatpush.bf16.msra.mxu0 0
          %1105 = vmatpush.bf16.msra.mxu0 0
          %1106 = vmatpush.bf16.msra.mxu0 0
          %1107 = vmatpush.bf16.msra.mxu0 %v1089
          %1108 = vmatpush.bf16.msra.mxu0 %v1087
          %1109 = vmatmul.bf16.gmra.mxu0 %v1096
          %v1110 = vpop.f32.mrf.mxu0
          %v1111 = vadd.f32 0.0, %v1110
          %v1112 = vpop.f32.mrf.mxu0
          %v1113 = vadd.f32 0.0, %v1112
          %1114 = vmatmul.bf16.gmra.mxu0 %v1099
          %v1115 = vpop.f32.mrf.mxu0
          %v1116 = vadd.f32 0.0, %v1115
          %v1117 = vpop.f32.mrf.mxu0
          %v1118 = vadd.f32 0.0, %v1117
          %1119 = vdwg.mxu0
          %1120 = vmatpush.bf16.msra.mxu0 0
          %1121 = vmatpush.bf16.msra.mxu0 0
          %1122 = vmatpush.bf16.msra.mxu0 0
          %1123 = vmatpush.bf16.msra.mxu0 0
          %1124 = vmatpush.bf16.msra.mxu0 0
          %1125 = vmatpush.bf16.msra.mxu0 0
          %1126 = vmatpush.bf16.msra.mxu0 %v1090
          %1127 = vmatpush.bf16.msra.mxu0 %v1088
          %1128 = vmatmul.bf16.gmra.mxu0 %v1096
          %v1129 = vpop.f32.mrf.mxu0
          %v1130 = vadd.f32 0.0, %v1129
          %v1131 = vpop.f32.mrf.mxu0
          %v1132 = vadd.f32 0.0, %v1131
          %1133 = vmatmul.bf16.gmra.mxu0 %v1099
          %v1134 = vpop.f32.mrf.mxu0
          %v1135 = vadd.f32 0.0, %v1134
          %v1136 = vpop.f32.mrf.mxu0
          %v1137 = vadd.f32 0.0, %v1136
          %1138 = vdwg.mxu0
          %v1139 = vadd.f32 %v995, %v1111
          %v1140 = vadd.f32 %v996, %v1130
          %v1141 = vadd.f32 %v997, %v1113
          %v1142 = vadd.f32 %v998, %v1132
          %v1143 = vadd.f32 %v999, %v1116
          %v1144 = vadd.f32 %v1000, %v1135
          %v1145 = vadd.f32 %v1001, %v1118
          %v1146 = vadd.f32 %v1002, %v1137
          %1147 = vrot.lane.b32.xlu0 %v375, 15
          %v1148 = vpop.permute.xlu0 %1147
          %1149 = vrot.lane.b32.xlu0 %v376, 15
          %v1150 = vpop.permute.xlu0 %1149
          %vm1151 = vcmask 121856
          %v1152 = vsel %vm1151, %v1148, %v1150
          %v1156 = vmul.f32 %v1011, %v1148
          %v1157 = vmul.f32 %v1012, %v1152
          %v1158 = vmul.f32 %v1013, %v1150
          %v1159 = vmul.f32 %v1014, %v1148
          %v1160 = vmul.f32 %v1015, %v1152
          %v1161 = vmul.f32 %v1016, %v1150
          %v1162 = vmul.f32 %v1017, %v1148
          %v1163 = vmul.f32 %v1018, %v1152
          %v1164 = vmul.f32 %v1019, %v1150
          %v1165 = vmul.f32 %v1020, %v1148
          %v1166 = vmul.f32 %v1021, %v1152
          %v1167 = vmul.f32 %v1022, %v1150
          %v1168 = vpack.c.bf16 %v1159, %v1156
          %v1169 = vpack.c.bf16 %v1160, %v1157
          %v1170 = vpack.c.bf16 %v1161, %v1158
          %v1171 = vpack.c.bf16 %v1165, %v1162
          %v1172 = vpack.c.bf16 %v1166, %v1163
          %v1173 = vpack.c.bf16 %v1167, %v1164
          %s1174 = sadd.s32 %s406, 6
          %s1175 = smul.u32 %s1174, 4
          %s1176 = smul.addr %s1175, 4
          %s1177 = scalar_lea.vmem %s1, %s1176
          %v1178 = vld [vmem:[%s1177] sm:$0xf]
          %v1179 = vld [vmem:[%s1177 + $0x4] sm:$0xf]
          %v1180 = vld [vmem:[%s1177 + $0x8] sm:$0xf]
          %v1181 = vld [vmem:[%s1177 + $0xc] sm:$0xf]
          %v1186 = vunpack.c.l.b16 %v1178
          %v1187 = vunpack.c.l.b16 %v1179
          %v1188 = vunpack.c.l.b16 %v1180
          %v1189 = vunpack.c.l.b16 %v1181
          %v1190 = vpack.c.b16 %v1187, %v1186
          %v1191 = vpack.c.b16 %v1189, %v1188
          %1198 = vrot.lane.b32.xlu0 %v1168, 113
          %v1199 = vpop.permute.xlu0 %1198
          %1200 = vrot.lane.b32.xlu0 %v1169, 113
          %v1201 = vpop.permute.xlu0 %1200
          %1202 = vrot.lane.b32.xlu0 %v1170, 113
          %v1203 = vpop.permute.xlu0 %1202
          %1204 = vrot.lane.b32.xlu0 %v1171, 113
          %v1205 = vpop.permute.xlu0 %1204
          %1206 = vrot.lane.b32.xlu0 %v1172, 113
          %v1207 = vpop.permute.xlu0 %1206
          %1208 = vrot.lane.b32.xlu0 %v1173, 113
          %v1209 = vpop.permute.xlu0 %1208
          %vm1210 = vcmask 924672
          %v1211 = vsel %vm1210, %v1199, %v1201
          %v1212 = vsel %vm1210, %v1201, %v1203
          %v1213 = vsel %vm1210, %v1205, %v1207
          %v1214 = vsel %vm1210, %v1207, %v1209
          %v1220 = vsel %vm487, %v1190, 0
          %v1223 = vsel %vm487, %v1191, 0
          %1225 = vmatpush.bf16.msra.mxu0 0
          %1226 = vmatpush.bf16.msra.mxu0 0
          %1227 = vmatpush.bf16.msra.mxu0 0
          %1228 = vmatpush.bf16.msra.mxu0 0
          %1229 = vmatpush.bf16.msra.mxu0 0
          %1230 = vmatpush.bf16.msra.mxu0 0
          %1231 = vmatpush.bf16.msra.mxu0 %v1213
          %1232 = vmatpush.bf16.msra.mxu0 %v1211
          %1233 = vmatmul.bf16.gmra.mxu0 %v1220
          %v1234 = vpop.f32.mrf.mxu0
          %v1235 = vadd.f32 0.0, %v1234
          %v1236 = vpop.f32.mrf.mxu0
          %v1237 = vadd.f32 0.0, %v1236
          %1238 = vmatmul.bf16.gmra.mxu0 %v1223
          %v1239 = vpop.f32.mrf.mxu0
          %v1240 = vadd.f32 0.0, %v1239
          %v1241 = vpop.f32.mrf.mxu0
          %v1242 = vadd.f32 0.0, %v1241
          %1243 = vdwg.mxu0
          %1244 = vmatpush.bf16.msra.mxu0 0
          %1245 = vmatpush.bf16.msra.mxu0 0
          %1246 = vmatpush.bf16.msra.mxu0 0
          %1247 = vmatpush.bf16.msra.mxu0 0
          %1248 = vmatpush.bf16.msra.mxu0 0
          %1249 = vmatpush.bf16.msra.mxu0 0
          %1250 = vmatpush.bf16.msra.mxu0 %v1214
          %1251 = vmatpush.bf16.msra.mxu0 %v1212
          %1252 = vmatmul.bf16.gmra.mxu0 %v1220
          %v1253 = vpop.f32.mrf.mxu0
          %v1254 = vadd.f32 0.0, %v1253
          %v1255 = vpop.f32.mrf.mxu0
          %v1256 = vadd.f32 0.0, %v1255
          %1257 = vmatmul.bf16.gmra.mxu0 %v1223
          %v1258 = vpop.f32.mrf.mxu0
          %v1259 = vadd.f32 0.0, %v1258
          %v1260 = vpop.f32.mrf.mxu0
          %v1261 = vadd.f32 0.0, %v1260
          %1262 = vdwg.mxu0
          %v1263 = vadd.f32 %v1139, %v1235
          %v1264 = vadd.f32 %v1140, %v1254
          %v1265 = vadd.f32 %v1141, %v1237
          %v1266 = vadd.f32 %v1142, %v1256
          %v1267 = vadd.f32 %v1143, %v1240
          %v1268 = vadd.f32 %v1144, %v1259
          %v1269 = vadd.f32 %v1145, %v1242
          %v1270 = vadd.f32 %v1146, %v1261
          %s1271 = sadd.s32 %s406, 7
          %s1272 = smul.u32 %s1271, 4
          %s1273 = smul.addr %s1272, 4
          %s1274 = scalar_lea.vmem %s1, %s1273
          %v1275 = vld [vmem:[%s1274] sm:$0xf]
          %v1276 = vld [vmem:[%s1274 + $0x4] sm:$0xf]
          %v1277 = vld [vmem:[%s1274 + $0x8] sm:$0xf]
          %v1278 = vld [vmem:[%s1274 + $0xc] sm:$0xf]
          %v1283 = vunpack.c.l.b16 %v1275
          %v1284 = vunpack.c.l.b16 %v1276
          %v1285 = vunpack.c.l.b16 %v1277
          %v1286 = vunpack.c.l.b16 %v1278
          %v1287 = vpack.c.b16 %v1284, %v1283
          %v1288 = vpack.c.b16 %v1286, %v1285
          %v1297 = vunpack.c.l.b16 %v1003
          %v1298 = vunpack.c.h.b16 %v1003
          %v1299 = vunpack.c.l.b16 %v1004
          %v1300 = vunpack.c.l.b16 %v1005
          %v1301 = vunpack.c.h.b16 %v1005
          %v1302 = vunpack.c.l.b16 %v1006
          %v1303 = vunpack.c.l.b16 %v1007
          %v1304 = vunpack.c.h.b16 %v1007
          %v1305 = vunpack.c.l.b16 %v1008
          %v1306 = vunpack.c.l.b16 %v1009
          %v1307 = vunpack.c.h.b16 %v1009
          %v1308 = vunpack.c.l.b16 %v1010
          %v1309 = vpack.c.b16 %v1300, %v1297
          %v1310 = vpack.c.b16 %v1301, %v1298
          %v1311 = vpack.c.b16 %v1302, %v1299
          %v1312 = vpack.c.b16 %v1306, %v1303
          %v1313 = vpack.c.b16 %v1307, %v1304
          %v1314 = vpack.c.b16 %v1308, %v1305
          %1315 = vrot.lane.b32.xlu0 %v1309, 112
          %v1316 = vpop.permute.xlu0 %1315
          %1317 = vrot.lane.b32.xlu0 %v1310, 112
          %v1318 = vpop.permute.xlu0 %1317
          %1319 = vrot.lane.b32.xlu0 %v1311, 112
          %v1320 = vpop.permute.xlu0 %1319
          %1321 = vrot.lane.b32.xlu0 %v1312, 112
          %v1322 = vpop.permute.xlu0 %1321
          %1323 = vrot.lane.b32.xlu0 %v1313, 112
          %v1324 = vpop.permute.xlu0 %1323
          %1325 = vrot.lane.b32.xlu0 %v1314, 112
          %v1326 = vpop.permute.xlu0 %1325
          %vm1327 = vcmask 916480
          %v1328 = vsel %vm1327, %v1316, %v1318
          %v1329 = vsel %vm1327, %v1318, %v1320
          %v1330 = vsel %vm1327, %v1322, %v1324
          %v1331 = vsel %vm1327, %v1324, %v1326
          %v1337 = vsel %vm487, %v1287, 0
          %v1340 = vsel %vm487, %v1288, 0
          %1342 = vmatpush.bf16.msra.mxu0 0
          %1343 = vmatpush.bf16.msra.mxu0 0
          %1344 = vmatpush.bf16.msra.mxu0 0
          %1345 = vmatpush.bf16.msra.mxu0 0
          %1346 = vmatpush.bf16.msra.mxu0 0
          %1347 = vmatpush.bf16.msra.mxu0 0
          %1348 = vmatpush.bf16.msra.mxu0 %v1330
          %1349 = vmatpush.bf16.msra.mxu0 %v1328
          %1350 = vmatmul.bf16.gmra.mxu0 %v1337
          %v1351 = vpop.f32.mrf.mxu0
          %v1352 = vadd.f32 0.0, %v1351
          %v1353 = vpop.f32.mrf.mxu0
          %v1354 = vadd.f32 0.0, %v1353
          %1355 = vmatmul.bf16.gmra.mxu0 %v1340
          %v1356 = vpop.f32.mrf.mxu0
          %v1357 = vadd.f32 0.0, %v1356
          %v1358 = vpop.f32.mrf.mxu0
          %v1359 = vadd.f32 0.0, %v1358
          %1360 = vdwg.mxu0
          %1361 = vmatpush.bf16.msra.mxu0 0
          %1362 = vmatpush.bf16.msra.mxu0 0
          %1363 = vmatpush.bf16.msra.mxu0 0
          %1364 = vmatpush.bf16.msra.mxu0 0
          %1365 = vmatpush.bf16.msra.mxu0 0
          %1366 = vmatpush.bf16.msra.mxu0 0
          %1367 = vmatpush.bf16.msra.mxu0 %v1331
          %1368 = vmatpush.bf16.msra.mxu0 %v1329
          %1369 = vmatmul.bf16.gmra.mxu0 %v1337
          %v1370 = vpop.f32.mrf.mxu0
          %v1371 = vadd.f32 0.0, %v1370
          %v1372 = vpop.f32.mrf.mxu0
          %v1373 = vadd.f32 0.0, %v1372
          %1374 = vmatmul.bf16.gmra.mxu0 %v1340
          %v1375 = vpop.f32.mrf.mxu0
          %v1376 = vadd.f32 0.0, %v1375
          %v1377 = vpop.f32.mrf.mxu0
          %v1378 = vadd.f32 0.0, %v1377
          %1379 = vdwg.mxu0
          %v1380 = vadd.f32 %v1263, %v1352
          %v1381 = vadd.f32 %v1264, %v1371
          %v1382 = vadd.f32 %v1265, %v1354
          %v1383 = vadd.f32 %v1266, %v1373
          %v1384 = vadd.f32 %v1267, %v1357
          %v1385 = vadd.f32 %v1268, %v1376
          %v1386 = vadd.f32 %v1269, %v1359
          %v1387 = vadd.f32 %v1270, %v1378
          %1388 = vrot.lane.b32.xlu0 %v637, 17
          %v1389 = vpop.permute.xlu0 %1388
          %1390 = vrot.lane.b32.xlu0 %v638, 17
          %v1391 = vpop.permute.xlu0 %1390
          %vm1392 = vcmask 138240
          %v1393 = vsel %vm1392, %v1389, %v1391
          %v1397 = vmul.f32 %v1011, %v1389
          %v1398 = vmul.f32 %v1012, %v1393
          %v1399 = vmul.f32 %v1013, %v1391
          %v1400 = vmul.f32 %v1014, %v1389
          %v1401 = vmul.f32 %v1015, %v1393
          %v1402 = vmul.f32 %v1016, %v1391
          %v1403 = vmul.f32 %v1017, %v1389
          %v1404 = vmul.f32 %v1018, %v1393
          %v1405 = vmul.f32 %v1019, %v1391
          %v1406 = vmul.f32 %v1020, %v1389
          %v1407 = vmul.f32 %v1021, %v1393
          %v1408 = vmul.f32 %v1022, %v1391
          %v1409 = vpack.c.bf16 %v1400, %v1397
          %v1410 = vpack.c.bf16 %v1401, %v1398
          %v1411 = vpack.c.bf16 %v1402, %v1399
          %v1412 = vpack.c.bf16 %v1406, %v1403
          %v1413 = vpack.c.bf16 %v1407, %v1404
          %v1414 = vpack.c.bf16 %v1408, %v1405
          %s1415 = sadd.s32 %s406, 8
          %s1416 = smul.u32 %s1415, 4
          %s1417 = smul.addr %s1416, 4
          %s1418 = scalar_lea.vmem %s1, %s1417
          %v1419 = vld [vmem:[%s1418] sm:$0xf]
          %v1420 = vld [vmem:[%s1418 + $0x4] sm:$0xf]
          %v1421 = vld [vmem:[%s1418 + $0x8] sm:$0xf]
          %v1422 = vld [vmem:[%s1418 + $0xc] sm:$0xf]
          %v1427 = vunpack.c.l.b16 %v1419
          %v1428 = vunpack.c.l.b16 %v1420
          %v1429 = vunpack.c.l.b16 %v1421
          %v1430 = vunpack.c.l.b16 %v1422
          %v1431 = vpack.c.b16 %v1428, %v1427
          %v1432 = vpack.c.b16 %v1430, %v1429
          %1439 = vrot.lane.b32.xlu0 %v1409, 111
          %v1440 = vpop.permute.xlu0 %1439
          %1441 = vrot.lane.b32.xlu0 %v1410, 111
          %v1442 = vpop.permute.xlu0 %1441
          %1443 = vrot.lane.b32.xlu0 %v1411, 111
          %v1444 = vpop.permute.xlu0 %1443
          %1445 = vrot.lane.b32.xlu0 %v1412, 111
          %v1446 = vpop.permute.xlu0 %1445
          %1447 = vrot.lane.b32.xlu0 %v1413, 111
          %v1448 = vpop.permute.xlu0 %1447
          %1449 = vrot.lane.b32.xlu0 %v1414, 111
          %v1450 = vpop.permute.xlu0 %1449
          %vm1451 = vcmask 908288
          %v1452 = vsel %vm1451, %v1440, %v1442
          %v1453 = vsel %vm1451, %v1442, %v1444
          %v1454 = vsel %vm1451, %v1446, %v1448
          %v1455 = vsel %vm1451, %v1448, %v1450
          %v1461 = vsel %vm487, %v1431, 0
          %v1464 = vsel %vm487, %v1432, 0
          %1466 = vmatpush.bf16.msra.mxu0 0
          %1467 = vmatpush.bf16.msra.mxu0 0
          %1468 = vmatpush.bf16.msra.mxu0 0
          %1469 = vmatpush.bf16.msra.mxu0 0
          %1470 = vmatpush.bf16.msra.mxu0 0
          %1471 = vmatpush.bf16.msra.mxu0 0
          %1472 = vmatpush.bf16.msra.mxu0 %v1454
          %1473 = vmatpush.bf16.msra.mxu0 %v1452
          %1474 = vmatmul.bf16.gmra.mxu0 %v1461
          %v1475 = vpop.f32.mrf.mxu0
          %v1476 = vadd.f32 0.0, %v1475
          %v1477 = vpop.f32.mrf.mxu0
          %v1478 = vadd.f32 0.0, %v1477
          %1479 = vmatmul.bf16.gmra.mxu0 %v1464
          %v1480 = vpop.f32.mrf.mxu0
          %v1481 = vadd.f32 0.0, %v1480
          %v1482 = vpop.f32.mrf.mxu0
          %v1483 = vadd.f32 0.0, %v1482
          %1484 = vdwg.mxu0
          %1485 = vmatpush.bf16.msra.mxu0 0
          %1486 = vmatpush.bf16.msra.mxu0 0
          %1487 = vmatpush.bf16.msra.mxu0 0
          %1488 = vmatpush.bf16.msra.mxu0 0
          %1489 = vmatpush.bf16.msra.mxu0 0
          %1490 = vmatpush.bf16.msra.mxu0 0
          %1491 = vmatpush.bf16.msra.mxu0 %v1455
          %1492 = vmatpush.bf16.msra.mxu0 %v1453
          %1493 = vmatmul.bf16.gmra.mxu0 %v1461
          %v1494 = vpop.f32.mrf.mxu0
          %v1495 = vadd.f32 0.0, %v1494
          %v1496 = vpop.f32.mrf.mxu0
          %v1497 = vadd.f32 0.0, %v1496
          %1498 = vmatmul.bf16.gmra.mxu0 %v1464
          %v1499 = vpop.f32.mrf.mxu0
          %v1500 = vadd.f32 0.0, %v1499
          %v1501 = vpop.f32.mrf.mxu0
          %v1502 = vadd.f32 0.0, %v1501
          %1503 = vdwg.mxu0
          %v1504 = vadd.f32 %v1380, %v1476
          %v1505 = vadd.f32 %v1381, %v1495
          %v1506 = vadd.f32 %v1382, %v1478
          %v1507 = vadd.f32 %v1383, %v1497
          %v1508 = vadd.f32 %v1384, %v1481
          %v1509 = vadd.f32 %v1385, %v1500
          %v1510 = vadd.f32 %v1386, %v1483
          %v1511 = vadd.f32 %v1387, %v1502
          %s1512 = smul.u32 %s335, 32
          %s1513 = scalar_lea.vmem %s2, %s1512
          %v1514 = vld [vmem:[%s1513] sm:$0xff]
          %v1515 = vld [vmem:[%s1513 + $0x8] sm:$0xff]
          %v1516 = vld [vmem:[%s1513 + $0x10] sm:$0xff]
          %v1517 = vld [vmem:[%s1513 + $0x18] sm:$0xff]
          %1519 = vset.pattern.permute.xlu0 0
          %1520 = vperm.xlu0 %1519, %v1514
          %v1521 = vpop.permute.xlu0 %1520
          %1524 = vset.pattern.permute.xlu0 0
          %1525 = vperm.xlu0 %1524, %v1515
          %v1526 = vpop.permute.xlu0 %1525
          %1529 = vset.pattern.permute.xlu0 0
          %1530 = vperm.xlu0 %1529, %v1516
          %v1531 = vpop.permute.xlu0 %1530
          %1534 = vset.pattern.permute.xlu0 0
          %1535 = vperm.xlu0 %1534, %v1517
          %v1536 = vpop.permute.xlu0 %1535
          %v1538 = vadd.f32 %v1504, %v1521
          %v1539 = vadd.f32 %v1505, %v1521
          %v1540 = vadd.f32 %v1506, %v1526
          %v1541 = vadd.f32 %v1507, %v1526
          %v1542 = vadd.f32 %v1508, %v1531
          %v1543 = vadd.f32 %v1509, %v1531
          %v1544 = vadd.f32 %v1510, %v1536
          %v1545 = vadd.f32 %v1511, %v1536
          %v1546 = vmax.f32 %v1538, 0.0
          %v1547 = vmax.f32 %v1539, 0.0
          %v1548 = vmax.f32 %v1540, 0.0
          %v1549 = vmax.f32 %v1541, 0.0
          %v1550 = vmax.f32 %v1542, 0.0
          %v1551 = vmax.f32 %v1543, 0.0
          %v1552 = vmax.f32 %v1544, 0.0
          %v1553 = vmax.f32 %v1545, 0.0
          %s1554 = sadd.s32 %s335, 1
          %v1555 = vpack.c.bf16 %v1547, %v1546
          %v1556 = vpack.c.bf16 %v1549, %v1548
          %v1557 = vpack.c.bf16 %v1551, %v1550
          %v1558 = vpack.c.bf16 %v1553, %v1552
          %1559 = vst [vmem:[#allocation2 + $0x4] sm:$0xff] %v1555
          %1560 = vst [vmem:[#allocation2 + $0x14] sm:$0xff] %v1556
          %1561 = vst [vmem:[#allocation2 + $0x24] sm:$0xff] %v1557
          %1562 = vst [vmem:[#allocation2 + $0x34] sm:$0xff] %v1558
          %v1563 = vld [vmem:[#allocation2] sm:$0xff]
          %v1564 = vld [vmem:[#allocation2 + $0x8] sm:$0xf]
          %v1565 = vld [vmem:[#allocation2 + $0x10] sm:$0xff]
          %v1566 = vld [vmem:[#allocation2 + $0x18] sm:$0xf]
          %v1567 = vld [vmem:[#allocation2 + $0x20] sm:$0xff]
          %v1568 = vld [vmem:[#allocation2 + $0x28] sm:$0xf]
          %v1569 = vld [vmem:[#allocation2 + $0x30] sm:$0xff]
          %v1570 = vld [vmem:[#allocation2 + $0x38] sm:$0xf]
          %v1571 = vld [vmem:[%s7] sm:$0x3]
          %1573 = vst [vmem:[#allocation1] ss:$9 sm:$0xff] %v1571
          %v1574 = vld [vmem:[#allocation1] sm:$0xff]
          %v1575 = vld [vmem:[#allocation1 + $0x9] sm:$0xff]
          %v1576 = vpack.i.b16 %v1574, %v1574
          %v1578 = vperm.slane %v1576, 0
          %v1579 = vpack.i.b16 %v1575, %v1575
          %v1581 = vperm.slane %v1579, 0
          %v1582 = vunpack.c.l.bf16 %v1563
          %v1583 = vunpack.c.h.bf16 %v1563
          %v1584 = vunpack.c.l.bf16 %v1564
          %v1585 = vunpack.c.l.bf16 %v1565
          %v1586 = vunpack.c.h.bf16 %v1565
          %v1587 = vunpack.c.l.bf16 %v1566
          %v1588 = vunpack.c.l.bf16 %v1567
          %v1589 = vunpack.c.h.bf16 %v1567
          %v1590 = vunpack.c.l.bf16 %v1568
          %v1591 = vunpack.c.l.bf16 %v1569
          %v1592 = vunpack.c.h.bf16 %v1569
          %v1593 = vunpack.c.l.bf16 %v1570
          %v1594 = vunpack.c.l.bf16 %v1578
          %v1595 = vunpack.c.l.bf16 %v1581
          %1598 = vrot.lane.b32.xlu0 %v1594, 111
          %v1599 = vpop.permute.xlu0 %1598
          %1600 = vrot.lane.b32.xlu0 %v1595, 111
          %v1601 = vpop.permute.xlu0 %1600
          %v1602 = vsel %vm383, %v1599, %v1601
          %v1606 = vmul.f32 %v1582, %v1599
          %v1607 = vmul.f32 %v1583, %v1602
          %v1608 = vmul.f32 %v1584, %v1601
          %v1609 = vmul.f32 %v1585, %v1599
          %v1610 = vmul.f32 %v1586, %v1602
          %v1611 = vmul.f32 %v1587, %v1601
          %v1612 = vmul.f32 %v1588, %v1599
          %v1613 = vmul.f32 %v1589, %v1602
          %v1614 = vmul.f32 %v1590, %v1601
          %v1615 = vmul.f32 %v1591, %v1599
          %v1616 = vmul.f32 %v1592, %v1602
          %v1617 = vmul.f32 %v1593, %v1601
          %v1618 = vpack.c.bf16 %v1609, %v1606
          %v1619 = vpack.c.bf16 %v1610, %v1607
          %v1620 = vpack.c.bf16 %v1611, %v1608
          %v1621 = vpack.c.bf16 %v1615, %v1612
          %v1622 = vpack.c.bf16 %v1616, %v1613
          %v1623 = vpack.c.bf16 %v1617, %v1614
          %s1624 = smul.u32 %s1554, 9
          %s1625 = smul.u32 %s1624, 4
          %s1626 = smul.addr %s1625, 4
          %s1627 = scalar_lea.vmem %s1, %s1626
          %v1628 = vld [vmem:[%s1627] sm:$0xf]
          %v1629 = vld [vmem:[%s1627 + $0x4] sm:$0xf]
          %v1630 = vld [vmem:[%s1627 + $0x8] sm:$0xf]
          %v1631 = vld [vmem:[%s1627 + $0xc] sm:$0xf]
          %v1632 = vld [vmem:[#allocation2] sm:$0xff]
          %v1633 = vld [vmem:[#allocation2 + $0x8] sm:$0xf]
          %v1634 = vld [vmem:[#allocation2 + $0x10] sm:$0xff]
          %v1635 = vld [vmem:[#allocation2 + $0x18] sm:$0xf]
          %v1636 = vld [vmem:[#allocation2 + $0x20] sm:$0xff]
          %v1637 = vld [vmem:[#allocation2 + $0x28] sm:$0xf]
          %v1638 = vld [vmem:[#allocation2 + $0x30] sm:$0xff]
          %v1639 = vld [vmem:[#allocation2 + $0x38] sm:$0xf]
          %s1640 = sadd.s32 %s1624, 1
          %s1641 = smul.u32 %s1640, 4
          %s1642 = smul.addr %s1641, 4
          %s1643 = scalar_lea.vmem %s1, %s1642
          %v1644 = vld [vmem:[%s1643] sm:$0xf]
          %v1645 = vld [vmem:[%s1643 + $0x4] sm:$0xf]
          %v1646 = vld [vmem:[%s1643 + $0x8] sm:$0xf]
          %v1647 = vld [vmem:[%s1643 + $0xc] sm:$0xf]
          %v1652 = vunpack.c.l.b16 %v1644
          %v1653 = vunpack.c.l.b16 %v1645
          %v1654 = vunpack.c.l.b16 %v1646
          %v1655 = vunpack.c.l.b16 %v1647
          %v1656 = vpack.c.b16 %v1653, %v1652
          %v1657 = vpack.c.b16 %v1655, %v1654
          %v1666 = vunpack.c.l.b16 %v1632
          %v1667 = vunpack.c.h.b16 %v1632
          %v1668 = vunpack.c.l.b16 %v1633
          %v1669 = vunpack.c.l.b16 %v1634
          %v1670 = vunpack.c.h.b16 %v1634
          %v1671 = vunpack.c.l.b16 %v1635
          %v1672 = vunpack.c.l.b16 %v1636
          %v1673 = vunpack.c.h.b16 %v1636
          %v1674 = vunpack.c.l.b16 %v1637
          %v1675 = vunpack.c.l.b16 %v1638
          %v1676 = vunpack.c.h.b16 %v1638
          %v1677 = vunpack.c.l.b16 %v1639
          %v1678 = vpack.c.b16 %v1669, %v1666
          %v1679 = vpack.c.b16 %v1670, %v1667
          %v1680 = vpack.c.b16 %v1671, %v1668
          %v1681 = vpack.c.b16 %v1675, %v1672
          %v1682 = vpack.c.b16 %v1676, %v1673
          %v1683 = vpack.c.b16 %v1677, %v1674
          %1684 = vrot.lane.b32.xlu0 %v1678, 16
          %v1685 = vpop.permute.xlu0 %1684
          %1686 = vrot.lane.b32.xlu0 %v1679, 16
          %v1687 = vpop.permute.xlu0 %1686
          %1688 = vrot.lane.b32.xlu0 %v1680, 16
          %v1689 = vpop.permute.xlu0 %1688
          %1690 = vrot.lane.b32.xlu0 %v1681, 16
          %v1691 = vpop.permute.xlu0 %1690
          %1692 = vrot.lane.b32.xlu0 %v1682, 16
          %v1693 = vpop.permute.xlu0 %1692
          %1694 = vrot.lane.b32.xlu0 %v1683, 16
          %v1695 = vpop.permute.xlu0 %1694
          %v1696 = vsel %vm478, %v1685, %v1687
          %v1697 = vsel %vm478, %v1687, %v1689
          %v1698 = vsel %vm478, %v1691, %v1693
          %v1699 = vsel %vm478, %v1693, %v1695
          %v1705 = vsel %vm487, %v1656, 0
          %v1708 = vsel %vm487, %v1657, 0
          %1710 = vmatpush.bf16.msra.mxu0 0
          %1711 = vmatpush.bf16.msra.mxu0 0
          %1712 = vmatpush.bf16.msra.mxu0 0
          %1713 = vmatpush.bf16.msra.mxu0 0
          %1714 = vmatpush.bf16.msra.mxu0 0
          %1715 = vmatpush.bf16.msra.mxu0 0
          %1716 = vmatpush.bf16.msra.mxu0 %v1698
          %1717 = vmatpush.bf16.msra.mxu0 %v1696
          %1718 = vmatmul.bf16.gmra.mxu0 %v1705
          %v1719 = vpop.f32.mrf.mxu0
          %v1720 = vadd.f32 0.0, %v1719
          %v1721 = vpop.f32.mrf.mxu0
          %v1722 = vadd.f32 0.0, %v1721
          %1723 = vmatmul.bf16.gmra.mxu0 %v1708
          %v1724 = vpop.f32.mrf.mxu0
          %v1725 = vadd.f32 0.0, %v1724
          %v1726 = vpop.f32.mrf.mxu0
          %v1727 = vadd.f32 0.0, %v1726
          %1728 = vdwg.mxu0
          %1729 = vmatpush.bf16.msra.mxu0 0
          %1730 = vmatpush.bf16.msra.mxu0 0
          %1731 = vmatpush.bf16.msra.mxu0 0
          %1732 = vmatpush.bf16.msra.mxu0 0
          %1733 = vmatpush.bf16.msra.mxu0 0
          %1734 = vmatpush.bf16.msra.mxu0 0
          %1735 = vmatpush.bf16.msra.mxu0 %v1699
          %1736 = vmatpush.bf16.msra.mxu0 %v1697
          %1737 = vmatmul.bf16.gmra.mxu0 %v1705
          %v1738 = vpop.f32.mrf.mxu0
          %v1739 = vadd.f32 0.0, %v1738
          %v1740 = vpop.f32.mrf.mxu0
          %v1741 = vadd.f32 0.0, %v1740
          %1742 = vmatmul.bf16.gmra.mxu0 %v1708
          %v1743 = vpop.f32.mrf.mxu0
          %v1744 = vadd.f32 0.0, %v1743
          %v1745 = vpop.f32.mrf.mxu0
          %v1746 = vadd.f32 0.0, %v1745
          %1747 = vdwg.mxu0
          %v1752 = vunpack.c.l.b16 %v1628
          %v1753 = vunpack.c.l.b16 %v1629
          %v1754 = vunpack.c.l.b16 %v1630
          %v1755 = vunpack.c.l.b16 %v1631
          %v1756 = vpack.c.b16 %v1753, %v1752
          %v1757 = vpack.c.b16 %v1755, %v1754
          %1764 = vrot.lane.b32.xlu0 %v1618, 17
          %v1765 = vpop.permute.xlu0 %1764
          %1766 = vrot.lane.b32.xlu0 %v1619, 17
          %v1767 = vpop.permute.xlu0 %1766
          %1768 = vrot.lane.b32.xlu0 %v1620, 17
          %v1769 = vpop.permute.xlu0 %1768
          %1770 = vrot.lane.b32.xlu0 %v1621, 17
          %v1771 = vpop.permute.xlu0 %1770
          %1772 = vrot.lane.b32.xlu0 %v1622, 17
          %v1773 = vpop.permute.xlu0 %1772
          %1774 = vrot.lane.b32.xlu0 %v1623, 17
          %v1775 = vpop.permute.xlu0 %1774
          %v1776 = vsel %vm560, %v1765, %v1767
          %v1777 = vsel %vm560, %v1767, %v1769
          %v1778 = vsel %vm560, %v1771, %v1773
          %v1779 = vsel %vm560, %v1773, %v1775
          %v1785 = vsel %vm487, %v1756, 0
          %v1788 = vsel %vm487, %v1757, 0
          %1790 = vmatpush.bf16.msra.mxu0 0
          %1791 = vmatpush.bf16.msra.mxu0 0
          %1792 = vmatpush.bf16.msra.mxu0 0
          %1793 = vmatpush.bf16.msra.mxu0 0
          %1794 = vmatpush.bf16.msra.mxu0 0
          %1795 = vmatpush.bf16.msra.mxu0 0
          %1796 = vmatpush.bf16.msra.mxu0 %v1778
          %1797 = vmatpush.bf16.msra.mxu0 %v1776
          %1798 = vmatmul.bf16.gmra.mxu0 %v1785
          %v1799 = vpop.f32.mrf.mxu0
          %v1800 = vadd.f32 %v1720, %v1799
          %v1801 = vpop.f32.mrf.mxu0
          %v1802 = vadd.f32 %v1722, %v1801
          %1803 = vmatmul.bf16.gmra.mxu0 %v1788
          %v1804 = vpop.f32.mrf.mxu0
          %v1805 = vadd.f32 %v1725, %v1804
          %v1806 = vpop.f32.mrf.mxu0
          %v1807 = vadd.f32 %v1727, %v1806
          %1808 = vdwg.mxu0
          %1809 = vmatpush.bf16.msra.mxu0 0
          %1810 = vmatpush.bf16.msra.mxu0 0
          %1811 = vmatpush.bf16.msra.mxu0 0
          %1812 = vmatpush.bf16.msra.mxu0 0
          %1813 = vmatpush.bf16.msra.mxu0 0
          %1814 = vmatpush.bf16.msra.mxu0 0
          %1815 = vmatpush.bf16.msra.mxu0 %v1779
          %1816 = vmatpush.bf16.msra.mxu0 %v1777
          %1817 = vmatmul.bf16.gmra.mxu0 %v1785
          %v1818 = vpop.f32.mrf.mxu0
          %v1819 = vadd.f32 %v1739, %v1818
          %v1820 = vpop.f32.mrf.mxu0
          %v1821 = vadd.f32 %v1741, %v1820
          %1822 = vmatmul.bf16.gmra.mxu0 %v1788
          %v1823 = vpop.f32.mrf.mxu0
          %v1824 = vadd.f32 %v1744, %v1823
          %v1825 = vpop.f32.mrf.mxu0
          %v1826 = vadd.f32 %v1746, %v1825
          %1827 = vdwg.mxu0
          %v1828 = vld [vmem:[%s613] sm:$0x3]
          %1830 = vst [vmem:[#allocation1] ss:$9 sm:$0xff] %v1828
          %v1831 = vld [vmem:[#allocation1] sm:$0xff]
          %v1832 = vld [vmem:[#allocation1 + $0x9] sm:$0xff]
          %v1833 = vpack.i.b16 %v1831, %v1831
          %v1835 = vperm.slane %v1833, 0
          %v1836 = vpack.i.b16 %v1832, %v1832
          %v1838 = vperm.slane %v1836, 0
          %v1839 = vunpack.c.l.bf16 %v1632
          %v1840 = vunpack.c.h.bf16 %v1632
          %v1841 = vunpack.c.l.bf16 %v1633
          %v1842 = vunpack.c.l.bf16 %v1634
          %v1843 = vunpack.c.h.bf16 %v1634
          %v1844 = vunpack.c.l.bf16 %v1635
          %v1845 = vunpack.c.l.bf16 %v1636
          %v1846 = vunpack.c.h.bf16 %v1636
          %v1847 = vunpack.c.l.bf16 %v1637
          %v1848 = vunpack.c.l.bf16 %v1638
          %v1849 = vunpack.c.h.bf16 %v1638
          %v1850 = vunpack.c.l.bf16 %v1639
          %v1851 = vunpack.c.l.bf16 %v1835
          %v1852 = vunpack.c.l.bf16 %v1838
          %1855 = vrot.lane.b32.xlu0 %v1851, 113
          %v1856 = vpop.permute.xlu0 %1855
          %1857 = vrot.lane.b32.xlu0 %v1852, 113
          %v1858 = vpop.permute.xlu0 %1857
          %v1859 = vsel %vm645, %v1856, %v1858
          %v1863 = vmul.f32 %v1839, %v1856
          %v1864 = vmul.f32 %v1840, %v1859
          %v1865 = vmul.f32 %v1841, %v1858
          %v1866 = vmul.f32 %v1842, %v1856
          %v1867 = vmul.f32 %v1843, %v1859
          %v1868 = vmul.f32 %v1844, %v1858
          %v1869 = vmul.f32 %v1845, %v1856
          %v1870 = vmul.f32 %v1846, %v1859
          %v1871 = vmul.f32 %v1847, %v1858
          %v1872 = vmul.f32 %v1848, %v1856
          %v1873 = vmul.f32 %v1849, %v1859
          %v1874 = vmul.f32 %v1850, %v1858
          %v1875 = vpack.c.bf16 %v1866, %v1863
          %v1876 = vpack.c.bf16 %v1867, %v1864
          %v1877 = vpack.c.bf16 %v1868, %v1865
          %v1878 = vpack.c.bf16 %v1872, %v1869
          %v1879 = vpack.c.bf16 %v1873, %v1870
          %v1880 = vpack.c.bf16 %v1874, %v1871
          %s1881 = sadd.s32 %s1624, 2
          %s1882 = smul.u32 %s1881, 4
          %s1883 = smul.addr %s1882, 4
          %s1884 = scalar_lea.vmem %s1, %s1883
          %v1885 = vld [vmem:[%s1884] sm:$0xf]
          %v1886 = vld [vmem:[%s1884 + $0x4] sm:$0xf]
          %v1887 = vld [vmem:[%s1884 + $0x8] sm:$0xf]
          %v1888 = vld [vmem:[%s1884 + $0xc] sm:$0xf]
          %v1893 = vunpack.c.l.b16 %v1885
          %v1894 = vunpack.c.l.b16 %v1886
          %v1895 = vunpack.c.l.b16 %v1887
          %v1896 = vunpack.c.l.b16 %v1888
          %v1897 = vpack.c.b16 %v1894, %v1893
          %v1898 = vpack.c.b16 %v1896, %v1895
          %1905 = vrot.lane.b32.xlu0 %v1875, 15
          %v1906 = vpop.permute.xlu0 %1905
          %1907 = vrot.lane.b32.xlu0 %v1876, 15
          %v1908 = vpop.permute.xlu0 %1907
          %1909 = vrot.lane.b32.xlu0 %v1877, 15
          %v1910 = vpop.permute.xlu0 %1909
          %1911 = vrot.lane.b32.xlu0 %v1878, 15
          %v1912 = vpop.permute.xlu0 %1911
          %1913 = vrot.lane.b32.xlu0 %v1879, 15
          %v1914 = vpop.permute.xlu0 %1913
          %1915 = vrot.lane.b32.xlu0 %v1880, 15
          %v1916 = vpop.permute.xlu0 %1915
          %v1917 = vsel %vm704, %v1906, %v1908
          %v1918 = vsel %vm704, %v1908, %v1910
          %v1919 = vsel %vm704, %v1912, %v1914
          %v1920 = vsel %vm704, %v1914, %v1916
          %v1926 = vsel %vm487, %v1897, 0
          %v1929 = vsel %vm487, %v1898, 0
          %1931 = vmatpush.bf16.msra.mxu0 0
          %1932 = vmatpush.bf16.msra.mxu0 0
          %1933 = vmatpush.bf16.msra.mxu0 0
          %1934 = vmatpush.bf16.msra.mxu0 0
          %1935 = vmatpush.bf16.msra.mxu0 0
          %1936 = vmatpush.bf16.msra.mxu0 0
          %1937 = vmatpush.bf16.msra.mxu0 %v1919
          %1938 = vmatpush.bf16.msra.mxu0 %v1917
          %1939 = vmatmul.bf16.gmra.mxu0 %v1926
          %v1940 = vpop.f32.mrf.mxu0
          %v1941 = vadd.f32 0.0, %v1940
          %v1942 = vpop.f32.mrf.mxu0
          %v1943 = vadd.f32 0.0, %v1942
          %1944 = vmatmul.bf16.gmra.mxu0 %v1929
          %v1945 = vpop.f32.mrf.mxu0
          %v1946 = vadd.f32 0.0, %v1945
          %v1947 = vpop.f32.mrf.mxu0
          %v1948 = vadd.f32 0.0, %v1947
          %1949 = vdwg.mxu0
          %1950 = vmatpush.bf16.msra.mxu0 0
          %1951 = vmatpush.bf16.msra.mxu0 0
          %1952 = vmatpush.bf16.msra.mxu0 0
          %1953 = vmatpush.bf16.msra.mxu0 0
          %1954 = vmatpush.bf16.msra.mxu0 0
          %1955 = vmatpush.bf16.msra.mxu0 0
          %1956 = vmatpush.bf16.msra.mxu0 %v1920
          %1957 = vmatpush.bf16.msra.mxu0 %v1918
          %1958 = vmatmul.bf16.gmra.mxu0 %v1926
          %v1959 = vpop.f32.mrf.mxu0
          %v1960 = vadd.f32 0.0, %v1959
          %v1961 = vpop.f32.mrf.mxu0
          %v1962 = vadd.f32 0.0, %v1961
          %1963 = vmatmul.bf16.gmra.mxu0 %v1929
          %v1964 = vpop.f32.mrf.mxu0
          %v1965 = vadd.f32 0.0, %v1964
          %v1966 = vpop.f32.mrf.mxu0
          %v1967 = vadd.f32 0.0, %v1966
          %1968 = vdwg.mxu0
          %v1969 = vadd.f32 %v1800, %v1941
          %v1970 = vadd.f32 %v1819, %v1960
          %v1971 = vadd.f32 %v1802, %v1943
          %v1972 = vadd.f32 %v1821, %v1962
          %v1973 = vadd.f32 %v1805, %v1946
          %v1974 = vadd.f32 %v1824, %v1965
          %v1975 = vadd.f32 %v1807, %v1948
          %v1976 = vadd.f32 %v1826, %v1967
          %v1977 = vld [vmem:[#allocation2] sm:$0xff]
          %v1978 = vld [vmem:[#allocation2 + $0x8] sm:$0xf]
          %v1979 = vld [vmem:[#allocation2 + $0x10] sm:$0xff]
          %v1980 = vld [vmem:[#allocation2 + $0x18] sm:$0xf]
          %v1981 = vld [vmem:[#allocation2 + $0x20] sm:$0xff]
          %v1982 = vld [vmem:[#allocation2 + $0x28] sm:$0xf]
          %v1983 = vld [vmem:[#allocation2 + $0x30] sm:$0xff]
          %v1984 = vld [vmem:[#allocation2 + $0x38] sm:$0xf]
          %v1985 = vunpack.c.l.bf16 %v1977
          %v1986 = vunpack.c.h.bf16 %v1977
          %v1987 = vunpack.c.l.bf16 %v1978
          %v1988 = vunpack.c.l.bf16 %v1979
          %v1989 = vunpack.c.h.bf16 %v1979
          %v1990 = vunpack.c.l.bf16 %v1980
          %v1991 = vunpack.c.l.bf16 %v1981
          %v1992 = vunpack.c.h.bf16 %v1981
          %v1993 = vunpack.c.l.bf16 %v1982
          %v1994 = vunpack.c.l.bf16 %v1983
          %v1995 = vunpack.c.h.bf16 %v1983
          %v1996 = vunpack.c.l.bf16 %v1984
          %1997 = vrot.lane.b32.xlu0 %v1594, 127
          %v1998 = vpop.permute.xlu0 %1997
          %1999 = vrot.lane.b32.xlu0 %v1595, 127
          %v2000 = vpop.permute.xlu0 %1999
          %v2001 = vsel %vm789, %v1998, %v2000
          %v2005 = vmul.f32 %v1985, %v1998
          %v2006 = vmul.f32 %v1986, %v2001
          %v2007 = vmul.f32 %v1987, %v2000
          %v2008 = vmul.f32 %v1988, %v1998
          %v2009 = vmul.f32 %v1989, %v2001
          %v2010 = vmul.f32 %v1990, %v2000
          %v2011 = vmul.f32 %v1991, %v1998
          %v2012 = vmul.f32 %v1992, %v2001
          %v2013 = vmul.f32 %v1993, %v2000
          %v2014 = vmul.f32 %v1994, %v1998
          %v2015 = vmul.f32 %v1995, %v2001
          %v2016 = vmul.f32 %v1996, %v2000
          %v2017 = vpack.c.bf16 %v2008, %v2005
          %v2018 = vpack.c.bf16 %v2009, %v2006
          %v2019 = vpack.c.bf16 %v2010, %v2007
          %v2020 = vpack.c.bf16 %v2014, %v2011
          %v2021 = vpack.c.bf16 %v2015, %v2012
          %v2022 = vpack.c.bf16 %v2016, %v2013
          %s2023 = sadd.s32 %s1624, 3
          %s2024 = smul.u32 %s2023, 4
          %s2025 = smul.addr %s2024, 4
          %s2026 = scalar_lea.vmem %s1, %s2025
          %v2027 = vld [vmem:[%s2026] sm:$0xf]
          %v2028 = vld [vmem:[%s2026 + $0x4] sm:$0xf]
          %v2029 = vld [vmem:[%s2026 + $0x8] sm:$0xf]
          %v2030 = vld [vmem:[%s2026 + $0xc] sm:$0xf]
          %v2035 = vunpack.c.l.b16 %v2027
          %v2036 = vunpack.c.l.b16 %v2028
          %v2037 = vunpack.c.l.b16 %v2029
          %v2038 = vunpack.c.l.b16 %v2030
          %v2039 = vpack.c.b16 %v2036, %v2035
          %v2040 = vpack.c.b16 %v2038, %v2037
          %2047 = vrot.lane.b32.xlu0 %v2017, 1
          %v2048 = vpop.permute.xlu0 %2047
          %2049 = vrot.lane.b32.xlu0 %v2018, 1
          %v2050 = vpop.permute.xlu0 %2049
          %2051 = vrot.lane.b32.xlu0 %v2019, 1
          %v2052 = vpop.permute.xlu0 %2051
          %2053 = vrot.lane.b32.xlu0 %v2020, 1
          %v2054 = vpop.permute.xlu0 %2053
          %2055 = vrot.lane.b32.xlu0 %v2021, 1
          %v2056 = vpop.permute.xlu0 %2055
          %2057 = vrot.lane.b32.xlu0 %v2022, 1
          %v2058 = vpop.permute.xlu0 %2057
          %v2059 = vsel %vm848, %v2048, %v2050
          %v2060 = vsel %vm848, %v2050, %v2052
          %v2061 = vsel %vm848, %v2054, %v2056
          %v2062 = vsel %vm848, %v2056, %v2058
          %v2068 = vsel %vm487, %v2039, 0
          %v2071 = vsel %vm487, %v2040, 0
          %2073 = vmatpush.bf16.msra.mxu0 0
          %2074 = vmatpush.bf16.msra.mxu0 0
          %2075 = vmatpush.bf16.msra.mxu0 0
          %2076 = vmatpush.bf16.msra.mxu0 0
          %2077 = vmatpush.bf16.msra.mxu0 0
          %2078 = vmatpush.bf16.msra.mxu0 0
          %2079 = vmatpush.bf16.msra.mxu0 %v2061
          %2080 = vmatpush.bf16.msra.mxu0 %v2059
          %2081 = vmatmul.bf16.gmra.mxu0 %v2068
          %v2082 = vpop.f32.mrf.mxu0
          %v2083 = vadd.f32 0.0, %v2082
          %v2084 = vpop.f32.mrf.mxu0
          %v2085 = vadd.f32 0.0, %v2084
          %2086 = vmatmul.bf16.gmra.mxu0 %v2071
          %v2087 = vpop.f32.mrf.mxu0
          %v2088 = vadd.f32 0.0, %v2087
          %v2089 = vpop.f32.mrf.mxu0
          %v2090 = vadd.f32 0.0, %v2089
          %2091 = vdwg.mxu0
          %2092 = vmatpush.bf16.msra.mxu0 0
          %2093 = vmatpush.bf16.msra.mxu0 0
          %2094 = vmatpush.bf16.msra.mxu0 0
          %2095 = vmatpush.bf16.msra.mxu0 0
          %2096 = vmatpush.bf16.msra.mxu0 0
          %2097 = vmatpush.bf16.msra.mxu0 0
          %2098 = vmatpush.bf16.msra.mxu0 %v2062
          %2099 = vmatpush.bf16.msra.mxu0 %v2060
          %2100 = vmatmul.bf16.gmra.mxu0 %v2068
          %v2101 = vpop.f32.mrf.mxu0
          %v2102 = vadd.f32 0.0, %v2101
          %v2103 = vpop.f32.mrf.mxu0
          %v2104 = vadd.f32 0.0, %v2103
          %2105 = vmatmul.bf16.gmra.mxu0 %v2071
          %v2106 = vpop.f32.mrf.mxu0
          %v2107 = vadd.f32 0.0, %v2106
          %v2108 = vpop.f32.mrf.mxu0
          %v2109 = vadd.f32 0.0, %v2108
          %2110 = vdwg.mxu0
          %v2111 = vadd.f32 %v1969, %v2083
          %v2112 = vadd.f32 %v1970, %v2102
          %v2113 = vadd.f32 %v1971, %v2085
          %v2114 = vadd.f32 %v1972, %v2104
          %v2115 = vadd.f32 %v1973, %v2088
          %v2116 = vadd.f32 %v1974, %v2107
          %v2117 = vadd.f32 %v1975, %v2090
          %v2118 = vadd.f32 %v1976, %v2109
          %v2119 = vld [vmem:[#allocation2 + $0x4] sm:$0xff]
          %v2120 = vld [vmem:[#allocation2 + $0x14] sm:$0xff]
          %v2121 = vld [vmem:[#allocation2 + $0x24] sm:$0xff]
          %v2122 = vld [vmem:[#allocation2 + $0x34] sm:$0xff]
          %s2123 = sadd.s32 %s1624, 4
          %s2124 = smul.u32 %s2123, 4
          %s2125 = smul.addr %s2124, 4
          %s2126 = scalar_lea.vmem %s1, %s2125
          %v2127 = vld [vmem:[%s2126] sm:$0xf]
          %v2128 = vld [vmem:[%s2126 + $0x4] sm:$0xf]
          %v2129 = vld [vmem:[%s2126 + $0x8] sm:$0xf]
          %v2130 = vld [vmem:[%s2126 + $0xc] sm:$0xf]
          %v2135 = vunpack.c.l.b16 %v2127
          %v2136 = vunpack.c.l.b16 %v2128
          %v2137 = vunpack.c.l.b16 %v2129
          %v2138 = vunpack.c.l.b16 %v2130
          %v2139 = vpack.c.b16 %v2136, %v2135
          %v2140 = vpack.c.b16 %v2138, %v2137
          %v2145 = vunpack.c.l.b16 %v2119
          %v2146 = vunpack.c.h.b16 %v2119
          %v2147 = vunpack.c.l.b16 %v2120
          %v2148 = vunpack.c.h.b16 %v2120
          %v2149 = vunpack.c.l.b16 %v2121
          %v2150 = vunpack.c.h.b16 %v2121
          %v2151 = vunpack.c.l.b16 %v2122
          %v2152 = vunpack.c.h.b16 %v2122
          %v2153 = vpack.c.b16 %v2147, %v2145
          %v2154 = vpack.c.b16 %v2148, %v2146
          %v2155 = vpack.c.b16 %v2151, %v2149
          %v2156 = vpack.c.b16 %v2152, %v2150
          %v2162 = vsel %vm487, %v2139, 0
          %v2165 = vsel %vm487, %v2140, 0
          %2167 = vmatpush.bf16.msra.mxu0 0
          %2168 = vmatpush.bf16.msra.mxu0 0
          %2169 = vmatpush.bf16.msra.mxu0 0
          %2170 = vmatpush.bf16.msra.mxu0 0
          %2171 = vmatpush.bf16.msra.mxu0 0
          %2172 = vmatpush.bf16.msra.mxu0 0
          %2173 = vmatpush.bf16.msra.mxu0 %v2155
          %2174 = vmatpush.bf16.msra.mxu0 %v2153
          %2175 = vmatmul.bf16.gmra.mxu0 %v2162
          %v2176 = vpop.f32.mrf.mxu0
          %v2177 = vadd.f32 0.0, %v2176
          %v2178 = vpop.f32.mrf.mxu0
          %v2179 = vadd.f32 0.0, %v2178
          %2180 = vmatmul.bf16.gmra.mxu0 %v2165
          %v2181 = vpop.f32.mrf.mxu0
          %v2182 = vadd.f32 0.0, %v2181
          %v2183 = vpop.f32.mrf.mxu0
          %v2184 = vadd.f32 0.0, %v2183
          %2185 = vdwg.mxu0
          %2186 = vmatpush.bf16.msra.mxu0 0
          %2187 = vmatpush.bf16.msra.mxu0 0
          %2188 = vmatpush.bf16.msra.mxu0 0
          %2189 = vmatpush.bf16.msra.mxu0 0
          %2190 = vmatpush.bf16.msra.mxu0 0
          %2191 = vmatpush.bf16.msra.mxu0 0
          %2192 = vmatpush.bf16.msra.mxu0 %v2156
          %2193 = vmatpush.bf16.msra.mxu0 %v2154
          %2194 = vmatmul.bf16.gmra.mxu0 %v2162
          %v2195 = vpop.f32.mrf.mxu0
          %v2196 = vadd.f32 0.0, %v2195
          %v2197 = vpop.f32.mrf.mxu0
          %v2198 = vadd.f32 0.0, %v2197
          %2199 = vmatmul.bf16.gmra.mxu0 %v2165
          %v2200 = vpop.f32.mrf.mxu0
          %v2201 = vadd.f32 0.0, %v2200
          %v2202 = vpop.f32.mrf.mxu0
          %v2203 = vadd.f32 0.0, %v2202
          %2204 = vdwg.mxu0
          %v2205 = vadd.f32 %v2111, %v2177
          %v2206 = vadd.f32 %v2112, %v2196
          %v2207 = vadd.f32 %v2113, %v2179
          %v2208 = vadd.f32 %v2114, %v2198
          %v2209 = vadd.f32 %v2115, %v2182
          %v2210 = vadd.f32 %v2116, %v2201
          %v2211 = vadd.f32 %v2117, %v2184
          %v2212 = vadd.f32 %v2118, %v2203
          %v2213 = vld [vmem:[#allocation2 + $0x4] sm:$0xff]
          %v2214 = vld [vmem:[#allocation2 + $0xc] sm:$0xf]
          %v2215 = vld [vmem:[#allocation2 + $0x14] sm:$0xff]
          %v2216 = vld [vmem:[#allocation2 + $0x1c] sm:$0xf]
          %v2217 = vld [vmem:[#allocation2 + $0x24] sm:$0xff]
          %v2218 = vld [vmem:[#allocation2 + $0x2c] sm:$0xf]
          %v2219 = vld [vmem:[#allocation2 + $0x34] sm:$0xff]
          %v2220 = vld [vmem:[#allocation2 + $0x3c] sm:$0xf]
          %v2221 = vunpack.c.l.bf16 %v2213
          %v2222 = vunpack.c.h.bf16 %v2213
          %v2223 = vunpack.c.l.bf16 %v2214
          %v2224 = vunpack.c.l.bf16 %v2215
          %v2225 = vunpack.c.h.bf16 %v2215
          %v2226 = vunpack.c.l.bf16 %v2216
          %v2227 = vunpack.c.l.bf16 %v2217
          %v2228 = vunpack.c.h.bf16 %v2217
          %v2229 = vunpack.c.l.bf16 %v2218
          %v2230 = vunpack.c.l.bf16 %v2219
          %v2231 = vunpack.c.h.bf16 %v2219
          %v2232 = vunpack.c.l.bf16 %v2220
          %2233 = vrot.lane.b32.xlu0 %v1851, 1
          %v2234 = vpop.permute.xlu0 %2233
          %2235 = vrot.lane.b32.xlu0 %v1852, 1
          %v2236 = vpop.permute.xlu0 %2235
          %v2237 = vsel %vm1027, %v2234, %v2236
          %v2241 = vmul.f32 %v2221, %v2234
          %v2242 = vmul.f32 %v2222, %v2237
          %v2243 = vmul.f32 %v2223, %v2236
          %v2244 = vmul.f32 %v2224, %v2234
          %v2245 = vmul.f32 %v2225, %v2237
          %v2246 = vmul.f32 %v2226, %v2236
          %v2247 = vmul.f32 %v2227, %v2234
          %v2248 = vmul.f32 %v2228, %v2237
          %v2249 = vmul.f32 %v2229, %v2236
          %v2250 = vmul.f32 %v2230, %v2234
          %v2251 = vmul.f32 %v2231, %v2237
          %v2252 = vmul.f32 %v2232, %v2236
          %v2253 = vpack.c.bf16 %v2244, %v2241
          %v2254 = vpack.c.bf16 %v2245, %v2242
          %v2255 = vpack.c.bf16 %v2246, %v2243
          %v2256 = vpack.c.bf16 %v2250, %v2247
          %v2257 = vpack.c.bf16 %v2251, %v2248
          %v2258 = vpack.c.bf16 %v2252, %v2249
          %s2259 = sadd.s32 %s1624, 5
          %s2260 = smul.u32 %s2259, 4
          %s2261 = smul.addr %s2260, 4
          %s2262 = scalar_lea.vmem %s1, %s2261
          %v2263 = vld [vmem:[%s2262] sm:$0xf]
          %v2264 = vld [vmem:[%s2262 + $0x4] sm:$0xf]
          %v2265 = vld [vmem:[%s2262 + $0x8] sm:$0xf]
          %v2266 = vld [vmem:[%s2262 + $0xc] sm:$0xf]
          %v2271 = vunpack.c.l.b16 %v2263
          %v2272 = vunpack.c.l.b16 %v2264
          %v2273 = vunpack.c.l.b16 %v2265
          %v2274 = vunpack.c.l.b16 %v2266
          %v2275 = vpack.c.b16 %v2272, %v2271
          %v2276 = vpack.c.b16 %v2274, %v2273
          %2283 = vrot.lane.b32.xlu0 %v2253, 127
          %v2284 = vpop.permute.xlu0 %2283
          %2285 = vrot.lane.b32.xlu0 %v2254, 127
          %v2286 = vpop.permute.xlu0 %2285
          %2287 = vrot.lane.b32.xlu0 %v2255, 127
          %v2288 = vpop.permute.xlu0 %2287
          %2289 = vrot.lane.b32.xlu0 %v2256, 127
          %v2290 = vpop.permute.xlu0 %2289
          %2291 = vrot.lane.b32.xlu0 %v2257, 127
          %v2292 = vpop.permute.xlu0 %2291
          %2293 = vrot.lane.b32.xlu0 %v2258, 127
          %v2294 = vpop.permute.xlu0 %2293
          %v2295 = vsel %vm1086, %v2284, %v2286
          %v2296 = vsel %vm1086, %v2286, %v2288
          %v2297 = vsel %vm1086, %v2290, %v2292
          %v2298 = vsel %vm1086, %v2292, %v2294
          %v2304 = vsel %vm487, %v2275, 0
          %v2307 = vsel %vm487, %v2276, 0
          %2309 = vmatpush.bf16.msra.mxu0 0
          %2310 = vmatpush.bf16.msra.mxu0 0
          %2311 = vmatpush.bf16.msra.mxu0 0
          %2312 = vmatpush.bf16.msra.mxu0 0
          %2313 = vmatpush.bf16.msra.mxu0 0
          %2314 = vmatpush.bf16.msra.mxu0 0
          %2315 = vmatpush.bf16.msra.mxu0 %v2297
          %2316 = vmatpush.bf16.msra.mxu0 %v2295
          %2317 = vmatmul.bf16.gmra.mxu0 %v2304
          %v2318 = vpop.f32.mrf.mxu0
          %v2319 = vadd.f32 0.0, %v2318
          %v2320 = vpop.f32.mrf.mxu0
          %v2321 = vadd.f32 0.0, %v2320
          %2322 = vmatmul.bf16.gmra.mxu0 %v2307
          %v2323 = vpop.f32.mrf.mxu0
          %v2324 = vadd.f32 0.0, %v2323
          %v2325 = vpop.f32.mrf.mxu0
          %v2326 = vadd.f32 0.0, %v2325
          %2327 = vdwg.mxu0
          %2328 = vmatpush.bf16.msra.mxu0 0
          %2329 = vmatpush.bf16.msra.mxu0 0
          %2330 = vmatpush.bf16.msra.mxu0 0
          %2331 = vmatpush.bf16.msra.mxu0 0
          %2332 = vmatpush.bf16.msra.mxu0 0
          %2333 = vmatpush.bf16.msra.mxu0 0
          %2334 = vmatpush.bf16.msra.mxu0 %v2298
          %2335 = vmatpush.bf16.msra.mxu0 %v2296
          %2336 = vmatmul.bf16.gmra.mxu0 %v2304
          %v2337 = vpop.f32.mrf.mxu0
          %v2338 = vadd.f32 0.0, %v2337
          %v2339 = vpop.f32.mrf.mxu0
          %v2340 = vadd.f32 0.0, %v2339
          %2341 = vmatmul.bf16.gmra.mxu0 %v2307
          %v2342 = vpop.f32.mrf.mxu0
          %v2343 = vadd.f32 0.0, %v2342
          %v2344 = vpop.f32.mrf.mxu0
          %v2345 = vadd.f32 0.0, %v2344
          %2346 = vdwg.mxu0
          %v2347 = vadd.f32 %v2205, %v2319
          %v2348 = vadd.f32 %v2206, %v2338
          %v2349 = vadd.f32 %v2207, %v2321
          %v2350 = vadd.f32 %v2208, %v2340
          %v2351 = vadd.f32 %v2209, %v2324
          %v2352 = vadd.f32 %v2210, %v2343
          %v2353 = vadd.f32 %v2211, %v2326
          %v2354 = vadd.f32 %v2212, %v2345
          %2355 = vrot.lane.b32.xlu0 %v1594, 15
          %v2356 = vpop.permute.xlu0 %2355
          %2357 = vrot.lane.b32.xlu0 %v1595, 15
          %v2358 = vpop.permute.xlu0 %2357
          %v2359 = vsel %vm1151, %v2356, %v2358
          %v2363 = vmul.f32 %v2221, %v2356
          %v2364 = vmul.f32 %v2222, %v2359
          %v2365 = vmul.f32 %v2223, %v2358
          %v2366 = vmul.f32 %v2224, %v2356
          %v2367 = vmul.f32 %v2225, %v2359
          %v2368 = vmul.f32 %v2226, %v2358
          %v2369 = vmul.f32 %v2227, %v2356
          %v2370 = vmul.f32 %v2228, %v2359
          %v2371 = vmul.f32 %v2229, %v2358
          %v2372 = vmul.f32 %v2230, %v2356
          %v2373 = vmul.f32 %v2231, %v2359
          %v2374 = vmul.f32 %v2232, %v2358
          %v2375 = vpack.c.bf16 %v2366, %v2363
          %v2376 = vpack.c.bf16 %v2367, %v2364
          %v2377 = vpack.c.bf16 %v2368, %v2365
          %v2378 = vpack.c.bf16 %v2372, %v2369
          %v2379 = vpack.c.bf16 %v2373, %v2370
          %v2380 = vpack.c.bf16 %v2374, %v2371
          %s2381 = sadd.s32 %s1624, 6
          %s2382 = smul.u32 %s2381, 4
          %s2383 = smul.addr %s2382, 4
          %s2384 = scalar_lea.vmem %s1, %s2383
          %v2385 = vld [vmem:[%s2384] sm:$0xf]
          %v2386 = vld [vmem:[%s2384 + $0x4] sm:$0xf]
          %v2387 = vld [vmem:[%s2384 + $0x8] sm:$0xf]
          %v2388 = vld [vmem:[%s2384 + $0xc] sm:$0xf]
          %v2393 = vunpack.c.l.b16 %v2385
          %v2394 = vunpack.c.l.b16 %v2386
          %v2395 = vunpack.c.l.b16 %v2387
          %v2396 = vunpack.c.l.b16 %v2388
          %v2397 = vpack.c.b16 %v2394, %v2393
          %v2398 = vpack.c.b16 %v2396, %v2395
          %2405 = vrot.lane.b32.xlu0 %v2375, 113
          %v2406 = vpop.permute.xlu0 %2405
          %2407 = vrot.lane.b32.xlu0 %v2376, 113
          %v2408 = vpop.permute.xlu0 %2407
          %2409 = vrot.lane.b32.xlu0 %v2377, 113
          %v2410 = vpop.permute.xlu0 %2409
          %2411 = vrot.lane.b32.xlu0 %v2378, 113
          %v2412 = vpop.permute.xlu0 %2411
          %2413 = vrot.lane.b32.xlu0 %v2379, 113
          %v2414 = vpop.permute.xlu0 %2413
          %2415 = vrot.lane.b32.xlu0 %v2380, 113
          %v2416 = vpop.permute.xlu0 %2415
          %v2417 = vsel %vm1210, %v2406, %v2408
          %v2418 = vsel %vm1210, %v2408, %v2410
          %v2419 = vsel %vm1210, %v2412, %v2414
          %v2420 = vsel %vm1210, %v2414, %v2416
          %v2426 = vsel %vm487, %v2397, 0
          %v2429 = vsel %vm487, %v2398, 0
          %2431 = vmatpush.bf16.msra.mxu0 0
          %2432 = vmatpush.bf16.msra.mxu0 0
          %2433 = vmatpush.bf16.msra.mxu0 0
          %2434 = vmatpush.bf16.msra.mxu0 0
          %2435 = vmatpush.bf16.msra.mxu0 0
          %2436 = vmatpush.bf16.msra.mxu0 0
          %2437 = vmatpush.bf16.msra.mxu0 %v2419
          %2438 = vmatpush.bf16.msra.mxu0 %v2417
          %2439 = vmatmul.bf16.gmra.mxu0 %v2426
          %v2440 = vpop.f32.mrf.mxu0
          %v2441 = vadd.f32 0.0, %v2440
          %v2442 = vpop.f32.mrf.mxu0
          %v2443 = vadd.f32 0.0, %v2442
          %2444 = vmatmul.bf16.gmra.mxu0 %v2429
          %v2445 = vpop.f32.mrf.mxu0
          %v2446 = vadd.f32 0.0, %v2445
          %v2447 = vpop.f32.mrf.mxu0
          %v2448 = vadd.f32 0.0, %v2447
          %2449 = vdwg.mxu0
          %2450 = vmatpush.bf16.msra.mxu0 0
          %2451 = vmatpush.bf16.msra.mxu0 0
          %2452 = vmatpush.bf16.msra.mxu0 0
          %2453 = vmatpush.bf16.msra.mxu0 0
          %2454 = vmatpush.bf16.msra.mxu0 0
          %2455 = vmatpush.bf16.msra.mxu0 0
          %2456 = vmatpush.bf16.msra.mxu0 %v2420
          %2457 = vmatpush.bf16.msra.mxu0 %v2418
          %2458 = vmatmul.bf16.gmra.mxu0 %v2426
          %v2459 = vpop.f32.mrf.mxu0
          %v2460 = vadd.f32 0.0, %v2459
          %v2461 = vpop.f32.mrf.mxu0
          %v2462 = vadd.f32 0.0, %v2461
          %2463 = vmatmul.bf16.gmra.mxu0 %v2429
          %v2464 = vpop.f32.mrf.mxu0
          %v2465 = vadd.f32 0.0, %v2464
          %v2466 = vpop.f32.mrf.mxu0
          %v2467 = vadd.f32 0.0, %v2466
          %2468 = vdwg.mxu0
          %v2469 = vadd.f32 %v2347, %v2441
          %v2470 = vadd.f32 %v2348, %v2460
          %v2471 = vadd.f32 %v2349, %v2443
          %v2472 = vadd.f32 %v2350, %v2462
          %v2473 = vadd.f32 %v2351, %v2446
          %v2474 = vadd.f32 %v2352, %v2465
          %v2475 = vadd.f32 %v2353, %v2448
          %v2476 = vadd.f32 %v2354, %v2467
          %s2477 = sadd.s32 %s1624, 7
          %s2478 = smul.u32 %s2477, 4
          %s2479 = smul.addr %s2478, 4
          %s2480 = scalar_lea.vmem %s1, %s2479
          %v2481 = vld [vmem:[%s2480] sm:$0xf]
          %v2482 = vld [vmem:[%s2480 + $0x4] sm:$0xf]
          %v2483 = vld [vmem:[%s2480 + $0x8] sm:$0xf]
          %v2484 = vld [vmem:[%s2480 + $0xc] sm:$0xf]
          %v2489 = vunpack.c.l.b16 %v2481
          %v2490 = vunpack.c.l.b16 %v2482
          %v2491 = vunpack.c.l.b16 %v2483
          %v2492 = vunpack.c.l.b16 %v2484
          %v2493 = vpack.c.b16 %v2490, %v2489
          %v2494 = vpack.c.b16 %v2492, %v2491
          %v2503 = vunpack.c.l.b16 %v2213
          %v2504 = vunpack.c.h.b16 %v2213
          %v2505 = vunpack.c.l.b16 %v2214
          %v2506 = vunpack.c.l.b16 %v2215
          %v2507 = vunpack.c.h.b16 %v2215
          %v2508 = vunpack.c.l.b16 %v2216
          %v2509 = vunpack.c.l.b16 %v2217
          %v2510 = vunpack.c.h.b16 %v2217
          %v2511 = vunpack.c.l.b16 %v2218
          %v2512 = vunpack.c.l.b16 %v2219
          %v2513 = vunpack.c.h.b16 %v2219
          %v2514 = vunpack.c.l.b16 %v2220
          %v2515 = vpack.c.b16 %v2506, %v2503
          %v2516 = vpack.c.b16 %v2507, %v2504
          %v2517 = vpack.c.b16 %v2508, %v2505
          %v2518 = vpack.c.b16 %v2512, %v2509
          %v2519 = vpack.c.b16 %v2513, %v2510
          %v2520 = vpack.c.b16 %v2514, %v2511
          %2521 = vrot.lane.b32.xlu0 %v2515, 112
          %v2522 = vpop.permute.xlu0 %2521
          %2523 = vrot.lane.b32.xlu0 %v2516, 112
          %v2524 = vpop.permute.xlu0 %2523
          %2525 = vrot.lane.b32.xlu0 %v2517, 112
          %v2526 = vpop.permute.xlu0 %2525
          %2527 = vrot.lane.b32.xlu0 %v2518, 112
          %v2528 = vpop.permute.xlu0 %2527
          %2529 = vrot.lane.b32.xlu0 %v2519, 112
          %v2530 = vpop.permute.xlu0 %2529
          %2531 = vrot.lane.b32.xlu0 %v2520, 112
          %v2532 = vpop.permute.xlu0 %2531
          %v2533 = vsel %vm1327, %v2522, %v2524
          %v2534 = vsel %vm1327, %v2524, %v2526
          %v2535 = vsel %vm1327, %v2528, %v2530
          %v2536 = vsel %vm1327, %v2530, %v2532
          %v2542 = vsel %vm487, %v2493, 0
          %v2545 = vsel %vm487, %v2494, 0
          %2547 = vmatpush.bf16.msra.mxu0 0
          %2548 = vmatpush.bf16.msra.mxu0 0
          %2549 = vmatpush.bf16.msra.mxu0 0
          %2550 = vmatpush.bf16.msra.mxu0 0
          %2551 = vmatpush.bf16.msra.mxu0 0
          %2552 = vmatpush.bf16.msra.mxu0 0
          %2553 = vmatpush.bf16.msra.mxu0 %v2535
          %2554 = vmatpush.bf16.msra.mxu0 %v2533
          %2555 = vmatmul.bf16.gmra.mxu0 %v2542
          %v2556 = vpop.f32.mrf.mxu0
          %v2557 = vadd.f32 0.0, %v2556
          %v2558 = vpop.f32.mrf.mxu0
          %v2559 = vadd.f32 0.0, %v2558
          %2560 = vmatmul.bf16.gmra.mxu0 %v2545
          %v2561 = vpop.f32.mrf.mxu0
          %v2562 = vadd.f32 0.0, %v2561
          %v2563 = vpop.f32.mrf.mxu0
          %v2564 = vadd.f32 0.0, %v2563
          %2565 = vdwg.mxu0
          %2566 = vmatpush.bf16.msra.mxu0 0
          %2567 = vmatpush.bf16.msra.mxu0 0
          %2568 = vmatpush.bf16.msra.mxu0 0
          %2569 = vmatpush.bf16.msra.mxu0 0
          %2570 = vmatpush.bf16.msra.mxu0 0
          %2571 = vmatpush.bf16.msra.mxu0 0
          %2572 = vmatpush.bf16.msra.mxu0 %v2536
          %2573 = vmatpush.bf16.msra.mxu0 %v2534
          %2574 = vmatmul.bf16.gmra.mxu0 %v2542
          %v2575 = vpop.f32.mrf.mxu0
          %v2576 = vadd.f32 0.0, %v2575
          %v2577 = vpop.f32.mrf.mxu0
          %v2578 = vadd.f32 0.0, %v2577
          %2579 = vmatmul.bf16.gmra.mxu0 %v2545
          %v2580 = vpop.f32.mrf.mxu0
          %v2581 = vadd.f32 0.0, %v2580
          %v2582 = vpop.f32.mrf.mxu0
          %v2583 = vadd.f32 0.0, %v2582
          %2584 = vdwg.mxu0
          %v2585 = vadd.f32 %v2469, %v2557
          %v2586 = vadd.f32 %v2470, %v2576
          %v2587 = vadd.f32 %v2471, %v2559
          %v2588 = vadd.f32 %v2472, %v2578
          %v2589 = vadd.f32 %v2473, %v2562
          %v2590 = vadd.f32 %v2474, %v2581
          %v2591 = vadd.f32 %v2475, %v2564
          %v2592 = vadd.f32 %v2476, %v2583
          %2593 = vrot.lane.b32.xlu0 %v1851, 17
          %v2594 = vpop.permute.xlu0 %2593
          %2595 = vrot.lane.b32.xlu0 %v1852, 17
          %v2596 = vpop.permute.xlu0 %2595
          %v2597 = vsel %vm1392, %v2594, %v2596
          %v2601 = vmul.f32 %v2221, %v2594
          %v2602 = vmul.f32 %v2222, %v2597
          %v2603 = vmul.f32 %v2223, %v2596
          %v2604 = vmul.f32 %v2224, %v2594
          %v2605 = vmul.f32 %v2225, %v2597
          %v2606 = vmul.f32 %v2226, %v2596
          %v2607 = vmul.f32 %v2227, %v2594
          %v2608 = vmul.f32 %v2228, %v2597
          %v2609 = vmul.f32 %v2229, %v2596
          %v2610 = vmul.f32 %v2230, %v2594
          %v2611 = vmul.f32 %v2231, %v2597
          %v2612 = vmul.f32 %v2232, %v2596
          %v2613 = vpack.c.bf16 %v2604, %v2601
          %v2614 = vpack.c.bf16 %v2605, %v2602
          %v2615 = vpack.c.bf16 %v2606, %v2603
          %v2616 = vpack.c.bf16 %v2610, %v2607
          %v2617 = vpack.c.bf16 %v2611, %v2608
          %v2618 = vpack.c.bf16 %v2612, %v2609
          %s2619 = sadd.s32 %s1624, 8
          %s2620 = smul.u32 %s2619, 4
          %s2621 = smul.addr %s2620, 4
          %s2622 = scalar_lea.vmem %s1, %s2621
          %v2623 = vld [vmem:[%s2622] sm:$0xf]
          %v2624 = vld [vmem:[%s2622 + $0x4] sm:$0xf]
          %v2625 = vld [vmem:[%s2622 + $0x8] sm:$0xf]
          %v2626 = vld [vmem:[%s2622 + $0xc] sm:$0xf]
          %v2631 = vunpack.c.l.b16 %v2623
          %v2632 = vunpack.c.l.b16 %v2624
          %v2633 = vunpack.c.l.b16 %v2625
          %v2634 = vunpack.c.l.b16 %v2626
          %v2635 = vpack.c.b16 %v2632, %v2631
          %v2636 = vpack.c.b16 %v2634, %v2633
          %2643 = vrot.lane.b32.xlu0 %v2613, 111
          %v2644 = vpop.permute.xlu0 %2643
          %2645 = vrot.lane.b32.xlu0 %v2614, 111
          %v2646 = vpop.permute.xlu0 %2645
          %2647 = vrot.lane.b32.xlu0 %v2615, 111
          %v2648 = vpop.permute.xlu0 %2647
          %2649 = vrot.lane.b32.xlu0 %v2616, 111
          %v2650 = vpop.permute.xlu0 %2649
          %2651 = vrot.lane.b32.xlu0 %v2617, 111
          %v2652 = vpop.permute.xlu0 %2651
          %2653 = vrot.lane.b32.xlu0 %v2618, 111
          %v2654 = vpop.permute.xlu0 %2653
          %v2655 = vsel %vm1451, %v2644, %v2646
          %v2656 = vsel %vm1451, %v2646, %v2648
          %v2657 = vsel %vm1451, %v2650, %v2652
          %v2658 = vsel %vm1451, %v2652, %v2654
          %v2664 = vsel %vm487, %v2635, 0
          %v2667 = vsel %vm487, %v2636, 0
          %2669 = vmatpush.bf16.msra.mxu0 0
          %2670 = vmatpush.bf16.msra.mxu0 0
          %2671 = vmatpush.bf16.msra.mxu0 0
          %2672 = vmatpush.bf16.msra.mxu0 0
          %2673 = vmatpush.bf16.msra.mxu0 0
          %2674 = vmatpush.bf16.msra.mxu0 0
          %2675 = vmatpush.bf16.msra.mxu0 %v2657
          %2676 = vmatpush.bf16.msra.mxu0 %v2655
          %2677 = vmatmul.bf16.gmra.mxu0 %v2664
          %v2678 = vpop.f32.mrf.mxu0
          %v2679 = vadd.f32 0.0, %v2678
          %v2680 = vpop.f32.mrf.mxu0
          %v2681 = vadd.f32 0.0, %v2680
          %2682 = vmatmul.bf16.gmra.mxu0 %v2667
          %v2683 = vpop.f32.mrf.mxu0
          %v2684 = vadd.f32 0.0, %v2683
          %v2685 = vpop.f32.mrf.mxu0
          %v2686 = vadd.f32 0.0, %v2685
          %2687 = vdwg.mxu0
          %2688 = vmatpush.bf16.msra.mxu0 0
          %2689 = vmatpush.bf16.msra.mxu0 0
          %2690 = vmatpush.bf16.msra.mxu0 0
          %2691 = vmatpush.bf16.msra.mxu0 0
          %2692 = vmatpush.bf16.msra.mxu0 0
          %2693 = vmatpush.bf16.msra.mxu0 0
          %2694 = vmatpush.bf16.msra.mxu0 %v2658
          %2695 = vmatpush.bf16.msra.mxu0 %v2656
          %2696 = vmatmul.bf16.gmra.mxu0 %v2664
          %v2697 = vpop.f32.mrf.mxu0
          %v2698 = vadd.f32 0.0, %v2697
          %v2699 = vpop.f32.mrf.mxu0
          %v2700 = vadd.f32 0.0, %v2699
          %2701 = vmatmul.bf16.gmra.mxu0 %v2667
          %v2702 = vpop.f32.mrf.mxu0
          %v2703 = vadd.f32 0.0, %v2702
          %v2704 = vpop.f32.mrf.mxu0
          %v2705 = vadd.f32 0.0, %v2704
          %2706 = vdwg.mxu0
          %v2707 = vadd.f32 %v2585, %v2679
          %v2708 = vadd.f32 %v2586, %v2698
          %v2709 = vadd.f32 %v2587, %v2681
          %v2710 = vadd.f32 %v2588, %v2700
          %v2711 = vadd.f32 %v2589, %v2684
          %v2712 = vadd.f32 %v2590, %v2703
          %v2713 = vadd.f32 %v2591, %v2686
          %v2714 = vadd.f32 %v2592, %v2705
          %s2715 = smul.u32 %s1554, 32
          %s2716 = scalar_lea.vmem %s2, %s2715
          %v2717 = vld [vmem:[%s2716] sm:$0xff]
          %v2718 = vld [vmem:[%s2716 + $0x8] sm:$0xff]
          %v2719 = vld [vmem:[%s2716 + $0x10] sm:$0xff]
          %v2720 = vld [vmem:[%s2716 + $0x18] sm:$0xff]
          %2722 = vset.pattern.permute.xlu0 0
          %2723 = vperm.xlu0 %2722, %v2717
          %v2724 = vpop.permute.xlu0 %2723
          %2727 = vset.pattern.permute.xlu0 0
          %2728 = vperm.xlu0 %2727, %v2718
          %v2729 = vpop.permute.xlu0 %2728
          %2732 = vset.pattern.permute.xlu0 0
          %2733 = vperm.xlu0 %2732, %v2719
          %v2734 = vpop.permute.xlu0 %2733
          %2737 = vset.pattern.permute.xlu0 0
          %2738 = vperm.xlu0 %2737, %v2720
          %v2739 = vpop.permute.xlu0 %2738
          %v2741 = vadd.f32 %v2707, %v2724
          %v2742 = vadd.f32 %v2708, %v2724
          %v2743 = vadd.f32 %v2709, %v2729
          %v2744 = vadd.f32 %v2710, %v2729
          %v2745 = vadd.f32 %v2711, %v2734
          %v2746 = vadd.f32 %v2712, %v2734
          %v2747 = vadd.f32 %v2713, %v2739
          %v2748 = vadd.f32 %v2714, %v2739
          %v2749 = vadd.f32 %v2741, %v2742
          %2750 = vadd.xlane.f32.xlu0 %v2749
          %v2751 = vpop.xlane.xlu0 %2750
          %v2752 = vadd.f32 %v2743, %v2744
          %2753 = vadd.xlane.f32.xlu0 %v2752
          %v2754 = vpop.xlane.xlu0 %2753
          %v2755 = vadd.f32 %v2745, %v2746
          %2756 = vadd.xlane.f32.xlu0 %v2755
          %v2757 = vpop.xlane.xlu0 %2756
          %v2758 = vadd.f32 %v2747, %v2748
          %2759 = vadd.xlane.f32.xlu0 %v2758
          %v2760 = vpop.xlane.xlu0 %2759
          %v2761 = vrcp.pop 256.0
          %v2762 = vmul.f32 256.0, %v2761
          %v2763 = vsub.f32 1.0, %v2762
          %v2764 = vmul.f32 %v2761, %v2763
          %v2765 = vadd.f32 %v2761, %v2764
          %vm2766 = vweird.f32 %v2761
          %v2767 = vsel %vm2766, %v2761, %v2765
          %v2768 = vmul.f32 %v2751, %v2767
          %v2769 = vmul.f32 %v2754, %v2767
          %v2770 = vmul.f32 %v2757, %v2767
          %v2771 = vmul.f32 %v2760, %v2767
          %s2772 = scalar_lea.vmem %s3, %s335
          %v2773 = vld [vmem:[%s2772] sm:$0x3]
          %s2774 = scalar_lea.vmem %s4, %s335
          %v2775 = vld [vmem:[%s2774] sm:$0x3]
          %v2777 = vsel %vm487, %v2773, 0
          %2779 = vmatpush.msra.mxu0 0.0
          %2780 = vmatpush.msra.mxu0 0.0
          %2781 = vmatpush.msra.mxu0 0.0
          %2782 = vmatpush.msra.mxu0 0.0
          %2783 = vmatpush.msra.mxu0 0.0
          %2784 = vmatpush.msra.mxu0 0.0
          %2785 = vmatpush.msra.mxu0 0.0
          %2786 = vmatpush.msra.mxu0 0.0
          %2787 = vmatpush.msra.mxu0 0.0
          %2788 = vmatpush.msra.mxu0 0.0
          %2789 = vmatpush.msra.mxu0 0.0
          %2790 = vmatpush.msra.mxu0 0.0
          %2791 = vmatpush.msra.mxu0 %v2771
          %2792 = vmatpush.msra.mxu0 %v2770
          %2793 = vmatpush.msra.mxu0 %v2769
          %2794 = vmatpush.msra.mxu0 %v2768
          %2795 = vmatmul.f32.gmra.mxu0 %v2777
          %v2796 = vpop.f32.mrf.mxu0
          %v2797 = vadd.f32 %v2775, %v2796
          %2798 = vdwg.mxu0
          %v2799 = vmax.f32 %v2797, 0.0
          %s2800 = smul.u32 %s322, 32
          %s2801 = scalar_lea.vmem %s5, %s2800
          %v2802 = vld [vmem:[%s2801] sm:$0xff]
          %v2803 = vld [vmem:[%s2801 + $0x8] sm:$0xff]
          %v2804 = vld [vmem:[%s2801 + $0x10] sm:$0xff]
          %v2805 = vld [vmem:[%s2801 + $0x18] sm:$0xff]
          %s2806 = scalar_lea.vmem %s6, %s2800
          %v2807 = vld [vmem:[%s2806] sm:$0xff]
          %v2808 = vld [vmem:[%s2806 + $0x8] sm:$0xff]
          %v2809 = vld [vmem:[%s2806 + $0x10] sm:$0xff]
          %v2810 = vld [vmem:[%s2806 + $0x18] sm:$0xff]
          %vm2811 = vcmask 15360
          %v2813 = vsel %vm2811, %v2802, 0
          %v2816 = vsel %vm2811, %v2803, 0
          %v2819 = vsel %vm2811, %v2804, 0
          %v2822 = vsel %vm2811, %v2805, 0
          %vm2824 = vcmask 1041408
          %v2826 = vsel %vm2824, %v2799, 0
          %2828 = vmatpush.msra.mxu0 0.0
          %2829 = vmatpush.msra.mxu0 0.0
          %2830 = vmatpush.msra.mxu0 0.0
          %2831 = vmatpush.msra.mxu0 0.0
          %2832 = vmatpush.msra.mxu0 0.0
          %2833 = vmatpush.msra.mxu0 0.0
          %2834 = vmatpush.msra.mxu0 0.0
          %2835 = vmatpush.msra.mxu0 0.0
          %2836 = vmatpush.msra.mxu0 0.0
          %2837 = vmatpush.msra.mxu0 0.0
          %2838 = vmatpush.msra.mxu0 0.0
          %2839 = vmatpush.msra.mxu0 0.0
          %2840 = vmatpush.msra.mxu0 0.0
          %2841 = vmatpush.msra.mxu0 0.0
          %2842 = vmatpush.msra.mxu0 0.0
          %2843 = vmatpush.msra.mxu0 %v2826
          %2844 = vmatmul.f32.gmra.mxu0 %v2813
          %v2845 = vpop.f32.mrf.mxu0
          %v2846 = vadd.f32 %v2807, %v2845
          %2847 = vmatmul.f32.gmra.mxu0 %v2816
          %v2848 = vpop.f32.mrf.mxu0
          %v2849 = vadd.f32 %v2808, %v2848
          %2850 = vmatmul.f32.gmra.mxu0 %v2819
          %v2851 = vpop.f32.mrf.mxu0
          %v2852 = vadd.f32 %v2809, %v2851
          %2853 = vmatmul.f32.gmra.mxu0 %v2822
          %v2854 = vpop.f32.mrf.mxu0
          %v2855 = vadd.f32 %v2810, %v2854
          %2856 = vdwg.mxu0
          %v2857 = vxor.u32 %v2846, 2147483648
          %v2858 = vxor.u32 %v2849, 2147483648
          %v2859 = vxor.u32 %v2852, 2147483648
          %v2860 = vxor.u32 %v2855, 2147483648
          %v2861 = vmul.f32 %v2857, 1.442695
          %v2862 = vpow.pop %v2861
          %v2863 = vmul.f32 %v2858, 1.442695
          %v2864 = vpow.pop %v2863
          %v2865 = vmul.f32 %v2859, 1.442695
          %v2866 = vpow.pop %v2865
          %v2867 = vmul.f32 %v2860, 1.442695
          %v2868 = vpow.pop %v2867
          %v2869 = vadd.f32 %v2862, 1.0
          %v2870 = vadd.f32 %v2864, 1.0
          %v2871 = vadd.f32 %v2866, 1.0
          %v2872 = vadd.f32 %v2868, 1.0
          %v2873 = vrcp.pop %v2869
          %v2874 = vmul.f32 %v2869, %v2873
          %v2875 = vsub.f32 1.0, %v2874
          %v2876 = vmul.f32 %v2873, %v2875
          %v2877 = vadd.f32 %v2873, %v2876
          %vm2878 = vweird.f32 %v2869
          %vm2879 = vweird.f32 %v2873
          %vm2880 = vmor %vm2878, %vm2879
          %v2881 = vsel %vm2880, %v2873, %v2877
          %v2882 = vand.u32 2147483647, %v2869
          %vm2883 = vcmp.eq.f32.partialorder %v2882, 8.507059e+37
          %v2884 = vand.u32 %v2869, 2147483648
          %v2885 = vor.u32 1.1754944e-38, %v2884
          %v2886 = vsel %vm2883, %v2885, %v2881
          %v2887 = vmul.f32 1.0, %v2886
          %v2888 = vrcp.pop %v2870
          %v2889 = vmul.f32 %v2870, %v2888
          %v2890 = vsub.f32 1.0, %v2889
          %v2891 = vmul.f32 %v2888, %v2890
          %v2892 = vadd.f32 %v2888, %v2891
          %vm2893 = vweird.f32 %v2870
          %vm2894 = vweird.f32 %v2888
          %vm2895 = vmor %vm2893, %vm2894
          %v2896 = vsel %vm2895, %v2888, %v2892
          %v2897 = vand.u32 2147483647, %v2870
          %vm2898 = vcmp.eq.f32.partialorder %v2897, 8.507059e+37
          %v2899 = vand.u32 %v2870, 2147483648
          %v2900 = vor.u32 1.1754944e-38, %v2899
          %v2901 = vsel %vm2898, %v2900, %v2896
          %v2902 = vmul.f32 1.0, %v2901
          %v2903 = vrcp.pop %v2871
          %v2904 = vmul.f32 %v2871, %v2903
          %v2905 = vsub.f32 1.0, %v2904
          %v2906 = vmul.f32 %v2903, %v2905
          %v2907 = vadd.f32 %v2903, %v2906
          %vm2908 = vweird.f32 %v2871
          %vm2909 = vweird.f32 %v2903
          %vm2910 = vmor %vm2908, %vm2909
          %v2911 = vsel %vm2910, %v2903, %v2907
          %v2912 = vand.u32 2147483647, %v2871
          %vm2913 = vcmp.eq.f32.partialorder %v2912, 8.507059e+37
          %v2914 = vand.u32 %v2871, 2147483648
          %v2915 = vor.u32 1.1754944e-38, %v2914
          %v2916 = vsel %vm2913, %v2915, %v2911
          %v2917 = vmul.f32 1.0, %v2916
          %v2918 = vrcp.pop %v2872
          %v2919 = vmul.f32 %v2872, %v2918
          %v2920 = vsub.f32 1.0, %v2919
          %v2921 = vmul.f32 %v2918, %v2920
          %v2922 = vadd.f32 %v2918, %v2921
          %vm2923 = vweird.f32 %v2872
          %vm2924 = vweird.f32 %v2918
          %vm2925 = vmor %vm2923, %vm2924
          %v2926 = vsel %vm2925, %v2918, %v2922
          %v2927 = vand.u32 2147483647, %v2872
          %vm2928 = vcmp.eq.f32.partialorder %v2927, 8.507059e+37
          %v2929 = vand.u32 %v2872, 2147483648
          %v2930 = vor.u32 1.1754944e-38, %v2929
          %v2931 = vsel %vm2928, %v2930, %v2926
          %v2932 = vmul.f32 1.0, %v2931
          %2934 = vset.pattern.permute.xlu0 0
          %2935 = vperm.xlu0 %2934, %v2887
          %v2936 = vpop.permute.xlu0 %2935
          %2939 = vset.pattern.permute.xlu0 0
          %2940 = vperm.xlu0 %2939, %v2902
          %v2941 = vpop.permute.xlu0 %2940
          %2944 = vset.pattern.permute.xlu0 0
          %2945 = vperm.xlu0 %2944, %v2917
          %v2946 = vpop.permute.xlu0 %2945
          %2949 = vset.pattern.permute.xlu0 0
          %2950 = vperm.xlu0 %2949, %v2932
          %v2951 = vpop.permute.xlu0 %2950
          %v2953 = vmul.f32 %v2741, %v2936
          %v2954 = vmul.f32 %v2742, %v2936
          %v2955 = vmul.f32 %v2743, %v2941
          %v2956 = vmul.f32 %v2744, %v2941
          %v2957 = vmul.f32 %v2745, %v2946
          %v2958 = vmul.f32 %v2746, %v2946
          %v2959 = vmul.f32 %v2747, %v2951
          %v2960 = vmul.f32 %v2748, %v2951
          %v2961 = vadd.f32 %v2953, %v327
          %v2962 = vadd.f32 %v2954, %v328
          %v2963 = vadd.f32 %v2955, %v329
          %v2964 = vadd.f32 %v2956, %v330
          %v2965 = vadd.f32 %v2957, %v331
          %v2966 = vadd.f32 %v2958, %v332
          %v2967 = vadd.f32 %v2959, %v333
          %v2968 = vadd.f32 %v2960, %v334
        $region57: #{tpu_custom_call.1} parent=51 // loop_footer
          %s326 = sadd.s32 1, %s322
        $region58: #{tpu_custom_call.1} parent=51 // loop_footer_branch
          %321 = sbr.rel target = $region54
        $region59: #{tpu_custom_call.1} parent=51 // loop_exit
          _
        %v2969 = vpack.c.bf16 %v328, %v327
        %v2970 = vpack.c.bf16 %v330, %v329
        %v2971 = vpack.c.bf16 %v332, %v331
        %v2972 = vpack.c.bf16 %v334, %v333
        %2973 = vst [vmem:[#allocation2 + $0x4] sm:$0xff] %v2969
        %2974 = vst [vmem:[#allocation2 + $0x14] sm:$0xff] %v2970
        %2975 = vst [vmem:[#allocation2 + $0x24] sm:$0xff] %v2971
        %2976 = vst [vmem:[#allocation2 + $0x34] sm:$0xff] %v2972
        %v2977 = vld [vmem:[#allocation2] sm:$0xff]
        %v2978 = vld [vmem:[#allocation2 + $0x8] sm:$0xf]
        %v2979 = vld [vmem:[#allocation2 + $0x10] sm:$0xff]
        %v2980 = vld [vmem:[#allocation2 + $0x18] sm:$0xf]
        %v2981 = vld [vmem:[#allocation2 + $0x20] sm:$0xff]
        %v2982 = vld [vmem:[#allocation2 + $0x28] sm:$0xf]
        %v2983 = vld [vmem:[#allocation2 + $0x30] sm:$0xff]
        %v2984 = vld [vmem:[#allocation2 + $0x38] sm:$0xf]
        %v2985 = vld [vmem:[%s7] sm:$0x3]
        %2987 = vst [vmem:[#allocation1] ss:$9 sm:$0xff] %v2985
        %v2988 = vld [vmem:[#allocation1] sm:$0xff]
        %v2989 = vld [vmem:[#allocation1 + $0x9] sm:$0xff]
        %v2990 = vpack.i.b16 %v2988, %v2988
        %v2992 = vperm.slane %v2990, 0
        %v2993 = vpack.i.b16 %v2989, %v2989
        %v2995 = vperm.slane %v2993, 0
        %v2996 = vunpack.c.l.bf16 %v2977
        %v2997 = vunpack.c.h.bf16 %v2977
        %v2998 = vunpack.c.l.bf16 %v2978
        %v2999 = vunpack.c.l.bf16 %v2979
        %v3000 = vunpack.c.h.bf16 %v2979
        %v3001 = vunpack.c.l.bf16 %v2980
        %v3002 = vunpack.c.l.bf16 %v2981
        %v3003 = vunpack.c.h.bf16 %v2981
        %v3004 = vunpack.c.l.bf16 %v2982
        %v3005 = vunpack.c.l.bf16 %v2983
        %v3006 = vunpack.c.h.bf16 %v2983
        %v3007 = vunpack.c.l.bf16 %v2984
        %v3008 = vunpack.c.l.bf16 %v2992
        %v3009 = vunpack.c.l.bf16 %v2995
        %3012 = vrot.lane.b32.xlu0 %v3008, 111
        %v3013 = vpop.permute.xlu0 %3012
        %3014 = vrot.lane.b32.xlu0 %v3009, 111
        %v3015 = vpop.permute.xlu0 %3014
        %vm3016 = vcmask 908288
        %v3017 = vsel %vm3016, %v3013, %v3015
        %v3021 = vmul.f32 %v2996, %v3013
        %v3022 = vmul.f32 %v2997, %v3017
        %v3023 = vmul.f32 %v2998, %v3015
        %v3024 = vmul.f32 %v2999, %v3013
        %v3025 = vmul.f32 %v3000, %v3017
        %v3026 = vmul.f32 %v3001, %v3015
        %v3027 = vmul.f32 %v3002, %v3013
        %v3028 = vmul.f32 %v3003, %v3017
        %v3029 = vmul.f32 %v3004, %v3015
        %v3030 = vmul.f32 %v3005, %v3013
        %v3031 = vmul.f32 %v3006, %v3017
        %v3032 = vmul.f32 %v3007, %v3015
        %v3033 = vpack.c.bf16 %v3024, %v3021
        %v3034 = vpack.c.bf16 %v3025, %v3022
        %v3035 = vpack.c.bf16 %v3026, %v3023
        %v3036 = vpack.c.bf16 %v3030, %v3027
        %v3037 = vpack.c.bf16 %v3031, %v3028
        %v3038 = vpack.c.bf16 %v3032, %v3029
        %s3039 = scalar_lea.vmem %s1, 576
        %v3040 = vld [vmem:[%s3039] sm:$0xf]
        %v3041 = vld [vmem:[%s3039 + $0x4] sm:$0xf]
        %v3042 = vld [vmem:[%s3039 + $0x8] sm:$0xf]
        %v3043 = vld [vmem:[%s3039 + $0xc] sm:$0xf]
        %v3044 = vld [vmem:[#allocation2] sm:$0xff]
        %v3045 = vld [vmem:[#allocation2 + $0x8] sm:$0xf]
        %v3046 = vld [vmem:[#allocation2 + $0x10] sm:$0xff]
        %v3047 = vld [vmem:[#allocation2 + $0x18] sm:$0xf]
        %v3048 = vld [vmem:[#allocation2 + $0x20] sm:$0xff]
        %v3049 = vld [vmem:[#allocation2 + $0x28] sm:$0xf]
        %v3050 = vld [vmem:[#allocation2 + $0x30] sm:$0xff]
        %v3051 = vld [vmem:[#allocation2 + $0x38] sm:$0xf]
        %s3052 = scalar_lea.vmem %s1, 592
        %v3053 = vld [vmem:[%s3052] sm:$0xf]
        %v3054 = vld [vmem:[%s3052 + $0x4] sm:$0xf]
        %v3055 = vld [vmem:[%s3052 + $0x8] sm:$0xf]
        %v3056 = vld [vmem:[%s3052 + $0xc] sm:$0xf]
        %v3061 = vunpack.c.l.b16 %v3053
        %v3062 = vunpack.c.l.b16 %v3054
        %v3063 = vunpack.c.l.b16 %v3055
        %v3064 = vunpack.c.l.b16 %v3056
        %v3065 = vpack.c.b16 %v3062, %v3061
        %v3066 = vpack.c.b16 %v3064, %v3063
        %v3075 = vunpack.c.l.b16 %v3044
        %v3076 = vunpack.c.h.b16 %v3044
        %v3077 = vunpack.c.l.b16 %v3045
        %v3078 = vunpack.c.l.b16 %v3046
        %v3079 = vunpack.c.h.b16 %v3046
        %v3080 = vunpack.c.l.b16 %v3047
        %v3081 = vunpack.c.l.b16 %v3048
        %v3082 = vunpack.c.h.b16 %v3048
        %v3083 = vunpack.c.l.b16 %v3049
        %v3084 = vunpack.c.l.b16 %v3050
        %v3085 = vunpack.c.h.b16 %v3050
        %v3086 = vunpack.c.l.b16 %v3051
        %v3087 = vpack.c.b16 %v3078, %v3075
        %v3088 = vpack.c.b16 %v3079, %v3076
        %v3089 = vpack.c.b16 %v3080, %v3077
        %v3090 = vpack.c.b16 %v3084, %v3081
        %v3091 = vpack.c.b16 %v3085, %v3082
        %v3092 = vpack.c.b16 %v3086, %v3083
        %3093 = vrot.lane.b32.xlu0 %v3087, 16
        %v3094 = vpop.permute.xlu0 %3093
        %3095 = vrot.lane.b32.xlu0 %v3088, 16
        %v3096 = vpop.permute.xlu0 %3095
        %3097 = vrot.lane.b32.xlu0 %v3089, 16
        %v3098 = vpop.permute.xlu0 %3097
        %3099 = vrot.lane.b32.xlu0 %v3090, 16
        %v3100 = vpop.permute.xlu0 %3099
        %3101 = vrot.lane.b32.xlu0 %v3091, 16
        %v3102 = vpop.permute.xlu0 %3101
        %3103 = vrot.lane.b32.xlu0 %v3092, 16
        %v3104 = vpop.permute.xlu0 %3103
        %vm3105 = vcmask 130048
        %v3106 = vsel %vm3105, %v3094, %v3096
        %v3107 = vsel %vm3105, %v3096, %v3098
        %v3108 = vsel %vm3105, %v3100, %v3102
        %v3109 = vsel %vm3105, %v3102, %v3104
        %vm3114 = vcmask 261120
        %v3116 = vsel %vm3114, %v3065, 0
        %v3119 = vsel %vm3114, %v3066, 0
        %3121 = vmatpush.bf16.msra.mxu0 0
        %3122 = vmatpush.bf16.msra.mxu0 0
        %3123 = vmatpush.bf16.msra.mxu0 0
        %3124 = vmatpush.bf16.msra.mxu0 0
        %3125 = vmatpush.bf16.msra.mxu0 0
        %3126 = vmatpush.bf16.msra.mxu0 0
        %3127 = vmatpush.bf16.msra.mxu0 %v3108
        %3128 = vmatpush.bf16.msra.mxu0 %v3106
        %3129 = vmatmul.bf16.gmra.mxu0 %v3116
        %v3130 = vpop.f32.mrf.mxu0
        %v3131 = vadd.f32 0.0, %v3130
        %v3132 = vpop.f32.mrf.mxu0
        %v3133 = vadd.f32 0.0, %v3132
        %3134 = vmatmul.bf16.gmra.mxu0 %v3119
        %v3135 = vpop.f32.mrf.mxu0
        %v3136 = vadd.f32 0.0, %v3135
        %v3137 = vpop.f32.mrf.mxu0
        %v3138 = vadd.f32 0.0, %v3137
        %3139 = vdwg.mxu0
        %3140 = vmatpush.bf16.msra.mxu0 0
        %3141 = vmatpush.bf16.msra.mxu0 0
        %3142 = vmatpush.bf16.msra.mxu0 0
        %3143 = vmatpush.bf16.msra.mxu0 0
        %3144 = vmatpush.bf16.msra.mxu0 0
        %3145 = vmatpush.bf16.msra.mxu0 0
        %3146 = vmatpush.bf16.msra.mxu0 %v3109
        %3147 = vmatpush.bf16.msra.mxu0 %v3107
        %3148 = vmatmul.bf16.gmra.mxu0 %v3116
        %v3149 = vpop.f32.mrf.mxu0
        %v3150 = vadd.f32 0.0, %v3149
        %v3151 = vpop.f32.mrf.mxu0
        %v3152 = vadd.f32 0.0, %v3151
        %3153 = vmatmul.bf16.gmra.mxu0 %v3119
        %v3154 = vpop.f32.mrf.mxu0
        %v3155 = vadd.f32 0.0, %v3154
        %v3156 = vpop.f32.mrf.mxu0
        %v3157 = vadd.f32 0.0, %v3156
        %3158 = vdwg.mxu0
        %v3163 = vunpack.c.l.b16 %v3040
        %v3164 = vunpack.c.l.b16 %v3041
        %v3165 = vunpack.c.l.b16 %v3042
        %v3166 = vunpack.c.l.b16 %v3043
        %v3167 = vpack.c.b16 %v3164, %v3163
        %v3168 = vpack.c.b16 %v3166, %v3165
        %3175 = vrot.lane.b32.xlu0 %v3033, 17
        %v3176 = vpop.permute.xlu0 %3175
        %3177 = vrot.lane.b32.xlu0 %v3034, 17
        %v3178 = vpop.permute.xlu0 %3177
        %3179 = vrot.lane.b32.xlu0 %v3035, 17
        %v3180 = vpop.permute.xlu0 %3179
        %3181 = vrot.lane.b32.xlu0 %v3036, 17
        %v3182 = vpop.permute.xlu0 %3181
        %3183 = vrot.lane.b32.xlu0 %v3037, 17
        %v3184 = vpop.permute.xlu0 %3183
        %3185 = vrot.lane.b32.xlu0 %v3038, 17
        %v3186 = vpop.permute.xlu0 %3185
        %vm3187 = vcmask 138240
        %v3188 = vsel %vm3187, %v3176, %v3178
        %v3189 = vsel %vm3187, %v3178, %v3180
        %v3190 = vsel %vm3187, %v3182, %v3184
        %v3191 = vsel %vm3187, %v3184, %v3186
        %v3197 = vsel %vm3114, %v3167, 0
        %v3200 = vsel %vm3114, %v3168, 0
        %3202 = vmatpush.bf16.msra.mxu0 0
        %3203 = vmatpush.bf16.msra.mxu0 0
        %3204 = vmatpush.bf16.msra.mxu0 0
        %3205 = vmatpush.bf16.msra.mxu0 0
        %3206 = vmatpush.bf16.msra.mxu0 0
        %3207 = vmatpush.bf16.msra.mxu0 0
        %3208 = vmatpush.bf16.msra.mxu0 %v3190
        %3209 = vmatpush.bf16.msra.mxu0 %v3188
        %3210 = vmatmul.bf16.gmra.mxu0 %v3197
        %v3211 = vpop.f32.mrf.mxu0
        %v3212 = vadd.f32 %v3131, %v3211
        %v3213 = vpop.f32.mrf.mxu0
        %v3214 = vadd.f32 %v3133, %v3213
        %3215 = vmatmul.bf16.gmra.mxu0 %v3200
        %v3216 = vpop.f32.mrf.mxu0
        %v3217 = vadd.f32 %v3136, %v3216
        %v3218 = vpop.f32.mrf.mxu0
        %v3219 = vadd.f32 %v3138, %v3218
        %3220 = vdwg.mxu0
        %3221 = vmatpush.bf16.msra.mxu0 0
        %3222 = vmatpush.bf16.msra.mxu0 0
        %3223 = vmatpush.bf16.msra.mxu0 0
        %3224 = vmatpush.bf16.msra.mxu0 0
        %3225 = vmatpush.bf16.msra.mxu0 0
        %3226 = vmatpush.bf16.msra.mxu0 0
        %3227 = vmatpush.bf16.msra.mxu0 %v3191
        %3228 = vmatpush.bf16.msra.mxu0 %v3189
        %3229 = vmatmul.bf16.gmra.mxu0 %v3197
        %v3230 = vpop.f32.mrf.mxu0
        %v3231 = vadd.f32 %v3150, %v3230
        %v3232 = vpop.f32.mrf.mxu0
        %v3233 = vadd.f32 %v3152, %v3232
        %3234 = vmatmul.bf16.gmra.mxu0 %v3200
        %v3235 = vpop.f32.mrf.mxu0
        %v3236 = vadd.f32 %v3155, %v3235
        %v3237 = vpop.f32.mrf.mxu0
        %v3238 = vadd.f32 %v3157, %v3237
        %3239 = vdwg.mxu0
        %s3240 = scalar_lea.vmem %s7, 2
        %v3241 = vld [vmem:[%s3240] sm:$0x3]
        %3243 = vst [vmem:[#allocation1] ss:$9 sm:$0xff] %v3241
        %v3244 = vld [vmem:[#allocation1] sm:$0xff]
        %v3245 = vld [vmem:[#allocation1 + $0x9] sm:$0xff]
        %v3246 = vpack.i.b16 %v3244, %v3244
        %v3248 = vperm.slane %v3246, 0
        %v3249 = vpack.i.b16 %v3245, %v3245
        %v3251 = vperm.slane %v3249, 0
        %v3252 = vunpack.c.l.bf16 %v3044
        %v3253 = vunpack.c.h.bf16 %v3044
        %v3254 = vunpack.c.l.bf16 %v3045
        %v3255 = vunpack.c.l.bf16 %v3046
        %v3256 = vunpack.c.h.bf16 %v3046
        %v3257 = vunpack.c.l.bf16 %v3047
        %v3258 = vunpack.c.l.bf16 %v3048
        %v3259 = vunpack.c.h.bf16 %v3048
        %v3260 = vunpack.c.l.bf16 %v3049
        %v3261 = vunpack.c.l.bf16 %v3050
        %v3262 = vunpack.c.h.bf16 %v3050
        %v3263 = vunpack.c.l.bf16 %v3051
        %v3264 = vunpack.c.l.bf16 %v3248
        %v3265 = vunpack.c.l.bf16 %v3251
        %3268 = vrot.lane.b32.xlu0 %v3264, 113
        %v3269 = vpop.permute.xlu0 %3268
        %3270 = vrot.lane.b32.xlu0 %v3265, 113
        %v3271 = vpop.permute.xlu0 %3270
        %vm3272 = vcmask 924672
        %v3273 = vsel %vm3272, %v3269, %v3271
        %v3277 = vmul.f32 %v3252, %v3269
        %v3278 = vmul.f32 %v3253, %v3273
        %v3279 = vmul.f32 %v3254, %v3271
        %v3280 = vmul.f32 %v3255, %v3269
        %v3281 = vmul.f32 %v3256, %v3273
        %v3282 = vmul.f32 %v3257, %v3271
        %v3283 = vmul.f32 %v3258, %v3269
        %v3284 = vmul.f32 %v3259, %v3273
        %v3285 = vmul.f32 %v3260, %v3271
        %v3286 = vmul.f32 %v3261, %v3269
        %v3287 = vmul.f32 %v3262, %v3273
        %v3288 = vmul.f32 %v3263, %v3271
        %v3289 = vpack.c.bf16 %v3280, %v3277
        %v3290 = vpack.c.bf16 %v3281, %v3278
        %v3291 = vpack.c.bf16 %v3282, %v3279
        %v3292 = vpack.c.bf16 %v3286, %v3283
        %v3293 = vpack.c.bf16 %v3287, %v3284
        %v3294 = vpack.c.bf16 %v3288, %v3285
        %s3295 = scalar_lea.vmem %s1, 608
        %v3296 = vld [vmem:[%s3295] sm:$0xf]
        %v3297 = vld [vmem:[%s3295 + $0x4] sm:$0xf]
        %v3298 = vld [vmem:[%s3295 + $0x8] sm:$0xf]
        %v3299 = vld [vmem:[%s3295 + $0xc] sm:$0xf]
        %v3304 = vunpack.c.l.b16 %v3296
        %v3305 = vunpack.c.l.b16 %v3297
        %v3306 = vunpack.c.l.b16 %v3298
        %v3307 = vunpack.c.l.b16 %v3299
        %v3308 = vpack.c.b16 %v3305, %v3304
        %v3309 = vpack.c.b16 %v3307, %v3306
        %3316 = vrot.lane.b32.xlu0 %v3289, 15
        %v3317 = vpop.permute.xlu0 %3316
        %3318 = vrot.lane.b32.xlu0 %v3290, 15
        %v3319 = vpop.permute.xlu0 %3318
        %3320 = vrot.lane.b32.xlu0 %v3291, 15
        %v3321 = vpop.permute.xlu0 %3320
        %3322 = vrot.lane.b32.xlu0 %v3292, 15
        %v3323 = vpop.permute.xlu0 %3322
        %3324 = vrot.lane.b32.xlu0 %v3293, 15
        %v3325 = vpop.permute.xlu0 %3324
        %3326 = vrot.lane.b32.xlu0 %v3294, 15
        %v3327 = vpop.permute.xlu0 %3326
        %vm3328 = vcmask 121856
        %v3329 = vsel %vm3328, %v3317, %v3319
        %v3330 = vsel %vm3328, %v3319, %v3321
        %v3331 = vsel %vm3328, %v3323, %v3325
        %v3332 = vsel %vm3328, %v3325, %v3327
        %v3338 = vsel %vm3114, %v3308, 0
        %v3341 = vsel %vm3114, %v3309, 0
        %3343 = vmatpush.bf16.msra.mxu0 0
        %3344 = vmatpush.bf16.msra.mxu0 0
        %3345 = vmatpush.bf16.msra.mxu0 0
        %3346 = vmatpush.bf16.msra.mxu0 0
        %3347 = vmatpush.bf16.msra.mxu0 0
        %3348 = vmatpush.bf16.msra.mxu0 0
        %3349 = vmatpush.bf16.msra.mxu0 %v3331
        %3350 = vmatpush.bf16.msra.mxu0 %v3329
        %3351 = vmatmul.bf16.gmra.mxu0 %v3338
        %v3352 = vpop.f32.mrf.mxu0
        %v3353 = vadd.f32 0.0, %v3352
        %v3354 = vpop.f32.mrf.mxu0
        %v3355 = vadd.f32 0.0, %v3354
        %3356 = vmatmul.bf16.gmra.mxu0 %v3341
        %v3357 = vpop.f32.mrf.mxu0
        %v3358 = vadd.f32 0.0, %v3357
        %v3359 = vpop.f32.mrf.mxu0
        %v3360 = vadd.f32 0.0, %v3359
        %3361 = vdwg.mxu0
        %3362 = vmatpush.bf16.msra.mxu0 0
        %3363 = vmatpush.bf16.msra.mxu0 0
        %3364 = vmatpush.bf16.msra.mxu0 0
        %3365 = vmatpush.bf16.msra.mxu0 0
        %3366 = vmatpush.bf16.msra.mxu0 0
        %3367 = vmatpush.bf16.msra.mxu0 0
        %3368 = vmatpush.bf16.msra.mxu0 %v3332
        %3369 = vmatpush.bf16.msra.mxu0 %v3330
        %3370 = vmatmul.bf16.gmra.mxu0 %v3338
        %v3371 = vpop.f32.mrf.mxu0
        %v3372 = vadd.f32 0.0, %v3371
        %v3373 = vpop.f32.mrf.mxu0
        %v3374 = vadd.f32 0.0, %v3373
        %3375 = vmatmul.bf16.gmra.mxu0 %v3341
        %v3376 = vpop.f32.mrf.mxu0
        %v3377 = vadd.f32 0.0, %v3376
        %v3378 = vpop.f32.mrf.mxu0
        %v3379 = vadd.f32 0.0, %v3378
        %3380 = vdwg.mxu0
        %v3381 = vadd.f32 %v3212, %v3353
        %v3382 = vadd.f32 %v3231, %v3372
        %v3383 = vadd.f32 %v3214, %v3355
        %v3384 = vadd.f32 %v3233, %v3374
        %v3385 = vadd.f32 %v3217, %v3358
        %v3386 = vadd.f32 %v3236, %v3377
        %v3387 = vadd.f32 %v3219, %v3360
        %v3388 = vadd.f32 %v3238, %v3379
        %v3389 = vld [vmem:[#allocation2] sm:$0xff]
        %v3390 = vld [vmem:[#allocation2 + $0x8] sm:$0xf]
        %v3391 = vld [vmem:[#allocation2 + $0x10] sm:$0xff]
        %v3392 = vld [vmem:[#allocation2 + $0x18] sm:$0xf]
        %v3393 = vld [vmem:[#allocation2 + $0x20] sm:$0xff]
        %v3394 = vld [vmem:[#allocation2 + $0x28] sm:$0xf]
        %v3395 = vld [vmem:[#allocation2 + $0x30] sm:$0xff]
        %v3396 = vld [vmem:[#allocation2 + $0x38] sm:$0xf]
        %v3397 = vunpack.c.l.bf16 %v3389
        %v3398 = vunpack.c.h.bf16 %v3389
        %v3399 = vunpack.c.l.bf16 %v3390
        %v3400 = vunpack.c.l.bf16 %v3391
        %v3401 = vunpack.c.h.bf16 %v3391
        %v3402 = vunpack.c.l.bf16 %v3392
        %v3403 = vunpack.c.l.bf16 %v3393
        %v3404 = vunpack.c.h.bf16 %v3393
        %v3405 = vunpack.c.l.bf16 %v3394
        %v3406 = vunpack.c.l.bf16 %v3395
        %v3407 = vunpack.c.h.bf16 %v3395
        %v3408 = vunpack.c.l.bf16 %v3396
        %3409 = vrot.lane.b32.xlu0 %v3008, 127
        %v3410 = vpop.permute.xlu0 %3409
        %3411 = vrot.lane.b32.xlu0 %v3009, 127
        %v3412 = vpop.permute.xlu0 %3411
        %vm3413 = vcmask 1039360
        %v3414 = vsel %vm3413, %v3410, %v3412
        %v3418 = vmul.f32 %v3397, %v3410
        %v3419 = vmul.f32 %v3398, %v3414
        %v3420 = vmul.f32 %v3399, %v3412
        %v3421 = vmul.f32 %v3400, %v3410
        %v3422 = vmul.f32 %v3401, %v3414
        %v3423 = vmul.f32 %v3402, %v3412
        %v3424 = vmul.f32 %v3403, %v3410
        %v3425 = vmul.f32 %v3404, %v3414
        %v3426 = vmul.f32 %v3405, %v3412
        %v3427 = vmul.f32 %v3406, %v3410
        %v3428 = vmul.f32 %v3407, %v3414
        %v3429 = vmul.f32 %v3408, %v3412
        %v3430 = vpack.c.bf16 %v3421, %v3418
        %v3431 = vpack.c.bf16 %v3422, %v3419
        %v3432 = vpack.c.bf16 %v3423, %v3420
        %v3433 = vpack.c.bf16 %v3427, %v3424
        %v3434 = vpack.c.bf16 %v3428, %v3425
        %v3435 = vpack.c.bf16 %v3429, %v3426
        %s3436 = scalar_lea.vmem %s1, 624
        %v3437 = vld [vmem:[%s3436] sm:$0xf]
        %v3438 = vld [vmem:[%s3436 + $0x4] sm:$0xf]
        %v3439 = vld [vmem:[%s3436 + $0x8] sm:$0xf]
        %v3440 = vld [vmem:[%s3436 + $0xc] sm:$0xf]
        %v3445 = vunpack.c.l.b16 %v3437
        %v3446 = vunpack.c.l.b16 %v3438
        %v3447 = vunpack.c.l.b16 %v3439
        %v3448 = vunpack.c.l.b16 %v3440
        %v3449 = vpack.c.b16 %v3446, %v3445
        %v3450 = vpack.c.b16 %v3448, %v3447
        %3457 = vrot.lane.b32.xlu0 %v3430, 1
        %v3458 = vpop.permute.xlu0 %3457
        %3459 = vrot.lane.b32.xlu0 %v3431, 1
        %v3460 = vpop.permute.xlu0 %3459
        %3461 = vrot.lane.b32.xlu0 %v3432, 1
        %v3462 = vpop.permute.xlu0 %3461
        %3463 = vrot.lane.b32.xlu0 %v3433, 1
        %v3464 = vpop.permute.xlu0 %3463
        %3465 = vrot.lane.b32.xlu0 %v3434, 1
        %v3466 = vpop.permute.xlu0 %3465
        %3467 = vrot.lane.b32.xlu0 %v3435, 1
        %v3468 = vpop.permute.xlu0 %3467
        %vm3469 = vcmask 7168
        %v3470 = vsel %vm3469, %v3458, %v3460
        %v3471 = vsel %vm3469, %v3460, %v3462
        %v3472 = vsel %vm3469, %v3464, %v3466
        %v3473 = vsel %vm3469, %v3466, %v3468
        %v3479 = vsel %vm3114, %v3449, 0
        %v3482 = vsel %vm3114, %v3450, 0
        %3484 = vmatpush.bf16.msra.mxu0 0
        %3485 = vmatpush.bf16.msra.mxu0 0
        %3486 = vmatpush.bf16.msra.mxu0 0
        %3487 = vmatpush.bf16.msra.mxu0 0
        %3488 = vmatpush.bf16.msra.mxu0 0
        %3489 = vmatpush.bf16.msra.mxu0 0
        %3490 = vmatpush.bf16.msra.mxu0 %v3472
        %3491 = vmatpush.bf16.msra.mxu0 %v3470
        %3492 = vmatmul.bf16.gmra.mxu0 %v3479
        %v3493 = vpop.f32.mrf.mxu0
        %v3494 = vadd.f32 0.0, %v3493
        %v3495 = vpop.f32.mrf.mxu0
        %v3496 = vadd.f32 0.0, %v3495
        %3497 = vmatmul.bf16.gmra.mxu0 %v3482
        %v3498 = vpop.f32.mrf.mxu0
        %v3499 = vadd.f32 0.0, %v3498
        %v3500 = vpop.f32.mrf.mxu0
        %v3501 = vadd.f32 0.0, %v3500
        %3502 = vdwg.mxu0
        %3503 = vmatpush.bf16.msra.mxu0 0
        %3504 = vmatpush.bf16.msra.mxu0 0
        %3505 = vmatpush.bf16.msra.mxu0 0
        %3506 = vmatpush.bf16.msra.mxu0 0
        %3507 = vmatpush.bf16.msra.mxu0 0
        %3508 = vmatpush.bf16.msra.mxu0 0
        %3509 = vmatpush.bf16.msra.mxu0 %v3473
        %3510 = vmatpush.bf16.msra.mxu0 %v3471
        %3511 = vmatmul.bf16.gmra.mxu0 %v3479
        %v3512 = vpop.f32.mrf.mxu0
        %v3513 = vadd.f32 0.0, %v3512
        %v3514 = vpop.f32.mrf.mxu0
        %v3515 = vadd.f32 0.0, %v3514
        %3516 = vmatmul.bf16.gmra.mxu0 %v3482
        %v3517 = vpop.f32.mrf.mxu0
        %v3518 = vadd.f32 0.0, %v3517
        %v3519 = vpop.f32.mrf.mxu0
        %v3520 = vadd.f32 0.0, %v3519
        %3521 = vdwg.mxu0
        %v3522 = vadd.f32 %v3381, %v3494
        %v3523 = vadd.f32 %v3382, %v3513
        %v3524 = vadd.f32 %v3383, %v3496
        %v3525 = vadd.f32 %v3384, %v3515
        %v3526 = vadd.f32 %v3385, %v3499
        %v3527 = vadd.f32 %v3386, %v3518
        %v3528 = vadd.f32 %v3387, %v3501
        %v3529 = vadd.f32 %v3388, %v3520
        %v3530 = vld [vmem:[#allocation2 + $0x4] sm:$0xff]
        %v3531 = vld [vmem:[#allocation2 + $0x14] sm:$0xff]
        %v3532 = vld [vmem:[#allocation2 + $0x24] sm:$0xff]
        %v3533 = vld [vmem:[#allocation2 + $0x34] sm:$0xff]
        %s3534 = scalar_lea.vmem %s1, 640
        %v3535 = vld [vmem:[%s3534] sm:$0xf]
        %v3536 = vld [vmem:[%s3534 + $0x4] sm:$0xf]
        %v3537 = vld [vmem:[%s3534 + $0x8] sm:$0xf]
        %v3538 = vld [vmem:[%s3534 + $0xc] sm:$0xf]
        %v3543 = vunpack.c.l.b16 %v3535
        %v3544 = vunpack.c.l.b16 %v3536
        %v3545 = vunpack.c.l.b16 %v3537
        %v3546 = vunpack.c.l.b16 %v3538
        %v3547 = vpack.c.b16 %v3544, %v3543
        %v3548 = vpack.c.b16 %v3546, %v3545
        %v3553 = vunpack.c.l.b16 %v3530
        %v3554 = vunpack.c.h.b16 %v3530
        %v3555 = vunpack.c.l.b16 %v3531
        %v3556 = vunpack.c.h.b16 %v3531
        %v3557 = vunpack.c.l.b16 %v3532
        %v3558 = vunpack.c.h.b16 %v3532
        %v3559 = vunpack.c.l.b16 %v3533
        %v3560 = vunpack.c.h.b16 %v3533
        %v3561 = vpack.c.b16 %v3555, %v3553
        %v3562 = vpack.c.b16 %v3556, %v3554
        %v3563 = vpack.c.b16 %v3559, %v3557
        %v3564 = vpack.c.b16 %v3560, %v3558
        %v3570 = vsel %vm3114, %v3547, 0
        %v3573 = vsel %vm3114, %v3548, 0
        %3575 = vmatpush.bf16.msra.mxu0 0
        %3576 = vmatpush.bf16.msra.mxu0 0
        %3577 = vmatpush.bf16.msra.mxu0 0
        %3578 = vmatpush.bf16.msra.mxu0 0
        %3579 = vmatpush.bf16.msra.mxu0 0
        %3580 = vmatpush.bf16.msra.mxu0 0
        %3581 = vmatpush.bf16.msra.mxu0 %v3563
        %3582 = vmatpush.bf16.msra.mxu0 %v3561
        %3583 = vmatmul.bf16.gmra.mxu0 %v3570
        %v3584 = vpop.f32.mrf.mxu0
        %v3585 = vadd.f32 0.0, %v3584
        %v3586 = vpop.f32.mrf.mxu0
        %v3587 = vadd.f32 0.0, %v3586
        %3588 = vmatmul.bf16.gmra.mxu0 %v3573
        %v3589 = vpop.f32.mrf.mxu0
        %v3590 = vadd.f32 0.0, %v3589
        %v3591 = vpop.f32.mrf.mxu0
        %v3592 = vadd.f32 0.0, %v3591
        %3593 = vdwg.mxu0
        %3594 = vmatpush.bf16.msra.mxu0 0
        %3595 = vmatpush.bf16.msra.mxu0 0
        %3596 = vmatpush.bf16.msra.mxu0 0
        %3597 = vmatpush.bf16.msra.mxu0 0
        %3598 = vmatpush.bf16.msra.mxu0 0
        %3599 = vmatpush.bf16.msra.mxu0 0
        %3600 = vmatpush.bf16.msra.mxu0 %v3564
        %3601 = vmatpush.bf16.msra.mxu0 %v3562
        %3602 = vmatmul.bf16.gmra.mxu0 %v3570
        %v3603 = vpop.f32.mrf.mxu0
        %v3604 = vadd.f32 0.0, %v3603
        %v3605 = vpop.f32.mrf.mxu0
        %v3606 = vadd.f32 0.0, %v3605
        %3607 = vmatmul.bf16.gmra.mxu0 %v3573
        %v3608 = vpop.f32.mrf.mxu0
        %v3609 = vadd.f32 0.0, %v3608
        %v3610 = vpop.f32.mrf.mxu0
        %v3611 = vadd.f32 0.0, %v3610
        %3612 = vdwg.mxu0
        %v3613 = vadd.f32 %v3522, %v3585
        %v3614 = vadd.f32 %v3523, %v3604
        %v3615 = vadd.f32 %v3524, %v3587
        %v3616 = vadd.f32 %v3525, %v3606
        %v3617 = vadd.f32 %v3526, %v3590
        %v3618 = vadd.f32 %v3527, %v3609
        %v3619 = vadd.f32 %v3528, %v3592
        %v3620 = vadd.f32 %v3529, %v3611
        %v3621 = vld [vmem:[#allocation2 + $0x4] sm:$0xff]
        %v3622 = vld [vmem:[#allocation2 + $0xc] sm:$0xf]
        %v3623 = vld [vmem:[#allocation2 + $0x14] sm:$0xff]
        %v3624 = vld [vmem:[#allocation2 + $0x1c] sm:$0xf]
        %v3625 = vld [vmem:[#allocation2 + $0x24] sm:$0xff]
        %v3626 = vld [vmem:[#allocation2 + $0x2c] sm:$0xf]
        %v3627 = vld [vmem:[#allocation2 + $0x34] sm:$0xff]
        %v3628 = vld [vmem:[#allocation2 + $0x3c] sm:$0xf]
        %v3629 = vunpack.c.l.bf16 %v3621
        %v3630 = vunpack.c.h.bf16 %v3621
        %v3631 = vunpack.c.l.bf16 %v3622
        %v3632 = vunpack.c.l.bf16 %v3623
        %v3633 = vunpack.c.h.bf16 %v3623
        %v3634 = vunpack.c.l.bf16 %v3624
        %v3635 = vunpack.c.l.bf16 %v3625
        %v3636 = vunpack.c.h.bf16 %v3625
        %v3637 = vunpack.c.l.bf16 %v3626
        %v3638 = vunpack.c.l.bf16 %v3627
        %v3639 = vunpack.c.h.bf16 %v3627
        %v3640 = vunpack.c.l.bf16 %v3628
        %3641 = vrot.lane.b32.xlu0 %v3264, 1
        %v3642 = vpop.permute.xlu0 %3641
        %3643 = vrot.lane.b32.xlu0 %v3265, 1
        %v3644 = vpop.permute.xlu0 %3643
        %vm3645 = vcmask 7168
        %v3646 = vsel %vm3645, %v3642, %v3644
        %v3650 = vmul.f32 %v3629, %v3642
        %v3651 = vmul.f32 %v3630, %v3646
        %v3652 = vmul.f32 %v3631, %v3644
        %v3653 = vmul.f32 %v3632, %v3642
        %v3654 = vmul.f32 %v3633, %v3646
        %v3655 = vmul.f32 %v3634, %v3644
        %v3656 = vmul.f32 %v3635, %v3642
        %v3657 = vmul.f32 %v3636, %v3646
        %v3658 = vmul.f32 %v3637, %v3644
        %v3659 = vmul.f32 %v3638, %v3642
        %v3660 = vmul.f32 %v3639, %v3646
        %v3661 = vmul.f32 %v3640, %v3644
        %v3662 = vpack.c.bf16 %v3653, %v3650
        %v3663 = vpack.c.bf16 %v3654, %v3651
        %v3664 = vpack.c.bf16 %v3655, %v3652
        %v3665 = vpack.c.bf16 %v3659, %v3656
        %v3666 = vpack.c.bf16 %v3660, %v3657
        %v3667 = vpack.c.bf16 %v3661, %v3658
        %s3668 = scalar_lea.vmem %s1, 656
        %v3669 = vld [vmem:[%s3668] sm:$0xf]
        %v3670 = vld [vmem:[%s3668 + $0x4] sm:$0xf]
        %v3671 = vld [vmem:[%s3668 + $0x8] sm:$0xf]
        %v3672 = vld [vmem:[%s3668 + $0xc] sm:$0xf]
        %v3677 = vunpack.c.l.b16 %v3669
        %v3678 = vunpack.c.l.b16 %v3670
        %v3679 = vunpack.c.l.b16 %v3671
        %v3680 = vunpack.c.l.b16 %v3672
        %v3681 = vpack.c.b16 %v3678, %v3677
        %v3682 = vpack.c.b16 %v3680, %v3679
        %3689 = vrot.lane.b32.xlu0 %v3662, 127
        %v3690 = vpop.permute.xlu0 %3689
        %3691 = vrot.lane.b32.xlu0 %v3663, 127
        %v3692 = vpop.permute.xlu0 %3691
        %3693 = vrot.lane.b32.xlu0 %v3664, 127
        %v3694 = vpop.permute.xlu0 %3693
        %3695 = vrot.lane.b32.xlu0 %v3665, 127
        %v3696 = vpop.permute.xlu0 %3695
        %3697 = vrot.lane.b32.xlu0 %v3666, 127
        %v3698 = vpop.permute.xlu0 %3697
        %3699 = vrot.lane.b32.xlu0 %v3667, 127
        %v3700 = vpop.permute.xlu0 %3699
        %vm3701 = vcmask 1039360
        %v3702 = vsel %vm3701, %v3690, %v3692
        %v3703 = vsel %vm3701, %v3692, %v3694
        %v3704 = vsel %vm3701, %v3696, %v3698
        %v3705 = vsel %vm3701, %v3698, %v3700
        %v3711 = vsel %vm3114, %v3681, 0
        %v3714 = vsel %vm3114, %v3682, 0
        %3716 = vmatpush.bf16.msra.mxu0 0
        %3717 = vmatpush.bf16.msra.mxu0 0
        %3718 = vmatpush.bf16.msra.mxu0 0
        %3719 = vmatpush.bf16.msra.mxu0 0
        %3720 = vmatpush.bf16.msra.mxu0 0
        %3721 = vmatpush.bf16.msra.mxu0 0
        %3722 = vmatpush.bf16.msra.mxu0 %v3704
        %3723 = vmatpush.bf16.msra.mxu0 %v3702
        %3724 = vmatmul.bf16.gmra.mxu0 %v3711
        %v3725 = vpop.f32.mrf.mxu0
        %v3726 = vadd.f32 0.0, %v3725
        %v3727 = vpop.f32.mrf.mxu0
        %v3728 = vadd.f32 0.0, %v3727
        %3729 = vmatmul.bf16.gmra.mxu0 %v3714
        %v3730 = vpop.f32.mrf.mxu0
        %v3731 = vadd.f32 0.0, %v3730
        %v3732 = vpop.f32.mrf.mxu0
        %v3733 = vadd.f32 0.0, %v3732
        %3734 = vdwg.mxu0
        %3735 = vmatpush.bf16.msra.mxu0 0
        %3736 = vmatpush.bf16.msra.mxu0 0
        %3737 = vmatpush.bf16.msra.mxu0 0
        %3738 = vmatpush.bf16.msra.mxu0 0
        %3739 = vmatpush.bf16.msra.mxu0 0
        %3740 = vmatpush.bf16.msra.mxu0 0
        %3741 = vmatpush.bf16.msra.mxu0 %v3705
        %3742 = vmatpush.bf16.msra.mxu0 %v3703
        %3743 = vmatmul.bf16.gmra.mxu0 %v3711
        %v3744 = vpop.f32.mrf.mxu0
        %v3745 = vadd.f32 0.0, %v3744
        %v3746 = vpop.f32.mrf.mxu0
        %v3747 = vadd.f32 0.0, %v3746
        %3748 = vmatmul.bf16.gmra.mxu0 %v3714
        %v3749 = vpop.f32.mrf.mxu0
        %v3750 = vadd.f32 0.0, %v3749
        %v3751 = vpop.f32.mrf.mxu0
        %v3752 = vadd.f32 0.0, %v3751
        %3753 = vdwg.mxu0
        %v3754 = vadd.f32 %v3613, %v3726
        %v3755 = vadd.f32 %v3614, %v3745
        %v3756 = vadd.f32 %v3615, %v3728
        %v3757 = vadd.f32 %v3616, %v3747
        %v3758 = vadd.f32 %v3617, %v3731
        %v3759 = vadd.f32 %v3618, %v3750
        %v3760 = vadd.f32 %v3619, %v3733
        %v3761 = vadd.f32 %v3620, %v3752
        %3762 = vrot.lane.b32.xlu0 %v3008, 15
        %v3763 = vpop.permute.xlu0 %3762
        %3764 = vrot.lane.b32.xlu0 %v3009, 15
        %v3765 = vpop.permute.xlu0 %3764
        %vm3766 = vcmask 121856
        %v3767 = vsel %vm3766, %v3763, %v3765
        %v3771 = vmul.f32 %v3629, %v3763
        %v3772 = vmul.f32 %v3630, %v3767
        %v3773 = vmul.f32 %v3631, %v3765
        %v3774 = vmul.f32 %v3632, %v3763
        %v3775 = vmul.f32 %v3633, %v3767
        %v3776 = vmul.f32 %v3634, %v3765
        %v3777 = vmul.f32 %v3635, %v3763
        %v3778 = vmul.f32 %v3636, %v3767
        %v3779 = vmul.f32 %v3637, %v3765
        %v3780 = vmul.f32 %v3638, %v3763
        %v3781 = vmul.f32 %v3639, %v3767
        %v3782 = vmul.f32 %v3640, %v3765
        %v3783 = vpack.c.bf16 %v3774, %v3771
        %v3784 = vpack.c.bf16 %v3775, %v3772
        %v3785 = vpack.c.bf16 %v3776, %v3773
        %v3786 = vpack.c.bf16 %v3780, %v3777
        %v3787 = vpack.c.bf16 %v3781, %v3778
        %v3788 = vpack.c.bf16 %v3782, %v3779
        %s3789 = scalar_lea.vmem %s1, 672
        %v3790 = vld [vmem:[%s3789] sm:$0xf]
        %v3791 = vld [vmem:[%s3789 + $0x4] sm:$0xf]
        %v3792 = vld [vmem:[%s3789 + $0x8] sm:$0xf]
        %v3793 = vld [vmem:[%s3789 + $0xc] sm:$0xf]
        %v3798 = vunpack.c.l.b16 %v3790
        %v3799 = vunpack.c.l.b16 %v3791
        %v3800 = vunpack.c.l.b16 %v3792
        %v3801 = vunpack.c.l.b16 %v3793
        %v3802 = vpack.c.b16 %v3799, %v3798
        %v3803 = vpack.c.b16 %v3801, %v3800
        %3810 = vrot.lane.b32.xlu0 %v3783, 113
        %v3811 = vpop.permute.xlu0 %3810
        %3812 = vrot.lane.b32.xlu0 %v3784, 113
        %v3813 = vpop.permute.xlu0 %3812
        %3814 = vrot.lane.b32.xlu0 %v3785, 113
        %v3815 = vpop.permute.xlu0 %3814
        %3816 = vrot.lane.b32.xlu0 %v3786, 113
        %v3817 = vpop.permute.xlu0 %3816
        %3818 = vrot.lane.b32.xlu0 %v3787, 113
        %v3819 = vpop.permute.xlu0 %3818
        %3820 = vrot.lane.b32.xlu0 %v3788, 113
        %v3821 = vpop.permute.xlu0 %3820
        %vm3822 = vcmask 924672
        %v3823 = vsel %vm3822, %v3811, %v3813
        %v3824 = vsel %vm3822, %v3813, %v3815
        %v3825 = vsel %vm3822, %v3817, %v3819
        %v3826 = vsel %vm3822, %v3819, %v3821
        %v3832 = vsel %vm3114, %v3802, 0
        %v3835 = vsel %vm3114, %v3803, 0
        %3837 = vmatpush.bf16.msra.mxu0 0
        %3838 = vmatpush.bf16.msra.mxu0 0
        %3839 = vmatpush.bf16.msra.mxu0 0
        %3840 = vmatpush.bf16.msra.mxu0 0
        %3841 = vmatpush.bf16.msra.mxu0 0
        %3842 = vmatpush.bf16.msra.mxu0 0
        %3843 = vmatpush.bf16.msra.mxu0 %v3825
        %3844 = vmatpush.bf16.msra.mxu0 %v3823
        %3845 = vmatmul.bf16.gmra.mxu0 %v3832
        %v3846 = vpop.f32.mrf.mxu0
        %v3847 = vadd.f32 0.0, %v3846
        %v3848 = vpop.f32.mrf.mxu0
        %v3849 = vadd.f32 0.0, %v3848
        %3850 = vmatmul.bf16.gmra.mxu0 %v3835
        %v3851 = vpop.f32.mrf.mxu0
        %v3852 = vadd.f32 0.0, %v3851
        %v3853 = vpop.f32.mrf.mxu0
        %v3854 = vadd.f32 0.0, %v3853
        %3855 = vdwg.mxu0
        %3856 = vmatpush.bf16.msra.mxu0 0
        %3857 = vmatpush.bf16.msra.mxu0 0
        %3858 = vmatpush.bf16.msra.mxu0 0
        %3859 = vmatpush.bf16.msra.mxu0 0
        %3860 = vmatpush.bf16.msra.mxu0 0
        %3861 = vmatpush.bf16.msra.mxu0 0
        %3862 = vmatpush.bf16.msra.mxu0 %v3826
        %3863 = vmatpush.bf16.msra.mxu0 %v3824
        %3864 = vmatmul.bf16.gmra.mxu0 %v3832
        %v3865 = vpop.f32.mrf.mxu0
        %v3866 = vadd.f32 0.0, %v3865
        %v3867 = vpop.f32.mrf.mxu0
        %v3868 = vadd.f32 0.0, %v3867
        %3869 = vmatmul.bf16.gmra.mxu0 %v3835
        %v3870 = vpop.f32.mrf.mxu0
        %v3871 = vadd.f32 0.0, %v3870
        %v3872 = vpop.f32.mrf.mxu0
        %v3873 = vadd.f32 0.0, %v3872
        %3874 = vdwg.mxu0
        %v3875 = vadd.f32 %v3754, %v3847
        %v3876 = vadd.f32 %v3755, %v3866
        %v3877 = vadd.f32 %v3756, %v3849
        %v3878 = vadd.f32 %v3757, %v3868
        %v3879 = vadd.f32 %v3758, %v3852
        %v3880 = vadd.f32 %v3759, %v3871
        %v3881 = vadd.f32 %v3760, %v3854
        %v3882 = vadd.f32 %v3761, %v3873
        %s3883 = scalar_lea.vmem %s1, 688
        %v3884 = vld [vmem:[%s3883] sm:$0xf]
        %v3885 = vld [vmem:[%s3883 + $0x4] sm:$0xf]
        %v3886 = vld [vmem:[%s3883 + $0x8] sm:$0xf]
        %v3887 = vld [vmem:[%s3883 + $0xc] sm:$0xf]
        %v3892 = vunpack.c.l.b16 %v3884
        %v3893 = vunpack.c.l.b16 %v3885
        %v3894 = vunpack.c.l.b16 %v3886
        %v3895 = vunpack.c.l.b16 %v3887
        %v3896 = vpack.c.b16 %v3893, %v3892
        %v3897 = vpack.c.b16 %v3895, %v3894
        %v3906 = vunpack.c.l.b16 %v3621
        %v3907 = vunpack.c.h.b16 %v3621
        %v3908 = vunpack.c.l.b16 %v3622
        %v3909 = vunpack.c.l.b16 %v3623
        %v3910 = vunpack.c.h.b16 %v3623
        %v3911 = vunpack.c.l.b16 %v3624
        %v3912 = vunpack.c.l.b16 %v3625
        %v3913 = vunpack.c.h.b16 %v3625
        %v3914 = vunpack.c.l.b16 %v3626
        %v3915 = vunpack.c.l.b16 %v3627
        %v3916 = vunpack.c.h.b16 %v3627
        %v3917 = vunpack.c.l.b16 %v3628
        %v3918 = vpack.c.b16 %v3909, %v3906
        %v3919 = vpack.c.b16 %v3910, %v3907
        %v3920 = vpack.c.b16 %v3911, %v3908
        %v3921 = vpack.c.b16 %v3915, %v3912
        %v3922 = vpack.c.b16 %v3916, %v3913
        %v3923 = vpack.c.b16 %v3917, %v3914
        %3924 = vrot.lane.b32.xlu0 %v3918, 112
        %v3925 = vpop.permute.xlu0 %3924
        %3926 = vrot.lane.b32.xlu0 %v3919, 112
        %v3927 = vpop.permute.xlu0 %3926
        %3928 = vrot.lane.b32.xlu0 %v3920, 112
        %v3929 = vpop.permute.xlu0 %3928
        %3930 = vrot.lane.b32.xlu0 %v3921, 112
        %v3931 = vpop.permute.xlu0 %3930
        %3932 = vrot.lane.b32.xlu0 %v3922, 112
        %v3933 = vpop.permute.xlu0 %3932
        %3934 = vrot.lane.b32.xlu0 %v3923, 112
        %v3935 = vpop.permute.xlu0 %3934
        %vm3936 = vcmask 916480
        %v3937 = vsel %vm3936, %v3925, %v3927
        %v3938 = vsel %vm3936, %v3927, %v3929
        %v3939 = vsel %vm3936, %v3931, %v3933
        %v3940 = vsel %vm3936, %v3933, %v3935
        %v3946 = vsel %vm3114, %v3896, 0
        %v3949 = vsel %vm3114, %v3897, 0
        %3951 = vmatpush.bf16.msra.mxu0 0
        %3952 = vmatpush.bf16.msra.mxu0 0
        %3953 = vmatpush.bf16.msra.mxu0 0
        %3954 = vmatpush.bf16.msra.mxu0 0
        %3955 = vmatpush.bf16.msra.mxu0 0
        %3956 = vmatpush.bf16.msra.mxu0 0
        %3957 = vmatpush.bf16.msra.mxu0 %v3939
        %3958 = vmatpush.bf16.msra.mxu0 %v3937
        %3959 = vmatmul.bf16.gmra.mxu0 %v3946
        %v3960 = vpop.f32.mrf.mxu0
        %v3961 = vadd.f32 0.0, %v3960
        %v3962 = vpop.f32.mrf.mxu0
        %v3963 = vadd.f32 0.0, %v3962
        %3964 = vmatmul.bf16.gmra.mxu0 %v3949
        %v3965 = vpop.f32.mrf.mxu0
        %v3966 = vadd.f32 0.0, %v3965
        %v3967 = vpop.f32.mrf.mxu0
        %v3968 = vadd.f32 0.0, %v3967
        %3969 = vdwg.mxu0
        %3970 = vmatpush.bf16.msra.mxu0 0
        %3971 = vmatpush.bf16.msra.mxu0 0
        %3972 = vmatpush.bf16.msra.mxu0 0
        %3973 = vmatpush.bf16.msra.mxu0 0
        %3974 = vmatpush.bf16.msra.mxu0 0
        %3975 = vmatpush.bf16.msra.mxu0 0
        %3976 = vmatpush.bf16.msra.mxu0 %v3940
        %3977 = vmatpush.bf16.msra.mxu0 %v3938
        %3978 = vmatmul.bf16.gmra.mxu0 %v3946
        %v3979 = vpop.f32.mrf.mxu0
        %v3980 = vadd.f32 0.0, %v3979
        %v3981 = vpop.f32.mrf.mxu0
        %v3982 = vadd.f32 0.0, %v3981
        %3983 = vmatmul.bf16.gmra.mxu0 %v3949
        %v3984 = vpop.f32.mrf.mxu0
        %v3985 = vadd.f32 0.0, %v3984
        %v3986 = vpop.f32.mrf.mxu0
        %v3987 = vadd.f32 0.0, %v3986
        %3988 = vdwg.mxu0
        %v3989 = vadd.f32 %v3875, %v3961
        %v3990 = vadd.f32 %v3876, %v3980
        %v3991 = vadd.f32 %v3877, %v3963
        %v3992 = vadd.f32 %v3878, %v3982
        %v3993 = vadd.f32 %v3879, %v3966
        %v3994 = vadd.f32 %v3880, %v3985
        %v3995 = vadd.f32 %v3881, %v3968
        %v3996 = vadd.f32 %v3882, %v3987
        %3997 = vrot.lane.b32.xlu0 %v3264, 17
        %v3998 = vpop.permute.xlu0 %3997
        %3999 = vrot.lane.b32.xlu0 %v3265, 17
        %v4000 = vpop.permute.xlu0 %3999
        %vm4001 = vcmask 138240
        %v4002 = vsel %vm4001, %v3998, %v4000
        %v4006 = vmul.f32 %v3629, %v3998
        %v4007 = vmul.f32 %v3630, %v4002
        %v4008 = vmul.f32 %v3631, %v4000
        %v4009 = vmul.f32 %v3632, %v3998
        %v4010 = vmul.f32 %v3633, %v4002
        %v4011 = vmul.f32 %v3634, %v4000
        %v4012 = vmul.f32 %v3635, %v3998
        %v4013 = vmul.f32 %v3636, %v4002
        %v4014 = vmul.f32 %v3637, %v4000
        %v4015 = vmul.f32 %v3638, %v3998
        %v4016 = vmul.f32 %v3639, %v4002
        %v4017 = vmul.f32 %v3640, %v4000
        %v4018 = vpack.c.bf16 %v4009, %v4006
        %v4019 = vpack.c.bf16 %v4010, %v4007
        %v4020 = vpack.c.bf16 %v4011, %v4008
        %v4021 = vpack.c.bf16 %v4015, %v4012
        %v4022 = vpack.c.bf16 %v4016, %v4013
        %v4023 = vpack.c.bf16 %v4017, %v4014
        %s4024 = scalar_lea.vmem %s1, 704
        %v4025 = vld [vmem:[%s4024] sm:$0xf]
        %v4026 = vld [vmem:[%s4024 + $0x4] sm:$0xf]
        %v4027 = vld [vmem:[%s4024 + $0x8] sm:$0xf]
        %v4028 = vld [vmem:[%s4024 + $0xc] sm:$0xf]
        %v4033 = vunpack.c.l.b16 %v4025
        %v4034 = vunpack.c.l.b16 %v4026
        %v4035 = vunpack.c.l.b16 %v4027
        %v4036 = vunpack.c.l.b16 %v4028
        %v4037 = vpack.c.b16 %v4034, %v4033
        %v4038 = vpack.c.b16 %v4036, %v4035
        %4045 = vrot.lane.b32.xlu0 %v4018, 111
        %v4046 = vpop.permute.xlu0 %4045
        %4047 = vrot.lane.b32.xlu0 %v4019, 111
        %v4048 = vpop.permute.xlu0 %4047
        %4049 = vrot.lane.b32.xlu0 %v4020, 111
        %v4050 = vpop.permute.xlu0 %4049
        %4051 = vrot.lane.b32.xlu0 %v4021, 111
        %v4052 = vpop.permute.xlu0 %4051
        %4053 = vrot.lane.b32.xlu0 %v4022, 111
        %v4054 = vpop.permute.xlu0 %4053
        %4055 = vrot.lane.b32.xlu0 %v4023, 111
        %v4056 = vpop.permute.xlu0 %4055
        %vm4057 = vcmask 908288
        %v4058 = vsel %vm4057, %v4046, %v4048
        %v4059 = vsel %vm4057, %v4048, %v4050
        %v4060 = vsel %vm4057, %v4052, %v4054
        %v4061 = vsel %vm4057, %v4054, %v4056
        %v4067 = vsel %vm3114, %v4037, 0
        %v4070 = vsel %vm3114, %v4038, 0
        %4072 = vmatpush.bf16.msra.mxu0 0
        %4073 = vmatpush.bf16.msra.mxu0 0
        %4074 = vmatpush.bf16.msra.mxu0 0
        %4075 = vmatpush.bf16.msra.mxu0 0
        %4076 = vmatpush.bf16.msra.mxu0 0
        %4077 = vmatpush.bf16.msra.mxu0 0
        %4078 = vmatpush.bf16.msra.mxu0 %v4060
        %4079 = vmatpush.bf16.msra.mxu0 %v4058
        %4080 = vmatmul.bf16.gmra.mxu0 %v4067
        %v4081 = vpop.f32.mrf.mxu0
        %v4082 = vadd.f32 0.0, %v4081
        %v4083 = vpop.f32.mrf.mxu0
        %v4084 = vadd.f32 0.0, %v4083
        %4085 = vmatmul.bf16.gmra.mxu0 %v4070
        %v4086 = vpop.f32.mrf.mxu0
        %v4087 = vadd.f32 0.0, %v4086
        %v4088 = vpop.f32.mrf.mxu0
        %v4089 = vadd.f32 0.0, %v4088
        %4090 = vdwg.mxu0
        %4091 = vmatpush.bf16.msra.mxu0 0
        %4092 = vmatpush.bf16.msra.mxu0 0
        %4093 = vmatpush.bf16.msra.mxu0 0
        %4094 = vmatpush.bf16.msra.mxu0 0
        %4095 = vmatpush.bf16.msra.mxu0 0
        %4096 = vmatpush.bf16.msra.mxu0 0
        %4097 = vmatpush.bf16.msra.mxu0 %v4061
        %4098 = vmatpush.bf16.msra.mxu0 %v4059
        %4099 = vmatmul.bf16.gmra.mxu0 %v4067
        %v4100 = vpop.f32.mrf.mxu0
        %v4101 = vadd.f32 0.0, %v4100
        %v4102 = vpop.f32.mrf.mxu0
        %v4103 = vadd.f32 0.0, %v4102
        %4104 = vmatmul.bf16.gmra.mxu0 %v4070
        %v4105 = vpop.f32.mrf.mxu0
        %v4106 = vadd.f32 0.0, %v4105
        %v4107 = vpop.f32.mrf.mxu0
        %v4108 = vadd.f32 0.0, %v4107
        %4109 = vdwg.mxu0
        %v4110 = vadd.f32 %v3989, %v4082
        %v4111 = vadd.f32 %v3990, %v4101
        %v4112 = vadd.f32 %v3991, %v4084
        %v4113 = vadd.f32 %v3992, %v4103
        %v4114 = vadd.f32 %v3993, %v4087
        %v4115 = vadd.f32 %v3994, %v4106
        %v4116 = vadd.f32 %v3995, %v4089
        %v4117 = vadd.f32 %v3996, %v4108
        %s4118 = scalar_lea.vmem %s2, 128
        %v4119 = vld [vmem:[%s4118] sm:$0xff]
        %v4120 = vld [vmem:[%s4118 + $0x8] sm:$0xff]
        %v4121 = vld [vmem:[%s4118 + $0x10] sm:$0xff]
        %v4122 = vld [vmem:[%s4118 + $0x18] sm:$0xff]
        %4124 = vset.pattern.permute.xlu0 0
        %4125 = vperm.xlu0 %4124, %v4119
        %v4126 = vpop.permute.xlu0 %4125
        %4129 = vset.pattern.permute.xlu0 0
        %4130 = vperm.xlu0 %4129, %v4120
        %v4131 = vpop.permute.xlu0 %4130
        %4134 = vset.pattern.permute.xlu0 0
        %4135 = vperm.xlu0 %4134, %v4121
        %v4136 = vpop.permute.xlu0 %4135
        %4139 = vset.pattern.permute.xlu0 0
        %4140 = vperm.xlu0 %4139, %v4122
        %v4141 = vpop.permute.xlu0 %4140
        %v4143 = vadd.f32 %v4110, %v4126
        %v4144 = vadd.f32 %v4111, %v4126
        %v4145 = vadd.f32 %v4112, %v4131
        %v4146 = vadd.f32 %v4113, %v4131
        %v4147 = vadd.f32 %v4114, %v4136
        %v4148 = vadd.f32 %v4115, %v4136
        %v4149 = vadd.f32 %v4116, %v4141
        %v4150 = vadd.f32 %v4117, %v4141
        %v4151 = vld [vmem:[%s303] sm:$0xff]
        %v4152 = vld [vmem:[%s303 + $0x8] sm:$0xff]
        %v4153 = vld [vmem:[%s303 + $0x10] sm:$0xff]
        %v4154 = vld [vmem:[%s303 + $0x18] sm:$0xff]
        %v4155 = vld [vmem:[%s303 + $0x20] sm:$0xff]
        %v4156 = vld [vmem:[%s303 + $0x28] sm:$0xff]
        %v4157 = vld [vmem:[%s303 + $0x30] sm:$0xff]
        %v4158 = vld [vmem:[%s303 + $0x38] sm:$0xff]
        %v4159 = vadd.f32 %v4143, %v4151
        %v4160 = vadd.f32 %v4144, %v4152
        %v4161 = vadd.f32 %v4145, %v4153
        %v4162 = vadd.f32 %v4146, %v4154
        %v4163 = vadd.f32 %v4147, %v4155
        %v4164 = vadd.f32 %v4148, %v4156
        %v4165 = vadd.f32 %v4149, %v4157
        %v4166 = vadd.f32 %v4150, %v4158
        %4167 = vst [vmem:[%s298] sm:$0xff] %v4159
        %4168 = vst [vmem:[%s298 + $0x8] sm:$0xff] %v4160
        %4169 = vst [vmem:[%s298 + $0x10] sm:$0xff] %v4161
        %4170 = vst [vmem:[%s298 + $0x18] sm:$0xff] %v4162
        %4171 = vst [vmem:[%s298 + $0x20] sm:$0xff] %v4163
        %4172 = vst [vmem:[%s298 + $0x28] sm:$0xff] %v4164
        %4173 = vst [vmem:[%s298 + $0x30] sm:$0xff] %v4165
        %4174 = vst [vmem:[%s298 + $0x38] sm:$0xff] %v4166
        %s4175 = sand.u32 %s203, 1
        %s4176 = scalar_lea.sflag [#allocation4], %s4175
        %s4177 = sand.u32 %s203, 1
        %s4178 = smul.addr %s4177, 64
        %s4179 = scalar_lea.vmem [#allocation3], %s4178
        // Predicated region
        $region60: #{tpu_custom_call.1} parent=51 // pred_check
          %p4180 = pneg %p213
        $region61: #{tpu_custom_call.1} parent=51 // pred_check_branch
          %4182 = sbr.rel (%p4180) target = $region63
        $region62: #{tpu_custom_call.1} parent=51 // pred_region
          %4184 = vsyncadd %s4176, 0
          %s4185 = smul.addr %s22, 8
          %s4186 = smul.addr %s4185, 8
          %s4187 = scalar_lea.hbm %s8, %s4186
          %s4188 = sshll.u32 %s4179, 4
          %s4189 = int_to_ptr.vmem [resolvable:$true] %s4188
          %s4190 = sshll.u32 %s4187, 4
          %s4191 = int_to_ptr.hbm [resolvable:$true] %s4190
          %4196 = dma.vmem_to_hbm [thread:$0]  %s4189, 1024, %s4191, %s4176, 256, 256, 16
        $region63: #{tpu_custom_call.1} parent=51 // pred_fallthru
          _
      $region52: #{tpu_custom_call.1} parent=5 // pred_fallthru
        _
      %p4197 = scmp.le.s32.totalorder 2, %s17
      // Predicated region
      $region64: #{tpu_custom_call.1} parent=5 // pred_check
        %p4198 = pneg %p4197
      $region65: #{tpu_custom_call.1} parent=5 // pred_check_branch
        %4200 = sbr.rel (%p4198) target = $region67
      $region66: #{tpu_custom_call.1} parent=5 // pred_region
        %s4201 = ssub.s32 %s17, 2
        // Predicated region
        $region68: #{tpu_custom_call.1} parent=66 // pred_check
          %p4202 = pneg %p219
        $region69: #{tpu_custom_call.1} parent=66 // pred_check_branch
          %4204 = sbr.rel (%p4202) target = $region71
        $region70: #{tpu_custom_call.1} parent=66 // pred_region
          %s4205 = sand.u32 %s204, 1
          %s4206 = scalar_lea.sflag [#allocation4], %s4205
          %s4207 = sand.u32 %s204, 1
          %s4208 = smul.addr %s4207, 64
          %s4209 = scalar_lea.vmem [#allocation3], %s4208
          %4211 = dma.done %s4206, 1024
        $region71: #{tpu_custom_call.1} parent=66 // pred_fallthru
          _
      $region67: #{tpu_custom_call.1} parent=5 // pred_fallthru
        _
    $region6: #{tpu_custom_call.1} parent=1 // loop_footer
      %s21 = sadd.s32 1, %s17
    $region7: #{tpu_custom_call.1} parent=1 // loop_footer_branch
      %16 = sbr.rel target = $region3
    $region8: #{tpu_custom_call.1} parent=1 // loop_exit
      _
    %4212 = vsyncpa [#allocation4], 1
    %s4213 = scalar_lea.sflag [#allocation4], 1
    %4214 = vsyncpa %s4213, 1

</llo_original>
